<compile_context>
chip_gen: v6e
topology: v6e:2x2x1
jax: 0.10.0
libtpu: 0.0.40
codegen_flags: <defaults>
</compile_context>

<pallas_src>
import functools

import jax
import jax.numpy as jnp
from jax import lax
from jax.experimental import pallas as pl
from jax.experimental.pallas import tpu as pltpu

LANE = 128
SUBLANE = 8


def _round_up(x, m):
    return (x + m - 1) // m * m


# ---------------------------------------------------------------------------
# Fused Pallas kernel: (conv3x3 + GroupNorm(1) [+ ReLU]) x 3, one sample / step
# ---------------------------------------------------------------------------
def _convd_fused_kernel(x_ref, mask_ref,
                        w1_ref, b1_ref, g1_ref, be1_ref,
                        w2_ref, b2_ref, g2_ref, be2_ref,
                        w3_ref, b3_ref, g3_ref, be3_ref,
                        o_ref, buf1_ref, buf2_ref,
                        *, H, W, c_real, eps):
    # x_ref   : (Rpad, Cin)   flat zero-padded input sample (row p = a*(W+2)+b)
    # mask_ref: (H*(W+2), 1)  1.0 on real output pixels, 0.0 on junk columns
    # wX_ref  : (9, CinX, Cp) per-tap conv weights (tap order dy*3+dx)
    # bX/gX/beX: (1, Cp)      conv bias / GN gamma / GN beta (zero-padded channels)
    # o_ref   : (H*(W+2), Cp) flat output (junk columns zeroed)
    # bufX_ref: (Rpad, Cp)    VMEM scratch holding the padded intermediate activations
    Wp2 = W + 2
    HWp = H * Wp2
    off = Wp2 + 1                       # flat offset of pixel (0,0) in a padded buffer
    mask = mask_ref[...]                # (HWp, 1)

    def conv_gn(tap_slice, w_ref, b_ref, g_ref, be_ref, relu):
        # 3x3 conv as 9 shifted-row-slice matmuls (in-kernel im2col), f32 accumulate.
        acc = None
        for t in range(9):
            s = (t // 3) * Wp2 + (t % 3)
            part = jnp.dot(tap_slice(s), w_ref[t],
                           preferred_element_type=jnp.float32)
            acc = part if acc is None else acc + part
        acc = acc + b_ref[...]
        # GroupNorm(num_groups=1): one-pass stats over real pixels / real channels.
        # Junk rows are masked out; padded channels have zero weight+bias so they
        # contribute exactly 0 to both sums.
        masked = acc * mask
        cnt = float(H * W * c_real)
        mean = jnp.sum(masked) / cnt
        var = jnp.maximum(jnp.sum(masked * masked) / cnt - mean * mean, 0.0)
        scale = g_ref[...] * lax.rsqrt(var + eps)        # (1, Cp)
        shift = be_ref[...] - mean * scale               # (1, Cp)
        out = acc * scale + shift
        if relu:
            out = jnp.maximum(out, 0.0)
        # Zeroed junk rows become the left/right zero padding of the next layer.
        return out * mask

    # conv1 -> gn1
    y1 = conv_gn(lambda s: x_ref[s:s + HWp, :], w1_ref, b1_ref, g1_ref, be1_ref, False)
    buf1_ref[...] = jnp.zeros_like(buf1_ref)
    buf1_ref[off:off + HWp, :] = y1

    # conv2 -> gn2 -> relu
    y2 = conv_gn(lambda s: buf1_ref[s:s + HWp, :], w2_ref, b2_ref, g2_ref, be2_ref, True)
    # TODO(synk): F.dropout2d (stochastic channel dropout) is applied as identity
    # (inference semantics) to keep the kernel deterministic.
    buf2_ref[...] = jnp.zeros_like(buf2_ref)
    buf2_ref[off:off + HWp, :] = y2

    # conv3 -> gn3 -> relu
    y3 = conv_gn(lambda s: buf2_ref[s:s + HWp, :], w3_ref, b3_ref, g3_ref, be3_ref, True)
    o_ref[...] = y3.astype(o_ref.dtype)


# ---------------------------------------------------------------------------
# Wrapper: layout glue (pool, pad, flatten) + pallas_call
# ---------------------------------------------------------------------------
def pack_convd_params(layers, inplanes, planes):
    """layers: [(w_oihw, b, gamma, beta)] * 3 as jnp arrays (PyTorch param layout)."""
    cin_p = _round_up(inplanes, SUBLANE)       # sublane-align raw input channels
    cp = _round_up(planes, LANE)               # lane-dense layer width
    params = {"cin_pad": cin_p, "c_pad": cp, "planes": planes}
    for i, (w, b, g, be) in enumerate(layers, start=1):
        cout, cin = w.shape[0], w.shape[1]
        ci_p = cin_p if i == 1 else cp
        wt = jnp.transpose(w, (2, 3, 1, 0))                       # (ky, kx, ci, co)
        wt = jnp.pad(wt, ((0, 0), (0, 0), (0, ci_p - cin), (0, cp - cout)))
        params[f"w{i}"] = wt.reshape(9, ci_p, cp)
        params[f"b{i}"] = jnp.pad(b, (0, cp - cout)).reshape(1, cp)
        params[f"g{i}"] = jnp.pad(g, (0, cp - cout)).reshape(1, cp)
        params[f"beta{i}"] = jnp.pad(be, (0, cp - cout)).reshape(1, cp)
    return params


def convd_forward(x_nchw, params, *, first=False, eps=1e-5):
    """ConvD.forward.  x_nchw: (N, Cin, H, W) float32 (PyTorch layout)."""
    x = jnp.transpose(x_nchw, (0, 2, 3, 1)).astype(jnp.float32)   # NCHW -> NHWC
    if not first:
        n, h0, w0, c0 = x.shape
        # 2x2 max-pool: plain-JAX glue; XLA fuses the reshape-max into one pass.
        x = x.reshape(n, h0 // 2, 2, w0 // 2, 2, c0).max(axis=(2, 4))

    N, H, W, Cin = x.shape
    Hp2, Wp2 = H + 2, W + 2
    HWp = H * Wp2
    cin_p = params["cin_pad"]
    cp = params["c_pad"]
    c_real = params["planes"]
    # Flat padded buffers need Hp2*Wp2 + 2 rows so the (dy=2, dx=2) tap slice stays
    # in bounds; round up to a sublane multiple.
    r_pad = _round_up(Hp2 * Wp2 + 2, SUBLANE)

    # zero-pad border + channels, flatten spatial to the flat padded-row layout.
    xp = jnp.pad(x, ((0, 0), (1, 1), (1, 1), (0, cin_p - Cin)))
    xp = xp.reshape(N, Hp2 * Wp2, cin_p)
    xp = jnp.pad(xp, ((0, 0), (0, r_pad - Hp2 * Wp2), (0, 0)))

    # 1.0 on rows that are real output pixels, 0.0 on the 2 junk columns per row.
    mask = ((jnp.arange(HWp) % Wp2) < W).astype(jnp.float32).reshape(HWp, 1)

    kernel = functools.partial(_convd_fused_kernel, H=H, W=W, c_real=c_real, eps=eps)
    vec = pl.BlockSpec((1, cp), lambda n: (0, 0))

    def full(a):
        return pl.BlockSpec(a.shape, lambda n, _nd=a.ndim: (0,) * _nd)

    out = pl.pallas_call(
        kernel,
        out_shape=jax.ShapeDtypeStruct((N, HWp, cp), jnp.float32),
        grid=(N,),
        in_specs=[
            pl.BlockSpec((None, r_pad, cin_p), lambda n: (n, 0, 0)),   # one sample
            full(mask),
            full(params["w1"]), vec, vec, vec,
            full(params["w2"]), vec, vec, vec,
            full(params["w3"]), vec, vec, vec,
        ],
        out_specs=pl.BlockSpec((None, HWp, cp), lambda n: (n, 0, 0)),
        scratch_shapes=[pltpu.VMEM((r_pad, cp), jnp.float32),
                        pltpu.VMEM((r_pad, cp), jnp.float32)],
        compiler_params=pltpu.CompilerParams(dimension_semantics=("parallel",)),
    )(xp, mask,
      params["w1"], params["b1"], params["g1"], params["beta1"],
      params["w2"], params["b2"], params["g2"], params["beta2"],
      params["w3"], params["b3"], params["g3"], params["beta3"])

    # Drop junk columns / padded channels, back to NCHW.
    out = out.reshape(N, H, Wp2, cp)[:, :, :W, :c_real]
    return jnp.transpose(out, (0, 3, 1, 2))


# ---------------------------------------------------------------------------
# Pure-JAX reference (for verification)
# ---------------------------------------------------------------------------
def _ref_conv_gn(x, w_oihw, b, gamma, beta, apply_relu, eps=1e-5):
    w_hwio = jnp.transpose(w_oihw, (2, 3, 1, 0))
    y = lax.conv_general_dilated(x, w_hwio, (1, 1), "SAME",
                                 dimension_numbers=("NHWC", "HWIO", "NHWC"))
    y = y + b.reshape(1, 1, 1, -1)
    mean = jnp.mean(y, axis=(1, 2, 3), keepdims=True)
    var = jnp.mean((y - mean) ** 2, axis=(1, 2, 3), keepdims=True)
    y = (y - mean) * lax.rsqrt(var + eps)
    y = y * gamma.reshape(1, 1, 1, -1) + beta.reshape(1, 1, 1, -1)
    if apply_relu:
        y = jnp.maximum(y, 0.0)
    return y


def _ref_forward(x_nchw, layers, first=False, eps=1e-5):
    x = jnp.transpose(x_nchw, (0, 2, 3, 1))
    if not first:
        n, h, w, c = x.shape
        x = x.reshape(n, h // 2, 2, w // 2, 2, c).max(axis=(2, 4))
    (w1, b1, g1, be1), (w2, b2, g2, be2), (w3, b3, g3, be3) = layers
    x = _ref_conv_gn(x, w1, b1, g1, be1, False, eps)
    y = _ref_conv_gn(x, w2, b2, g2, be2, True, eps)
    z = _ref_conv_gn(y, w3, b3, g3, be3, True, eps)
    return jnp.transpose(z, (0, 3, 1, 2))


# ---------------------------------------------------------------------------
# Main
# ---------------------------------------------------------------------------
if __name__ == "__main__":
    key = jax.random.PRNGKey(0)
    N, INPLANES, H, W = 2, 4, 16, 16
    PLANES = 8
    FIRST = False  # first=False => 2x2 maxpool runs before conv1

    keys = jax.random.split(key, 4)
    x = jax.random.normal(keys[0], (N, INPLANES, H, W), jnp.float32)

    def make_layer(k, cin, cout):
        kw, kb, kg, kbe = jax.random.split(k, 4)
        w = jax.random.normal(kw, (cout, cin, 3, 3), jnp.float32) * 0.1
        b = jax.random.normal(kb, (cout,), jnp.float32) * 0.1
        g = 1.0 + 0.1 * jax.random.normal(kg, (cout,), jnp.float32)
        be = 0.1 * jax.random.normal(kbe, (cout,), jnp.float32)
        return w, b, g, be

    layers = [make_layer(keys[1], INPLANES, PLANES),
              make_layer(keys[2], PLANES, PLANES),
              make_layer(keys[3], PLANES, PLANES)]

    params = pack_convd_params(layers, INPLANES, PLANES)

    out = jax.block_until_ready(convd_forward(x, params, first=FIRST))
    ref = jax.block_until_ready(_ref_forward(x, layers, first=FIRST))

    assert out.shape == ref.shape == (N, PLANES, H // 2, W // 2), out.shape
    max_err = float(jnp.max(jnp.abs(out - ref)))
    # Tolerance covers a possible bf16 single-pass MXU in one path vs. multi-pass
    # f32 in the other (both kernel and reference run at default matmul precision).
    assert jnp.allclose(out, ref, atol=3e-2, rtol=3e-2), max_err
    print("KERNEL_OK")
</pallas_src>

<mosaic_0001>
module attributes {stable_mosaic.version = 11 : i64} {
  func.func @_convd_fused_kernel(%arg0: i32, %arg1: memref<1x104x8xf32, #tpu.memory_space<vmem>>, %arg2: memref<80x1xf32, #tpu.memory_space<vmem>>, %arg3: memref<9x8x128xf32, #tpu.memory_space<vmem>>, %arg4: memref<1x128xf32, #tpu.memory_space<vmem>>, %arg5: memref<1x128xf32, #tpu.memory_space<vmem>>, %arg6: memref<1x128xf32, #tpu.memory_space<vmem>>, %arg7: memref<9x128x128xf32, #tpu.memory_space<vmem>>, %arg8: memref<1x128xf32, #tpu.memory_space<vmem>>, %arg9: memref<1x128xf32, #tpu.memory_space<vmem>>, %arg10: memref<1x128xf32, #tpu.memory_space<vmem>>, %arg11: memref<9x128x128xf32, #tpu.memory_space<vmem>>, %arg12: memref<1x128xf32, #tpu.memory_space<vmem>>, %arg13: memref<1x128xf32, #tpu.memory_space<vmem>>, %arg14: memref<1x128xf32, #tpu.memory_space<vmem>>, %arg15: memref<1x80x128xf32, #tpu.memory_space<vmem>>, %arg16: memref<104x128xf32, #tpu.memory_space<vmem>>, %arg17: memref<104x128xf32, #tpu.memory_space<vmem>>) attributes {dimension_semantics = [#tpu.dimension_semantics<parallel>], iteration_bounds = array<i64: 2>, scalar_prefetch = 0 : i64, scratch_operands = 2 : i64, tpu.core_type = #tpu.core_type<tc>, window_params = [{transform_indices = @transform_0, window_bounds = array<i64: 1, 104, 8>}, {pipeline_mode = #tpu.pipeline_mode<synchronous>, transform_indices = @transform_1, window_bounds = array<i64: 80, 1>}, {pipeline_mode = #tpu.pipeline_mode<synchronous>, transform_indices = @transform_2, window_bounds = array<i64: 9, 8, 128>}, {pipeline_mode = #tpu.pipeline_mode<synchronous>, transform_indices = @transform_3, window_bounds = array<i64: 1, 128>}, {pipeline_mode = #tpu.pipeline_mode<synchronous>, transform_indices = @transform_4, window_bounds = array<i64: 1, 128>}, {pipeline_mode = #tpu.pipeline_mode<synchronous>, transform_indices = @transform_5, window_bounds = array<i64: 1, 128>}, {pipeline_mode = #tpu.pipeline_mode<synchronous>, transform_indices = @transform_6, window_bounds = array<i64: 9, 128, 128>}, {pipeline_mode = #tpu.pipeline_mode<synchronous>, transform_indices = @transform_7, window_bounds = array<i64: 1, 128>}, {pipeline_mode = #tpu.pipeline_mode<synchronous>, transform_indices = @transform_8, window_bounds = array<i64: 1, 128>}, {pipeline_mode = #tpu.pipeline_mode<synchronous>, transform_indices = @transform_9, window_bounds = array<i64: 1, 128>}, {pipeline_mode = #tpu.pipeline_mode<synchronous>, transform_indices = @transform_10, window_bounds = array<i64: 9, 128, 128>}, {pipeline_mode = #tpu.pipeline_mode<synchronous>, transform_indices = @transform_11, window_bounds = array<i64: 1, 128>}, {pipeline_mode = #tpu.pipeline_mode<synchronous>, transform_indices = @transform_12, window_bounds = array<i64: 1, 128>}, {pipeline_mode = #tpu.pipeline_mode<synchronous>, transform_indices = @transform_13, window_bounds = array<i64: 1, 128>}, {transform_indices = @transform_14, window_bounds = array<i64: 1, 80, 128>}]} {
    %c0 = arith.constant 0 : index
    %c0_0 = arith.constant 0 : index
    %0 = vector.load %arg2[%c0, %c0_0] : memref<80x1xf32, #tpu.memory_space<vmem>>, vector<80x1xf32>
    %c0_1 = arith.constant 0 : index
    %c0_2 = arith.constant 0 : index
    %c0_3 = arith.constant 0 : index
    %1 = vector.load %arg1[%c0_1, %c0_2, %c0_3] : memref<1x104x8xf32, #tpu.memory_space<vmem>>, vector<1x80x8xf32>
    %2 = vector.shape_cast %1 : vector<1x80x8xf32> to vector<80x8xf32>
    %c0_4 = arith.constant 0 : index
    %c0_5 = arith.constant 0 : index
    %c0_6 = arith.constant 0 : index
    %3 = vector.load %arg3[%c0_4, %c0_5, %c0_6] : memref<9x8x128xf32, #tpu.memory_space<vmem>>, vector<1x8x128xf32>
    %4 = vector.shape_cast %3 : vector<1x8x128xf32> to vector<8x128xf32>
    %cst = arith.constant dense<0.000000e+00> : vector<80x128xf32>
    %5 = tpu.matmul %2, %4, %cst {dimension_numbers = #tpu.dot_dimension_numbers<[1], [0], [0], [1], [0, 0, 1, 1], [], []>} : vector<80x8xf32>, vector<8x128xf32>, vector<80x128xf32> -> vector<80x128xf32>
    %c0_7 = arith.constant 0 : index
    %c1 = arith.constant 1 : index
    %c0_8 = arith.constant 0 : index
    %6 = vector.load %arg1[%c0_7, %c1, %c0_8] : memref<1x104x8xf32, #tpu.memory_space<vmem>>, vector<1x80x8xf32>
    %7 = vector.shape_cast %6 : vector<1x80x8xf32> to vector<80x8xf32>
    %c1_9 = arith.constant 1 : index
    %c0_10 = arith.constant 0 : index
    %c0_11 = arith.constant 0 : index
    %8 = vector.load %arg3[%c1_9, %c0_10, %c0_11] : memref<9x8x128xf32, #tpu.memory_space<vmem>>, vector<1x8x128xf32>
    %9 = vector.shape_cast %8 : vector<1x8x128xf32> to vector<8x128xf32>
    %cst_12 = arith.constant dense<0.000000e+00> : vector<80x128xf32>
    %10 = tpu.matmul %7, %9, %cst_12 {dimension_numbers = #tpu.dot_dimension_numbers<[1], [0], [0], [1], [0, 0, 1, 1], [], []>} : vector<80x8xf32>, vector<8x128xf32>, vector<80x128xf32> -> vector<80x128xf32>
    %11 = arith.addf %5, %10 : vector<80x128xf32>
    %c0_13 = arith.constant 0 : index
    %c2 = arith.constant 2 : index
    %c0_14 = arith.constant 0 : index
    %12 = vector.load %arg1[%c0_13, %c2, %c0_14] : memref<1x104x8xf32, #tpu.memory_space<vmem>>, vector<1x80x8xf32>
    %13 = vector.shape_cast %12 : vector<1x80x8xf32> to vector<80x8xf32>
    %c2_15 = arith.constant 2 : index
    %c0_16 = arith.constant 0 : index
    %c0_17 = arith.constant 0 : index
    %14 = vector.load %arg3[%c2_15, %c0_16, %c0_17] : memref<9x8x128xf32, #tpu.memory_space<vmem>>, vector<1x8x128xf32>
    %15 = vector.shape_cast %14 : vector<1x8x128xf32> to vector<8x128xf32>
    %cst_18 = arith.constant dense<0.000000e+00> : vector<80x128xf32>
    %16 = tpu.matmul %13, %15, %cst_18 {dimension_numbers = #tpu.dot_dimension_numbers<[1], [0], [0], [1], [0, 0, 1, 1], [], []>} : vector<80x8xf32>, vector<8x128xf32>, vector<80x128xf32> -> vector<80x128xf32>
    %17 = arith.addf %11, %16 : vector<80x128xf32>
    %c0_19 = arith.constant 0 : index
    %c10 = arith.constant 10 : index
    %c0_20 = arith.constant 0 : index
    %18 = vector.load %arg1[%c0_19, %c10, %c0_20] : memref<1x104x8xf32, #tpu.memory_space<vmem>>, vector<1x80x8xf32>
    %19 = vector.shape_cast %18 : vector<1x80x8xf32> to vector<80x8xf32>
    %c3 = arith.constant 3 : index
    %c0_21 = arith.constant 0 : index
    %c0_22 = arith.constant 0 : index
    %20 = vector.load %arg3[%c3, %c0_21, %c0_22] : memref<9x8x128xf32, #tpu.memory_space<vmem>>, vector<1x8x128xf32>
    %21 = vector.shape_cast %20 : vector<1x8x128xf32> to vector<8x128xf32>
    %cst_23 = arith.constant dense<0.000000e+00> : vector<80x128xf32>
    %22 = tpu.matmul %19, %21, %cst_23 {dimension_numbers = #tpu.dot_dimension_numbers<[1], [0], [0], [1], [0, 0, 1, 1], [], []>} : vector<80x8xf32>, vector<8x128xf32>, vector<80x128xf32> -> vector<80x128xf32>
    %23 = arith.addf %17, %22 : vector<80x128xf32>
    %c0_24 = arith.constant 0 : index
    %c11 = arith.constant 11 : index
    %c0_25 = arith.constant 0 : index
    %24 = vector.load %arg1[%c0_24, %c11, %c0_25] : memref<1x104x8xf32, #tpu.memory_space<vmem>>, vector<1x80x8xf32>
    %25 = vector.shape_cast %24 : vector<1x80x8xf32> to vector<80x8xf32>
    %c4 = arith.constant 4 : index
    %c0_26 = arith.constant 0 : index
    %c0_27 = arith.constant 0 : index
    %26 = vector.load %arg3[%c4, %c0_26, %c0_27] : memref<9x8x128xf32, #tpu.memory_space<vmem>>, vector<1x8x128xf32>
    %27 = vector.shape_cast %26 : vector<1x8x128xf32> to vector<8x128xf32>
    %cst_28 = arith.constant dense<0.000000e+00> : vector<80x128xf32>
    %28 = tpu.matmul %25, %27, %cst_28 {dimension_numbers = #tpu.dot_dimension_numbers<[1], [0], [0], [1], [0, 0, 1, 1], [], []>} : vector<80x8xf32>, vector<8x128xf32>, vector<80x128xf32> -> vector<80x128xf32>
    %29 = arith.addf %23, %28 : vector<80x128xf32>
    %c0_29 = arith.constant 0 : index
    %c12 = arith.constant 12 : index
    %c0_30 = arith.constant 0 : index
    %30 = vector.load %arg1[%c0_29, %c12, %c0_30] : memref<1x104x8xf32, #tpu.memory_space<vmem>>, vector<1x80x8xf32>
    %31 = vector.shape_cast %30 : vector<1x80x8xf32> to vector<80x8xf32>
    %c5 = arith.constant 5 : index
    %c0_31 = arith.constant 0 : index
    %c0_32 = arith.constant 0 : index
    %32 = vector.load %arg3[%c5, %c0_31, %c0_32] : memref<9x8x128xf32, #tpu.memory_space<vmem>>, vector<1x8x128xf32>
    %33 = vector.shape_cast %32 : vector<1x8x128xf32> to vector<8x128xf32>
    %cst_33 = arith.constant dense<0.000000e+00> : vector<80x128xf32>
    %34 = tpu.matmul %31, %33, %cst_33 {dimension_numbers = #tpu.dot_dimension_numbers<[1], [0], [0], [1], [0, 0, 1, 1], [], []>} : vector<80x8xf32>, vector<8x128xf32>, vector<80x128xf32> -> vector<80x128xf32>
    %35 = arith.addf %29, %34 : vector<80x128xf32>
    %c0_34 = arith.constant 0 : index
    %c20 = arith.constant 20 : index
    %c0_35 = arith.constant 0 : index
    %36 = vector.load %arg1[%c0_34, %c20, %c0_35] : memref<1x104x8xf32, #tpu.memory_space<vmem>>, vector<1x80x8xf32>
    %37 = vector.shape_cast %36 : vector<1x80x8xf32> to vector<80x8xf32>
    %c6 = arith.constant 6 : index
    %c0_36 = arith.constant 0 : index
    %c0_37 = arith.constant 0 : index
    %38 = vector.load %arg3[%c6, %c0_36, %c0_37] : memref<9x8x128xf32, #tpu.memory_space<vmem>>, vector<1x8x128xf32>
    %39 = vector.shape_cast %38 : vector<1x8x128xf32> to vector<8x128xf32>
    %cst_38 = arith.constant dense<0.000000e+00> : vector<80x128xf32>
    %40 = tpu.matmul %37, %39, %cst_38 {dimension_numbers = #tpu.dot_dimension_numbers<[1], [0], [0], [1], [0, 0, 1, 1], [], []>} : vector<80x8xf32>, vector<8x128xf32>, vector<80x128xf32> -> vector<80x128xf32>
    %41 = arith.addf %35, %40 : vector<80x128xf32>
    %c0_39 = arith.constant 0 : index
    %c21 = arith.constant 21 : index
    %c0_40 = arith.constant 0 : index
    %42 = vector.load %arg1[%c0_39, %c21, %c0_40] : memref<1x104x8xf32, #tpu.memory_space<vmem>>, vector<1x80x8xf32>
    %43 = vector.shape_cast %42 : vector<1x80x8xf32> to vector<80x8xf32>
    %c7 = arith.constant 7 : index
    %c0_41 = arith.constant 0 : index
    %c0_42 = arith.constant 0 : index
    %44 = vector.load %arg3[%c7, %c0_41, %c0_42] : memref<9x8x128xf32, #tpu.memory_space<vmem>>, vector<1x8x128xf32>
    %45 = vector.shape_cast %44 : vector<1x8x128xf32> to vector<8x128xf32>
    %cst_43 = arith.constant dense<0.000000e+00> : vector<80x128xf32>
    %46 = tpu.matmul %43, %45, %cst_43 {dimension_numbers = #tpu.dot_dimension_numbers<[1], [0], [0], [1], [0, 0, 1, 1], [], []>} : vector<80x8xf32>, vector<8x128xf32>, vector<80x128xf32> -> vector<80x128xf32>
    %47 = arith.addf %41, %46 : vector<80x128xf32>
    %c0_44 = arith.constant 0 : index
    %c22 = arith.constant 22 : index
    %c0_45 = arith.constant 0 : index
    %48 = vector.load %arg1[%c0_44, %c22, %c0_45] : memref<1x104x8xf32, #tpu.memory_space<vmem>>, vector<1x80x8xf32>
    %49 = vector.shape_cast %48 : vector<1x80x8xf32> to vector<80x8xf32>
    %c8 = arith.constant 8 : index
    %c0_46 = arith.constant 0 : index
    %c0_47 = arith.constant 0 : index
    %50 = vector.load %arg3[%c8, %c0_46, %c0_47] : memref<9x8x128xf32, #tpu.memory_space<vmem>>, vector<1x8x128xf32>
    %51 = vector.shape_cast %50 : vector<1x8x128xf32> to vector<8x128xf32>
    %cst_48 = arith.constant dense<0.000000e+00> : vector<80x128xf32>
    %52 = tpu.matmul %49, %51, %cst_48 {dimension_numbers = #tpu.dot_dimension_numbers<[1], [0], [0], [1], [0, 0, 1, 1], [], []>} : vector<80x8xf32>, vector<8x128xf32>, vector<80x128xf32> -> vector<80x128xf32>
    %53 = arith.addf %47, %52 : vector<80x128xf32>
    %c0_49 = arith.constant 0 : index
    %c0_50 = arith.constant 0 : index
    %54 = vector.load %arg4[%c0_49, %c0_50] : memref<1x128xf32, #tpu.memory_space<vmem>>, vector<1x128xf32>
    %55 = vector.broadcast %54 : vector<1x128xf32> to vector<80x128xf32>
    %56 = arith.addf %53, %55 : vector<80x128xf32>
    %57 = vector.broadcast %0 : vector<80x1xf32> to vector<80x128xf32>
    %58 = arith.mulf %56, %57 : vector<80x128xf32>
    %59 = vector.shape_cast %58 : vector<80x128xf32> to vector<1x80x128xf32>
    %cst_51 = arith.constant dense<0.000000e+00> : vector<1xf32>
    %60 = vector.multi_reduction <add>, %59, %cst_51 [1, 2] : vector<1x80x128xf32> to vector<1xf32>
    %61 = vector.shape_cast %60 : vector<1xf32> to vector<1x1x1xf32>
    %62 = vector.extract %61[0, 0, 0] : f32 from vector<1x1x1xf32>
    %cst_52 = arith.constant 5.120000e+02 : f32
    %63 = arith.divf %62, %cst_52 : f32
    %64 = arith.mulf %58, %58 : vector<80x128xf32>
    %65 = vector.shape_cast %64 : vector<80x128xf32> to vector<1x80x128xf32>
    %cst_53 = arith.constant dense<0.000000e+00> : vector<1xf32>
    %66 = vector.multi_reduction <add>, %65, %cst_53 [1, 2] : vector<1x80x128xf32> to vector<1xf32>
    %67 = vector.shape_cast %66 : vector<1xf32> to vector<1x1x1xf32>
    %68 = vector.extract %67[0, 0, 0] : f32 from vector<1x1x1xf32>
    %cst_54 = arith.constant 5.120000e+02 : f32
    %69 = arith.divf %68, %cst_54 : f32
    %70 = arith.mulf %63, %63 : f32
    %71 = arith.subf %69, %70 : f32
    %cst_55 = arith.constant 0.000000e+00 : f32
    %72 = arith.maximumf %71, %cst_55 : f32
    %c0_56 = arith.constant 0 : index
    %c0_57 = arith.constant 0 : index
    %73 = vector.load %arg5[%c0_56, %c0_57] : memref<1x128xf32, #tpu.memory_space<vmem>>, vector<1x128xf32>
    %cst_58 = arith.constant 9.99999974E-6 : f32
    %74 = arith.addf %72, %cst_58 : f32
    %75 = math.rsqrt %74 : f32
    %76 = vector.broadcast %75 : f32 to vector<1x128xf32>
    %77 = arith.mulf %73, %76 : vector<1x128xf32>
    %c0_59 = arith.constant 0 : index
    %c0_60 = arith.constant 0 : index
    %78 = vector.load %arg6[%c0_59, %c0_60] : memref<1x128xf32, #tpu.memory_space<vmem>>, vector<1x128xf32>
    %79 = vector.broadcast %63 : f32 to vector<1x128xf32>
    %80 = arith.mulf %79, %77 : vector<1x128xf32>
    %81 = arith.subf %78, %80 : vector<1x128xf32>
    %82 = vector.broadcast %77 : vector<1x128xf32> to vector<80x128xf32>
    %83 = arith.mulf %56, %82 : vector<80x128xf32>
    %84 = vector.broadcast %81 : vector<1x128xf32> to vector<80x128xf32>
    %85 = arith.addf %83, %84 : vector<80x128xf32>
    %86 = vector.broadcast %0 : vector<80x1xf32> to vector<80x128xf32>
    %87 = arith.mulf %85, %86 : vector<80x128xf32>
    %cst_61 = arith.constant 0.000000e+00 : f32
    %88 = vector.broadcast %cst_61 : f32 to vector<104x128xf32>
    %c0_62 = arith.constant 0 : index
    %c0_63 = arith.constant 0 : index
    %89 = vector.load %arg16[%c0_62, %c0_63] : memref<104x128xf32, #tpu.memory_space<vmem>>, vector<104x128xf32>
    tpu.vector_store %arg16[%c0_62, %c0_63], %88 {strides = array<i32>} : memref<104x128xf32, #tpu.memory_space<vmem>>, vector<104x128xf32>,
    %c11_64 = arith.constant 11 : index
    %c0_65 = arith.constant 0 : index
    %90 = vector.load %arg16[%c11_64, %c0_65] : memref<104x128xf32, #tpu.memory_space<vmem>>, vector<80x128xf32>
    tpu.vector_store %arg16[%c11_64, %c0_65], %87 {strides = array<i32>} : memref<104x128xf32, #tpu.memory_space<vmem>>, vector<80x128xf32>,
    %c0_66 = arith.constant 0 : index
    %c0_67 = arith.constant 0 : index
    %91 = vector.load %arg16[%c0_66, %c0_67] : memref<104x128xf32, #tpu.memory_space<vmem>>, vector<80x128xf32>
    %c0_68 = arith.constant 0 : index
    %c0_69 = arith.constant 0 : index
    %c0_70 = arith.constant 0 : index
    %92 = vector.load %arg7[%c0_68, %c0_69, %c0_70] : memref<9x128x128xf32, #tpu.memory_space<vmem>>, vector<1x128x128xf32>
    %93 = vector.shape_cast %92 : vector<1x128x128xf32> to vector<128x128xf32>
    %cst_71 = arith.constant dense<0.000000e+00> : vector<80x128xf32>
    %94 = tpu.matmul %91, %93, %cst_71 {dimension_numbers = #tpu.dot_dimension_numbers<[1], [0], [0], [1], [0, 0, 1, 1], [], []>} : vector<80x128xf32>, vector<128x128xf32>, vector<80x128xf32> -> vector<80x128xf32>
    %c1_72 = arith.constant 1 : index
    %c0_73 = arith.constant 0 : index
    %95 = vector.load %arg16[%c1_72, %c0_73] : memref<104x128xf32, #tpu.memory_space<vmem>>, vector<80x128xf32>
    %c1_74 = arith.constant 1 : index
    %c0_75 = arith.constant 0 : index
    %c0_76 = arith.constant 0 : index
    %96 = vector.load %arg7[%c1_74, %c0_75, %c0_76] : memref<9x128x128xf32, #tpu.memory_space<vmem>>, vector<1x128x128xf32>
    %97 = vector.shape_cast %96 : vector<1x128x128xf32> to vector<128x128xf32>
    %cst_77 = arith.constant dense<0.000000e+00> : vector<80x128xf32>
    %98 = tpu.matmul %95, %97, %cst_77 {dimension_numbers = #tpu.dot_dimension_numbers<[1], [0], [0], [1], [0, 0, 1, 1], [], []>} : vector<80x128xf32>, vector<128x128xf32>, vector<80x128xf32> -> vector<80x128xf32>
    %99 = arith.addf %94, %98 : vector<80x128xf32>
    %c2_78 = arith.constant 2 : index
    %c0_79 = arith.constant 0 : index
    %100 = vector.load %arg16[%c2_78, %c0_79] : memref<104x128xf32, #tpu.memory_space<vmem>>, vector<80x128xf32>
    %c2_80 = arith.constant 2 : index
    %c0_81 = arith.constant 0 : index
    %c0_82 = arith.constant 0 : index
    %101 = vector.load %arg7[%c2_80, %c0_81, %c0_82] : memref<9x128x128xf32, #tpu.memory_space<vmem>>, vector<1x128x128xf32>
    %102 = vector.shape_cast %101 : vector<1x128x128xf32> to vector<128x128xf32>
    %cst_83 = arith.constant dense<0.000000e+00> : vector<80x128xf32>
    %103 = tpu.matmul %100, %102, %cst_83 {dimension_numbers = #tpu.dot_dimension_numbers<[1], [0], [0], [1], [0, 0, 1, 1], [], []>} : vector<80x128xf32>, vector<128x128xf32>, vector<80x128xf32> -> vector<80x128xf32>
    %104 = arith.addf %99, %103 : vector<80x128xf32>
    %c10_84 = arith.constant 10 : index
    %c0_85 = arith.constant 0 : index
    %105 = vector.load %arg16[%c10_84, %c0_85] : memref<104x128xf32, #tpu.memory_space<vmem>>, vector<80x128xf32>
    %c3_86 = arith.constant 3 : index
    %c0_87 = arith.constant 0 : index
    %c0_88 = arith.constant 0 : index
    %106 = vector.load %arg7[%c3_86, %c0_87, %c0_88] : memref<9x128x128xf32, #tpu.memory_space<vmem>>, vector<1x128x128xf32>
    %107 = vector.shape_cast %106 : vector<1x128x128xf32> to vector<128x128xf32>
    %cst_89 = arith.constant dense<0.000000e+00> : vector<80x128xf32>
    %108 = tpu.matmul %105, %107, %cst_89 {dimension_numbers = #tpu.dot_dimension_numbers<[1], [0], [0], [1], [0, 0, 1, 1], [], []>} : vector<80x128xf32>, vector<128x128xf32>, vector<80x128xf32> -> vector<80x128xf32>
    %109 = arith.addf %104, %108 : vector<80x128xf32>
    %c11_90 = arith.constant 11 : index
    %c0_91 = arith.constant 0 : index
    %110 = vector.load %arg16[%c11_90, %c0_91] : memref<104x128xf32, #tpu.memory_space<vmem>>, vector<80x128xf32>
    %c4_92 = arith.constant 4 : index
    %c0_93 = arith.constant 0 : index
    %c0_94 = arith.constant 0 : index
    %111 = vector.load %arg7[%c4_92, %c0_93, %c0_94] : memref<9x128x128xf32, #tpu.memory_space<vmem>>, vector<1x128x128xf32>
    %112 = vector.shape_cast %111 : vector<1x128x128xf32> to vector<128x128xf32>
    %cst_95 = arith.constant dense<0.000000e+00> : vector<80x128xf32>
    %113 = tpu.matmul %110, %112, %cst_95 {dimension_numbers = #tpu.dot_dimension_numbers<[1], [0], [0], [1], [0, 0, 1, 1], [], []>} : vector<80x128xf32>, vector<128x128xf32>, vector<80x128xf32> -> vector<80x128xf32>
    %114 = arith.addf %109, %113 : vector<80x128xf32>
    %c12_96 = arith.constant 12 : index
    %c0_97 = arith.constant 0 : index
    %115 = vector.load %arg16[%c12_96, %c0_97] : memref<104x128xf32, #tpu.memory_space<vmem>>, vector<80x128xf32>
    %c5_98 = arith.constant 5 : index
    %c0_99 = arith.constant 0 : index
    %c0_100 = arith.constant 0 : index
    %116 = vector.load %arg7[%c5_98, %c0_99, %c0_100] : memref<9x128x128xf32, #tpu.memory_space<vmem>>, vector<1x128x128xf32>
    %117 = vector.shape_cast %116 : vector<1x128x128xf32> to vector<128x128xf32>
    %cst_101 = arith.constant dense<0.000000e+00> : vector<80x128xf32>
    %118 = tpu.matmul %115, %117, %cst_101 {dimension_numbers = #tpu.dot_dimension_numbers<[1], [0], [0], [1], [0, 0, 1, 1], [], []>} : vector<80x128xf32>, vector<128x128xf32>, vector<80x128xf32> -> vector<80x128xf32>
    %119 = arith.addf %114, %118 : vector<80x128xf32>
    %c20_102 = arith.constant 20 : index
    %c0_103 = arith.constant 0 : index
    %120 = vector.load %arg16[%c20_102, %c0_103] : memref<104x128xf32, #tpu.memory_space<vmem>>, vector<80x128xf32>
    %c6_104 = arith.constant 6 : index
    %c0_105 = arith.constant 0 : index
    %c0_106 = arith.constant 0 : index
    %121 = vector.load %arg7[%c6_104, %c0_105, %c0_106] : memref<9x128x128xf32, #tpu.memory_space<vmem>>, vector<1x128x128xf32>
    %122 = vector.shape_cast %121 : vector<1x128x128xf32> to vector<128x128xf32>
    %cst_107 = arith.constant dense<0.000000e+00> : vector<80x128xf32>
    %123 = tpu.matmul %120, %122, %cst_107 {dimension_numbers = #tpu.dot_dimension_numbers<[1], [0], [0], [1], [0, 0, 1, 1], [], []>} : vector<80x128xf32>, vector<128x128xf32>, vector<80x128xf32> -> vector<80x128xf32>
    %124 = arith.addf %119, %123 : vector<80x128xf32>
    %c21_108 = arith.constant 21 : index
    %c0_109 = arith.constant 0 : index
    %125 = vector.load %arg16[%c21_108, %c0_109] : memref<104x128xf32, #tpu.memory_space<vmem>>, vector<80x128xf32>
    %c7_110 = arith.constant 7 : index
    %c0_111 = arith.constant 0 : index
    %c0_112 = arith.constant 0 : index
    %126 = vector.load %arg7[%c7_110, %c0_111, %c0_112] : memref<9x128x128xf32, #tpu.memory_space<vmem>>, vector<1x128x128xf32>
    %127 = vector.shape_cast %126 : vector<1x128x128xf32> to vector<128x128xf32>
    %cst_113 = arith.constant dense<0.000000e+00> : vector<80x128xf32>
    %128 = tpu.matmul %125, %127, %cst_113 {dimension_numbers = #tpu.dot_dimension_numbers<[1], [0], [0], [1], [0, 0, 1, 1], [], []>} : vector<80x128xf32>, vector<128x128xf32>, vector<80x128xf32> -> vector<80x128xf32>
    %129 = arith.addf %124, %128 : vector<80x128xf32>
    %c22_114 = arith.constant 22 : index
    %c0_115 = arith.constant 0 : index
    %130 = vector.load %arg16[%c22_114, %c0_115] : memref<104x128xf32, #tpu.memory_space<vmem>>, vector<80x128xf32>
    %c8_116 = arith.constant 8 : index
    %c0_117 = arith.constant 0 : index
    %c0_118 = arith.constant 0 : index
    %131 = vector.load %arg7[%c8_116, %c0_117, %c0_118] : memref<9x128x128xf32, #tpu.memory_space<vmem>>, vector<1x128x128xf32>
    %132 = vector.shape_cast %131 : vector<1x128x128xf32> to vector<128x128xf32>
    %cst_119 = arith.constant dense<0.000000e+00> : vector<80x128xf32>
    %133 = tpu.matmul %130, %132, %cst_119 {dimension_numbers = #tpu.dot_dimension_numbers<[1], [0], [0], [1], [0, 0, 1, 1], [], []>} : vector<80x128xf32>, vector<128x128xf32>, vector<80x128xf32> -> vector<80x128xf32>
    %134 = arith.addf %129, %133 : vector<80x128xf32>
    %c0_120 = arith.constant 0 : index
    %c0_121 = arith.constant 0 : index
    %135 = vector.load %arg8[%c0_120, %c0_121] : memref<1x128xf32, #tpu.memory_space<vmem>>, vector<1x128xf32>
    %136 = vector.broadcast %135 : vector<1x128xf32> to vector<80x128xf32>
    %137 = arith.addf %134, %136 : vector<80x128xf32>
    %138 = vector.broadcast %0 : vector<80x1xf32> to vector<80x128xf32>
    %139 = arith.mulf %137, %138 : vector<80x128xf32>
    %140 = vector.shape_cast %139 : vector<80x128xf32> to vector<1x80x128xf32>
    %cst_122 = arith.constant dense<0.000000e+00> : vector<1xf32>
    %141 = vector.multi_reduction <add>, %140, %cst_122 [1, 2] : vector<1x80x128xf32> to vector<1xf32>
    %142 = vector.shape_cast %141 : vector<1xf32> to vector<1x1x1xf32>
    %143 = vector.extract %142[0, 0, 0] : f32 from vector<1x1x1xf32>
    %cst_123 = arith.constant 5.120000e+02 : f32
    %144 = arith.divf %143, %cst_123 : f32
    %145 = arith.mulf %139, %139 : vector<80x128xf32>
    %146 = vector.shape_cast %145 : vector<80x128xf32> to vector<1x80x128xf32>
    %cst_124 = arith.constant dense<0.000000e+00> : vector<1xf32>
    %147 = vector.multi_reduction <add>, %146, %cst_124 [1, 2] : vector<1x80x128xf32> to vector<1xf32>
    %148 = vector.shape_cast %147 : vector<1xf32> to vector<1x1x1xf32>
    %149 = vector.extract %148[0, 0, 0] : f32 from vector<1x1x1xf32>
    %cst_125 = arith.constant 5.120000e+02 : f32
    %150 = arith.divf %149, %cst_125 : f32
    %151 = arith.mulf %144, %144 : f32
    %152 = arith.subf %150, %151 : f32
    %cst_126 = arith.constant 0.000000e+00 : f32
    %153 = arith.maximumf %152, %cst_126 : f32
    %c0_127 = arith.constant 0 : index
    %c0_128 = arith.constant 0 : index
    %154 = vector.load %arg9[%c0_127, %c0_128] : memref<1x128xf32, #tpu.memory_space<vmem>>, vector<1x128xf32>
    %cst_129 = arith.constant 9.99999974E-6 : f32
    %155 = arith.addf %153, %cst_129 : f32
    %156 = math.rsqrt %155 : f32
    %157 = vector.broadcast %156 : f32 to vector<1x128xf32>
    %158 = arith.mulf %154, %157 : vector<1x128xf32>
    %c0_130 = arith.constant 0 : index
    %c0_131 = arith.constant 0 : index
    %159 = vector.load %arg10[%c0_130, %c0_131] : memref<1x128xf32, #tpu.memory_space<vmem>>, vector<1x128xf32>
    %160 = vector.broadcast %144 : f32 to vector<1x128xf32>
    %161 = arith.mulf %160, %158 : vector<1x128xf32>
    %162 = arith.subf %159, %161 : vector<1x128xf32>
    %163 = vector.broadcast %158 : vector<1x128xf32> to vector<80x128xf32>
    %164 = arith.mulf %137, %163 : vector<80x128xf32>
    %165 = vector.broadcast %162 : vector<1x128xf32> to vector<80x128xf32>
    %166 = arith.addf %164, %165 : vector<80x128xf32>
    %cst_132 = arith.constant 0.000000e+00 : f32
    %167 = vector.broadcast %cst_132 : f32 to vector<80x128xf32>
    %168 = arith.maximumf %166, %167 : vector<80x128xf32>
    %169 = vector.broadcast %0 : vector<80x1xf32> to vector<80x128xf32>
    %170 = arith.mulf %168, %169 : vector<80x128xf32>
    %cst_133 = arith.constant 0.000000e+00 : f32
    %171 = vector.broadcast %cst_133 : f32 to vector<104x128xf32>
    %c0_134 = arith.constant 0 : index
    %c0_135 = arith.constant 0 : index
    %172 = vector.load %arg17[%c0_134, %c0_135] : memref<104x128xf32, #tpu.memory_space<vmem>>, vector<104x128xf32>
    tpu.vector_store %arg17[%c0_134, %c0_135], %171 {strides = array<i32>} : memref<104x128xf32, #tpu.memory_space<vmem>>, vector<104x128xf32>,
    %c11_136 = arith.constant 11 : index
    %c0_137 = arith.constant 0 : index
    %173 = vector.load %arg17[%c11_136, %c0_137] : memref<104x128xf32, #tpu.memory_space<vmem>>, vector<80x128xf32>
    tpu.vector_store %arg17[%c11_136, %c0_137], %170 {strides = array<i32>} : memref<104x128xf32, #tpu.memory_space<vmem>>, vector<80x128xf32>,
    %c0_138 = arith.constant 0 : index
    %c0_139 = arith.constant 0 : index
    %174 = vector.load %arg17[%c0_138, %c0_139] : memref<104x128xf32, #tpu.memory_space<vmem>>, vector<80x128xf32>
    %c0_140 = arith.constant 0 : index
    %c0_141 = arith.constant 0 : index
    %c0_142 = arith.constant 0 : index
    %175 = vector.load %arg11[%c0_140, %c0_141, %c0_142] : memref<9x128x128xf32, #tpu.memory_space<vmem>>, vector<1x128x128xf32>
    %176 = vector.shape_cast %175 : vector<1x128x128xf32> to vector<128x128xf32>
    %cst_143 = arith.constant dense<0.000000e+00> : vector<80x128xf32>
    %177 = tpu.matmul %174, %176, %cst_143 {dimension_numbers = #tpu.dot_dimension_numbers<[1], [0], [0], [1], [0, 0, 1, 1], [], []>} : vector<80x128xf32>, vector<128x128xf32>, vector<80x128xf32> -> vector<80x128xf32>
    %c1_144 = arith.constant 1 : index
    %c0_145 = arith.constant 0 : index
    %178 = vector.load %arg17[%c1_144, %c0_145] : memref<104x128xf32, #tpu.memory_space<vmem>>, vector<80x128xf32>
    %c1_146 = arith.constant 1 : index
    %c0_147 = arith.constant 0 : index
    %c0_148 = arith.constant 0 : index
    %179 = vector.load %arg11[%c1_146, %c0_147, %c0_148] : memref<9x128x128xf32, #tpu.memory_space<vmem>>, vector<1x128x128xf32>
    %180 = vector.shape_cast %179 : vector<1x128x128xf32> to vector<128x128xf32>
    %cst_149 = arith.constant dense<0.000000e+00> : vector<80x128xf32>
    %181 = tpu.matmul %178, %180, %cst_149 {dimension_numbers = #tpu.dot_dimension_numbers<[1], [0], [0], [1], [0, 0, 1, 1], [], []>} : vector<80x128xf32>, vector<128x128xf32>, vector<80x128xf32> -> vector<80x128xf32>
    %182 = arith.addf %177, %181 : vector<80x128xf32>
    %c2_150 = arith.constant 2 : index
    %c0_151 = arith.constant 0 : index
    %183 = vector.load %arg17[%c2_150, %c0_151] : memref<104x128xf32, #tpu.memory_space<vmem>>, vector<80x128xf32>
    %c2_152 = arith.constant 2 : index
    %c0_153 = arith.constant 0 : index
    %c0_154 = arith.constant 0 : index
    %184 = vector.load %arg11[%c2_152, %c0_153, %c0_154] : memref<9x128x128xf32, #tpu.memory_space<vmem>>, vector<1x128x128xf32>
    %185 = vector.shape_cast %184 : vector<1x128x128xf32> to vector<128x128xf32>
    %cst_155 = arith.constant dense<0.000000e+00> : vector<80x128xf32>
    %186 = tpu.matmul %183, %185, %cst_155 {dimension_numbers = #tpu.dot_dimension_numbers<[1], [0], [0], [1], [0, 0, 1, 1], [], []>} : vector<80x128xf32>, vector<128x128xf32>, vector<80x128xf32> -> vector<80x128xf32>
    %187 = arith.addf %182, %186 : vector<80x128xf32>
    %c10_156 = arith.constant 10 : index
    %c0_157 = arith.constant 0 : index
    %188 = vector.load %arg17[%c10_156, %c0_157] : memref<104x128xf32, #tpu.memory_space<vmem>>, vector<80x128xf32>
    %c3_158 = arith.constant 3 : index
    %c0_159 = arith.constant 0 : index
    %c0_160 = arith.constant 0 : index
    %189 = vector.load %arg11[%c3_158, %c0_159, %c0_160] : memref<9x128x128xf32, #tpu.memory_space<vmem>>, vector<1x128x128xf32>
    %190 = vector.shape_cast %189 : vector<1x128x128xf32> to vector<128x128xf32>
    %cst_161 = arith.constant dense<0.000000e+00> : vector<80x128xf32>
    %191 = tpu.matmul %188, %190, %cst_161 {dimension_numbers = #tpu.dot_dimension_numbers<[1], [0], [0], [1], [0, 0, 1, 1], [], []>} : vector<80x128xf32>, vector<128x128xf32>, vector<80x128xf32> -> vector<80x128xf32>
    %192 = arith.addf %187, %191 : vector<80x128xf32>
    %c11_162 = arith.constant 11 : index
    %c0_163 = arith.constant 0 : index
    %193 = vector.load %arg17[%c11_162, %c0_163] : memref<104x128xf32, #tpu.memory_space<vmem>>, vector<80x128xf32>
    %c4_164 = arith.constant 4 : index
    %c0_165 = arith.constant 0 : index
    %c0_166 = arith.constant 0 : index
    %194 = vector.load %arg11[%c4_164, %c0_165, %c0_166] : memref<9x128x128xf32, #tpu.memory_space<vmem>>, vector<1x128x128xf32>
    %195 = vector.shape_cast %194 : vector<1x128x128xf32> to vector<128x128xf32>
    %cst_167 = arith.constant dense<0.000000e+00> : vector<80x128xf32>
    %196 = tpu.matmul %193, %195, %cst_167 {dimension_numbers = #tpu.dot_dimension_numbers<[1], [0], [0], [1], [0, 0, 1, 1], [], []>} : vector<80x128xf32>, vector<128x128xf32>, vector<80x128xf32> -> vector<80x128xf32>
    %197 = arith.addf %192, %196 : vector<80x128xf32>
    %c12_168 = arith.constant 12 : index
    %c0_169 = arith.constant 0 : index
    %198 = vector.load %arg17[%c12_168, %c0_169] : memref<104x128xf32, #tpu.memory_space<vmem>>, vector<80x128xf32>
    %c5_170 = arith.constant 5 : index
    %c0_171 = arith.constant 0 : index
    %c0_172 = arith.constant 0 : index
    %199 = vector.load %arg11[%c5_170, %c0_171, %c0_172] : memref<9x128x128xf32, #tpu.memory_space<vmem>>, vector<1x128x128xf32>
    %200 = vector.shape_cast %199 : vector<1x128x128xf32> to vector<128x128xf32>
    %cst_173 = arith.constant dense<0.000000e+00> : vector<80x128xf32>
    %201 = tpu.matmul %198, %200, %cst_173 {dimension_numbers = #tpu.dot_dimension_numbers<[1], [0], [0], [1], [0, 0, 1, 1], [], []>} : vector<80x128xf32>, vector<128x128xf32>, vector<80x128xf32> -> vector<80x128xf32>
    %202 = arith.addf %197, %201 : vector<80x128xf32>
    %c20_174 = arith.constant 20 : index
    %c0_175 = arith.constant 0 : index
    %203 = vector.load %arg17[%c20_174, %c0_175] : memref<104x128xf32, #tpu.memory_space<vmem>>, vector<80x128xf32>
    %c6_176 = arith.constant 6 : index
    %c0_177 = arith.constant 0 : index
    %c0_178 = arith.constant 0 : index
    %204 = vector.load %arg11[%c6_176, %c0_177, %c0_178] : memref<9x128x128xf32, #tpu.memory_space<vmem>>, vector<1x128x128xf32>
    %205 = vector.shape_cast %204 : vector<1x128x128xf32> to vector<128x128xf32>
    %cst_179 = arith.constant dense<0.000000e+00> : vector<80x128xf32>
    %206 = tpu.matmul %203, %205, %cst_179 {dimension_numbers = #tpu.dot_dimension_numbers<[1], [0], [0], [1], [0, 0, 1, 1], [], []>} : vector<80x128xf32>, vector<128x128xf32>, vector<80x128xf32> -> vector<80x128xf32>
    %207 = arith.addf %202, %206 : vector<80x128xf32>
    %c21_180 = arith.constant 21 : index
    %c0_181 = arith.constant 0 : index
    %208 = vector.load %arg17[%c21_180, %c0_181] : memref<104x128xf32, #tpu.memory_space<vmem>>, vector<80x128xf32>
    %c7_182 = arith.constant 7 : index
    %c0_183 = arith.constant 0 : index
    %c0_184 = arith.constant 0 : index
    %209 = vector.load %arg11[%c7_182, %c0_183, %c0_184] : memref<9x128x128xf32, #tpu.memory_space<vmem>>, vector<1x128x128xf32>
    %210 = vector.shape_cast %209 : vector<1x128x128xf32> to vector<128x128xf32>
    %cst_185 = arith.constant dense<0.000000e+00> : vector<80x128xf32>
    %211 = tpu.matmul %208, %210, %cst_185 {dimension_numbers = #tpu.dot_dimension_numbers<[1], [0], [0], [1], [0, 0, 1, 1], [], []>} : vector<80x128xf32>, vector<128x128xf32>, vector<80x128xf32> -> vector<80x128xf32>
    %212 = arith.addf %207, %211 : vector<80x128xf32>
    %c22_186 = arith.constant 22 : index
    %c0_187 = arith.constant 0 : index
    %213 = vector.load %arg17[%c22_186, %c0_187] : memref<104x128xf32, #tpu.memory_space<vmem>>, vector<80x128xf32>
    %c8_188 = arith.constant 8 : index
    %c0_189 = arith.constant 0 : index
    %c0_190 = arith.constant 0 : index
    %214 = vector.load %arg11[%c8_188, %c0_189, %c0_190] : memref<9x128x128xf32, #tpu.memory_space<vmem>>, vector<1x128x128xf32>
    %215 = vector.shape_cast %214 : vector<1x128x128xf32> to vector<128x128xf32>
    %cst_191 = arith.constant dense<0.000000e+00> : vector<80x128xf32>
    %216 = tpu.matmul %213, %215, %cst_191 {dimension_numbers = #tpu.dot_dimension_numbers<[1], [0], [0], [1], [0, 0, 1, 1], [], []>} : vector<80x128xf32>, vector<128x128xf32>, vector<80x128xf32> -> vector<80x128xf32>
    %217 = arith.addf %212, %216 : vector<80x128xf32>
    %c0_192 = arith.constant 0 : index
    %c0_193 = arith.constant 0 : index
    %218 = vector.load %arg12[%c0_192, %c0_193] : memref<1x128xf32, #tpu.memory_space<vmem>>, vector<1x128xf32>
    %219 = vector.broadcast %218 : vector<1x128xf32> to vector<80x128xf32>
    %220 = arith.addf %217, %219 : vector<80x128xf32>
    %221 = vector.broadcast %0 : vector<80x1xf32> to vector<80x128xf32>
    %222 = arith.mulf %220, %221 : vector<80x128xf32>
    %223 = vector.shape_cast %222 : vector<80x128xf32> to vector<1x80x128xf32>
    %cst_194 = arith.constant dense<0.000000e+00> : vector<1xf32>
    %224 = vector.multi_reduction <add>, %223, %cst_194 [1, 2] : vector<1x80x128xf32> to vector<1xf32>
    %225 = vector.shape_cast %224 : vector<1xf32> to vector<1x1x1xf32>
    %226 = vector.extract %225[0, 0, 0] : f32 from vector<1x1x1xf32>
    %cst_195 = arith.constant 5.120000e+02 : f32
    %227 = arith.divf %226, %cst_195 : f32
    %228 = arith.mulf %222, %222 : vector<80x128xf32>
    %229 = vector.shape_cast %228 : vector<80x128xf32> to vector<1x80x128xf32>
    %cst_196 = arith.constant dense<0.000000e+00> : vector<1xf32>
    %230 = vector.multi_reduction <add>, %229, %cst_196 [1, 2] : vector<1x80x128xf32> to vector<1xf32>
    %231 = vector.shape_cast %230 : vector<1xf32> to vector<1x1x1xf32>
    %232 = vector.extract %231[0, 0, 0] : f32 from vector<1x1x1xf32>
    %cst_197 = arith.constant 5.120000e+02 : f32
    %233 = arith.divf %232, %cst_197 : f32
    %234 = arith.mulf %227, %227 : f32
    %235 = arith.subf %233, %234 : f32
    %cst_198 = arith.constant 0.000000e+00 : f32
    %236 = arith.maximumf %235, %cst_198 : f32
    %c0_199 = arith.constant 0 : index
    %c0_200 = arith.constant 0 : index
    %237 = vector.load %arg13[%c0_199, %c0_200] : memref<1x128xf32, #tpu.memory_space<vmem>>, vector<1x128xf32>
    %cst_201 = arith.constant 9.99999974E-6 : f32
    %238 = arith.addf %236, %cst_201 : f32
    %239 = math.rsqrt %238 : f32
    %240 = vector.broadcast %239 : f32 to vector<1x128xf32>
    %241 = arith.mulf %237, %240 : vector<1x128xf32>
    %c0_202 = arith.constant 0 : index
    %c0_203 = arith.constant 0 : index
    %242 = vector.load %arg14[%c0_202, %c0_203] : memref<1x128xf32, #tpu.memory_space<vmem>>, vector<1x128xf32>
    %243 = vector.broadcast %227 : f32 to vector<1x128xf32>
    %244 = arith.mulf %243, %241 : vector<1x128xf32>
    %245 = arith.subf %242, %244 : vector<1x128xf32>
    %246 = vector.broadcast %241 : vector<1x128xf32> to vector<80x128xf32>
    %247 = arith.mulf %220, %246 : vector<80x128xf32>
    %248 = vector.broadcast %245 : vector<1x128xf32> to vector<80x128xf32>
    %249 = arith.addf %247, %248 : vector<80x128xf32>
    %cst_204 = arith.constant 0.000000e+00 : f32
    %250 = vector.broadcast %cst_204 : f32 to vector<80x128xf32>
    %251 = arith.maximumf %249, %250 : vector<80x128xf32>
    %252 = vector.broadcast %0 : vector<80x1xf32> to vector<80x128xf32>
    %253 = arith.mulf %251, %252 : vector<80x128xf32>
    %c0_205 = arith.constant 0 : index
    %c0_206 = arith.constant 0 : index
    %c0_207 = arith.constant 0 : index
    %254 = vector.load %arg15[%c0_205, %c0_206, %c0_207] : memref<1x80x128xf32, #tpu.memory_space<vmem>>, vector<1x80x128xf32>
    %255 = vector.shape_cast %254 : vector<1x80x128xf32> to vector<80x128xf32>
    %256 = vector.shape_cast %253 : vector<80x128xf32> to vector<1x80x128xf32>
    tpu.vector_store %arg15[%c0_205, %c0_206, %c0_207], %256 {strides = array<i32>} : memref<1x80x128xf32, #tpu.memory_space<vmem>>, vector<1x80x128xf32>,
    return
  }
  func.func @transform_0(%arg0: i32) -> (i32, i32, i32) {
    %c0_i32 = arith.constant 0 : i32
    %c0_i32_0 = arith.constant 0 : i32
    %c0_i32_1 = arith.constant 0 : i32
    return %arg0, %c0_i32, %c0_i32_0 : i32, i32, i32
  }
  func.func @transform_1(%arg0: i32) -> (i32, i32) {
    %c0_i32 = arith.constant 0 : i32
    %c0_i32_0 = arith.constant 0 : i32
    %c0_i32_1 = arith.constant 0 : i32
    return %c0_i32, %c0_i32_0 : i32, i32
  }
  func.func @transform_2(%arg0: i32) -> (i32, i32, i32) {
    %c0_i32 = arith.constant 0 : i32
    %c0_i32_0 = arith.constant 0 : i32
    %c0_i32_1 = arith.constant 0 : i32
    %c0_i32_2 = arith.constant 0 : i32
    return %c0_i32, %c0_i32_0, %c0_i32_1 : i32, i32, i32
  }
  func.func @transform_3(%arg0: i32) -> (i32, i32) {
    %c0_i32 = arith.constant 0 : i32
    %c0_i32_0 = arith.constant 0 : i32
    %c0_i32_1 = arith.constant 0 : i32
    return %c0_i32, %c0_i32_0 : i32, i32
  }
  func.func @transform_4(%arg0: i32) -> (i32, i32) {
    %c0_i32 = arith.constant 0 : i32
    %c0_i32_0 = arith.constant 0 : i32
    %c0_i32_1 = arith.constant 0 : i32
    return %c0_i32, %c0_i32_0 : i32, i32
  }
  func.func @transform_5(%arg0: i32) -> (i32, i32) {
    %c0_i32 = arith.constant 0 : i32
    %c0_i32_0 = arith.constant 0 : i32
    %c0_i32_1 = arith.constant 0 : i32
    return %c0_i32, %c0_i32_0 : i32, i32
  }
  func.func @transform_6(%arg0: i32) -> (i32, i32, i32) {
    %c0_i32 = arith.constant 0 : i32
    %c0_i32_0 = arith.constant 0 : i32
    %c0_i32_1 = arith.constant 0 : i32
    %c0_i32_2 = arith.constant 0 : i32
    return %c0_i32, %c0_i32_0, %c0_i32_1 : i32, i32, i32
  }
  func.func @transform_7(%arg0: i32) -> (i32, i32) {
    %c0_i32 = arith.constant 0 : i32
    %c0_i32_0 = arith.constant 0 : i32
    %c0_i32_1 = arith.constant 0 : i32
    return %c0_i32, %c0_i32_0 : i32, i32
  }
  func.func @transform_8(%arg0: i32) -> (i32, i32) {
    %c0_i32 = arith.constant 0 : i32
    %c0_i32_0 = arith.constant 0 : i32
    %c0_i32_1 = arith.constant 0 : i32
    return %c0_i32, %c0_i32_0 : i32, i32
  }
  func.func @transform_9(%arg0: i32) -> (i32, i32) {
    %c0_i32 = arith.constant 0 : i32
    %c0_i32_0 = arith.constant 0 : i32
    %c0_i32_1 = arith.constant 0 : i32
    return %c0_i32, %c0_i32_0 : i32, i32
  }
  func.func @transform_10(%arg0: i32) -> (i32, i32, i32) {
    %c0_i32 = arith.constant 0 : i32
    %c0_i32_0 = arith.constant 0 : i32
    %c0_i32_1 = arith.constant 0 : i32
    %c0_i32_2 = arith.constant 0 : i32
    return %c0_i32, %c0_i32_0, %c0_i32_1 : i32, i32, i32
  }
  func.func @transform_11(%arg0: i32) -> (i32, i32) {
    %c0_i32 = arith.constant 0 : i32
    %c0_i32_0 = arith.constant 0 : i32
    %c0_i32_1 = arith.constant 0 : i32
    return %c0_i32, %c0_i32_0 : i32, i32
  }
  func.func @transform_12(%arg0: i32) -> (i32, i32) {
    %c0_i32 = arith.constant 0 : i32
    %c0_i32_0 = arith.constant 0 : i32
    %c0_i32_1 = arith.constant 0 : i32
    return %c0_i32, %c0_i32_0 : i32, i32
  }
  func.func @transform_13(%arg0: i32) -> (i32, i32) {
    %c0_i32 = arith.constant 0 : i32
    %c0_i32_0 = arith.constant 0 : i32
    %c0_i32_1 = arith.constant 0 : i32
    return %c0_i32, %c0_i32_0 : i32, i32
  }
  func.func @transform_14(%arg0: i32) -> (i32, i32, i32) {
    %c0_i32 = arith.constant 0 : i32
    %c0_i32_0 = arith.constant 0 : i32
    %c0_i32_1 = arith.constant 0 : i32
    return %arg0, %c0_i32, %c0_i32_0 : i32, i32, i32
  }
}

</mosaic_0001>

<llo_original>
// kernel: tpu_custom_call.1
$region0: #{tpu_custom_call.1}
  #allocation0 [shape = 'u32[]', space=smem, size = 0x4, offset = 0x4, fixed_abs, tag = 'smem constant byte address 0x4 - core index']
  #allocation1 [shape = 'u32[144,128]{1,0:T(1,128)}', space=vmem, size = 0x12000, scoped, tag = 'internal scratch']
  #allocation2 [shape = 'f32[104,128]{1,0:T(8,128)}', space=vmem, size = 0xd000, scoped, tag = 'scratch operand']
  #allocation3 [shape = 'f32[104,128]{1,0:T(8,128)}', space=vmem, size = 0xd000, scoped, tag = 'scratch operand']
  %s0 = inlined_call_operand.vmem [shape: f32[2,104,8], index: 0, kind: input, shape index: {}]
  %s1 = inlined_call_operand.vmem [shape: f32[80,1], index: 1, kind: input, shape index: {}]
  %s2 = inlined_call_operand.vmem [shape: f32[9,8,128], index: 2, kind: input, shape index: {}]
  %s3 = inlined_call_operand.vmem [shape: f32[1,128], index: 3, kind: input, shape index: {}]
  %s4 = inlined_call_operand.vmem [shape: f32[1,128], index: 4, kind: input, shape index: {}]
  %s5 = inlined_call_operand.vmem [shape: f32[1,128], index: 5, kind: input, shape index: {}]
  %s6 = inlined_call_operand.hbm [shape: f32[9,128,128], index: 6, kind: input, shape index: {}]
  %s7 = inlined_call_operand.vmem [shape: f32[1,128], index: 7, kind: input, shape index: {}]
  %s8 = inlined_call_operand.vmem [shape: f32[1,128], index: 8, kind: input, shape index: {}]
  %s9 = inlined_call_operand.vmem [shape: f32[1,128], index: 9, kind: input, shape index: {}]
  %s10 = inlined_call_operand.hbm [shape: f32[9,128,128], index: 10, kind: input, shape index: {}]
  %s11 = inlined_call_operand.vmem [shape: f32[1,128], index: 11, kind: input, shape index: {}]
  %s12 = inlined_call_operand.vmem [shape: f32[1,128], index: 12, kind: input, shape index: {}]
  %s13 = inlined_call_operand.vmem [shape: f32[1,128], index: 13, kind: input, shape index: {}]
  %s14 = inlined_call_operand.hbm [shape: f32[2,80,128], index: 14, kind: output, shape index: {}]
  %s15 = sld [smem:[#allocation0]]
  $region97: #{tpu_custom_call.1} parent=0
    _
  %s17 = ssub.s32 1, %s15
  %s18 = scalar_select 0, %s17, %s15
  $region1: #{tpu_custom_call.1} parent=0
    #allocation4 [shape = 'u8[589824]{0}', space=vmem, size = 0x90000, scoped, tag = 'input window, operand 6, single buffered']
    #allocation5 [shape = 's32[2]{0}', space=sflag, size = 0x8, scoped, tag = 'scoped memory for tpu_custom_call.1']
    #allocation6 [shape = 's32[2]{0}', space=sflag, size = 0x8, scoped, tag = 'scoped memory for tpu_custom_call.1']
    #allocation7 [shape = 'u8[589824]{0}', space=vmem, size = 0x90000, scoped, tag = 'input window, operand 10, single buffered']
    #allocation8 [shape = 's32[1]{0}', space=sflag, size = 0x4, scoped, tag = 'scoped memory for tpu_custom_call.1']
    #allocation9 [shape = 'u8[81920]{0}', space=vmem, size = 0x14000, scoped, tag = 'output window, operand 0']
    %19 = vsyncpa [#allocation5], 0
    %20 = vsyncpa [#allocation8], 0
    %21 = vsyncpa [#allocation6], 0
    %s22 = scalar_lea.sflag [#allocation6], 1
    %23 = vsyncpa %s22, 0
    loop: start=0, step=1, limit=4
    $region2: #{tpu_custom_call.1} parent=1 // loop_pre_header
      _
    $region3: #{tpu_custom_call.1} parent=1 // loop_header
      %s25 = sphi 0, %s29
      %p26 = scmp.ge.s32.totalorder %s25, 4
      %s35 = sphi 0, %s37
      %s38 = sphi 0, %s35
      %s39 = sphi 0, %s38
      %s55 = sphi 0, %s39
      %s59 = sphi 0, %s59
      %s61 = sphi 0, %s59
      %s62 = sphi 0, %s61
      %s76 = sphi 0, %s62
      %s80 = sphi 0, %s80
      %s82 = sphi 0, %s80
      %s83 = sphi 0, %s82
      %s97 = sphi 0, %s83
      %s101 = sphi 0, %s101
      %s103 = sphi 0, %s101
      %s104 = sphi 0, %s103
      %s118 = sphi 0, %s104
      %s122 = sphi 0, %s122
      %s124 = sphi 0, %s122
      %s125 = sphi 0, %s124
      %s139 = sphi 0, %s125
      %s143 = sphi 0, %s143
      %s145 = sphi 0, %s143
      %s146 = sphi 0, %s145
      %s160 = sphi 0, %s146
      %s164 = sphi 0, %s164
      %s166 = sphi 0, %s164
      %s167 = sphi 0, %s166
      %s181 = sphi 0, %s167
      %s185 = sphi 0, %s185
      %s187 = sphi 0, %s185
      %s188 = sphi 0, %s187
      %s202 = sphi 0, %s188
      %s206 = sphi 0, %s206
      %s208 = sphi 0, %s206
      %s209 = sphi 0, %s208
      %s223 = sphi 0, %s209
      %s227 = sphi 0, %s227
      %s229 = sphi 0, %s227
      %s230 = sphi 0, %s229
      %s244 = sphi 0, %s230
      %s248 = sphi 0, %s248
      %s250 = sphi 0, %s248
      %s251 = sphi 0, %s250
      %s265 = sphi 0, %s251
      %s269 = sphi 0, %s269
      %s271 = sphi 0, %s269
      %s272 = sphi 0, %s271
      %s286 = sphi 0, %s272
      %s290 = sphi 0, %s290
      %s292 = sphi 0, %s290
      %s293 = sphi 0, %s292
      %s307 = sphi 0, %s293
      %s311 = sphi 0, %s311
      %s313 = sphi 0, %s311
      %s314 = sphi 0, %s313
      %s328 = sphi 0, %s314
      %s334 = sphi 0, %s336
      %s337 = sphi 0, %s334
      %s338 = sphi 0, %s337
      %s354 = sphi 0, %s338
    $region4: #{tpu_custom_call.1} parent=1 // loop_header_branch
      %28 = sbr.rel (%p26) target = $region8
    $region5: #{tpu_custom_call.1} parent=1 // loop_body
      %s30 = ssub.s32 %s25, 1
      %s31 = ssub.s32 %s25, 2
      %s32 = sadd.s32 %s25, 1
      %s33 = ssub.s32 %s25, %s32
      %p34 = scmp.eq.s32.totalorder %s33, 0
      %s36 = sadd.s32 %s35, 1
      %s37 = scalar_select %p34, %s35, %s36
      %p40 = pneg %p34
      %p41 = scmp.eq.s32.totalorder %s25, 1
      %p42 = por %p40, %p41
      %p43 = scmp.ne.s32.totalorder %s35, %s38
      %p44 = scmp.eq.s32.totalorder %s25, 0
      %p45 = por %p43, %p44
      %p46 = scmp.ne.s32.totalorder %s35, %s38
      %p47 = scmp.eq.s32.totalorder %s30, 1
      %p48 = por %p46, %p47
      %p49 = scmp.ne.s32.totalorder %s38, %s39
      %p50 = scmp.eq.s32.totalorder %s30, 0
      %p51 = por %p49, %p50
      %p52 = scmp.ne.s32.totalorder %s38, %s39
      %p53 = scmp.eq.s32.totalorder %s31, 1
      %p54 = por %p52, %p53
      %p56 = scmp.ne.s32.totalorder %s39, %s55
      %p57 = scmp.eq.s32.totalorder %s31, 0
      %p58 = por %p56, %p57
      %s60 = sadd.s32 %s59, 1
      %p63 = scmp.eq.s32.totalorder %s25, 1
      %p64 = scmp.ne.s32.totalorder %s59, %s61
      %p65 = scmp.eq.s32.totalorder %s25, 0
      %p66 = por %p64, %p65
      %p67 = scmp.ne.s32.totalorder %s59, %s61
      %p68 = scmp.eq.s32.totalorder %s30, 1
      %p69 = por %p67, %p68
      %p70 = scmp.ne.s32.totalorder %s61, %s62
      %p71 = scmp.eq.s32.totalorder %s30, 0
      %p72 = por %p70, %p71
      %p73 = scmp.ne.s32.totalorder %s61, %s62
      %p74 = scmp.eq.s32.totalorder %s31, 1
      %p75 = por %p73, %p74
      %p77 = scmp.ne.s32.totalorder %s62, %s76
      %p78 = scmp.eq.s32.totalorder %s31, 0
      %p79 = por %p77, %p78
      %s81 = sadd.s32 %s80, 1
      %p84 = scmp.eq.s32.totalorder %s25, 1
      %p85 = scmp.ne.s32.totalorder %s80, %s82
      %p86 = scmp.eq.s32.totalorder %s25, 0
      %p87 = por %p85, %p86
      %p88 = scmp.ne.s32.totalorder %s80, %s82
      %p89 = scmp.eq.s32.totalorder %s30, 1
      %p90 = por %p88, %p89
      %p91 = scmp.ne.s32.totalorder %s82, %s83
      %p92 = scmp.eq.s32.totalorder %s30, 0
      %p93 = por %p91, %p92
      %p94 = scmp.ne.s32.totalorder %s82, %s83
      %p95 = scmp.eq.s32.totalorder %s31, 1
      %p96 = por %p94, %p95
      %p98 = scmp.ne.s32.totalorder %s83, %s97
      %p99 = scmp.eq.s32.totalorder %s31, 0
      %p100 = por %p98, %p99
      %s102 = sadd.s32 %s101, 1
      %p105 = scmp.eq.s32.totalorder %s25, 1
      %p106 = scmp.ne.s32.totalorder %s101, %s103
      %p107 = scmp.eq.s32.totalorder %s25, 0
      %p108 = por %p106, %p107
      %p109 = scmp.ne.s32.totalorder %s101, %s103
      %p110 = scmp.eq.s32.totalorder %s30, 1
      %p111 = por %p109, %p110
      %p112 = scmp.ne.s32.totalorder %s103, %s104
      %p113 = scmp.eq.s32.totalorder %s30, 0
      %p114 = por %p112, %p113
      %p115 = scmp.ne.s32.totalorder %s103, %s104
      %p116 = scmp.eq.s32.totalorder %s31, 1
      %p117 = por %p115, %p116
      %p119 = scmp.ne.s32.totalorder %s104, %s118
      %p120 = scmp.eq.s32.totalorder %s31, 0
      %p121 = por %p119, %p120
      %s123 = sadd.s32 %s122, 1
      %p126 = scmp.eq.s32.totalorder %s25, 1
      %p127 = scmp.ne.s32.totalorder %s122, %s124
      %p128 = scmp.eq.s32.totalorder %s25, 0
      %p129 = por %p127, %p128
      %p130 = scmp.ne.s32.totalorder %s122, %s124
      %p131 = scmp.eq.s32.totalorder %s30, 1
      %p132 = por %p130, %p131
      %p133 = scmp.ne.s32.totalorder %s124, %s125
      %p134 = scmp.eq.s32.totalorder %s30, 0
      %p135 = por %p133, %p134
      %p136 = scmp.ne.s32.totalorder %s124, %s125
      %p137 = scmp.eq.s32.totalorder %s31, 1
      %p138 = por %p136, %p137
      %p140 = scmp.ne.s32.totalorder %s125, %s139
      %p141 = scmp.eq.s32.totalorder %s31, 0
      %p142 = por %p140, %p141
      %s144 = sadd.s32 %s143, 1
      %p147 = scmp.eq.s32.totalorder %s25, 1
      %p148 = scmp.ne.s32.totalorder %s143, %s145
      %p149 = scmp.eq.s32.totalorder %s25, 0
      %p150 = por %p148, %p149
      %p151 = scmp.ne.s32.totalorder %s143, %s145
      %p152 = scmp.eq.s32.totalorder %s30, 1
      %p153 = por %p151, %p152
      %p154 = scmp.ne.s32.totalorder %s145, %s146
      %p155 = scmp.eq.s32.totalorder %s30, 0
      %p156 = por %p154, %p155
      %p157 = scmp.ne.s32.totalorder %s145, %s146
      %p158 = scmp.eq.s32.totalorder %s31, 1
      %p159 = por %p157, %p158
      %p161 = scmp.ne.s32.totalorder %s146, %s160
      %p162 = scmp.eq.s32.totalorder %s31, 0
      %p163 = por %p161, %p162
      %s165 = sadd.s32 %s164, 1
      %p168 = scmp.eq.s32.totalorder %s25, 1
      %p169 = scmp.ne.s32.totalorder %s164, %s166
      %p170 = scmp.eq.s32.totalorder %s25, 0
      %p171 = por %p169, %p170
      %p172 = scmp.ne.s32.totalorder %s164, %s166
      %p173 = scmp.eq.s32.totalorder %s30, 1
      %p174 = por %p172, %p173
      %p175 = scmp.ne.s32.totalorder %s166, %s167
      %p176 = scmp.eq.s32.totalorder %s30, 0
      %p177 = por %p175, %p176
      %p178 = scmp.ne.s32.totalorder %s166, %s167
      %p179 = scmp.eq.s32.totalorder %s31, 1
      %p180 = por %p178, %p179
      %p182 = scmp.ne.s32.totalorder %s167, %s181
      %p183 = scmp.eq.s32.totalorder %s31, 0
      %p184 = por %p182, %p183
      %s186 = sadd.s32 %s185, 1
      %p189 = scmp.eq.s32.totalorder %s25, 1
      %p190 = scmp.ne.s32.totalorder %s185, %s187
      %p191 = scmp.eq.s32.totalorder %s25, 0
      %p192 = por %p190, %p191
      %p193 = scmp.ne.s32.totalorder %s185, %s187
      %p194 = scmp.eq.s32.totalorder %s30, 1
      %p195 = por %p193, %p194
      %p196 = scmp.ne.s32.totalorder %s187, %s188
      %p197 = scmp.eq.s32.totalorder %s30, 0
      %p198 = por %p196, %p197
      %p199 = scmp.ne.s32.totalorder %s187, %s188
      %p200 = scmp.eq.s32.totalorder %s31, 1
      %p201 = por %p199, %p200
      %p203 = scmp.ne.s32.totalorder %s188, %s202
      %p204 = scmp.eq.s32.totalorder %s31, 0
      %p205 = por %p203, %p204
      %s207 = sadd.s32 %s206, 1
      %p210 = scmp.eq.s32.totalorder %s25, 1
      %p211 = scmp.ne.s32.totalorder %s206, %s208
      %p212 = scmp.eq.s32.totalorder %s25, 0
      %p213 = por %p211, %p212
      %p214 = scmp.ne.s32.totalorder %s206, %s208
      %p215 = scmp.eq.s32.totalorder %s30, 1
      %p216 = por %p214, %p215
      %p217 = scmp.ne.s32.totalorder %s208, %s209
      %p218 = scmp.eq.s32.totalorder %s30, 0
      %p219 = por %p217, %p218
      %p220 = scmp.ne.s32.totalorder %s208, %s209
      %p221 = scmp.eq.s32.totalorder %s31, 1
      %p222 = por %p220, %p221
      %p224 = scmp.ne.s32.totalorder %s209, %s223
      %p225 = scmp.eq.s32.totalorder %s31, 0
      %p226 = por %p224, %p225
      %s228 = sadd.s32 %s227, 1
      %p231 = scmp.eq.s32.totalorder %s25, 1
      %p232 = scmp.ne.s32.totalorder %s227, %s229
      %p233 = scmp.eq.s32.totalorder %s25, 0
      %p234 = por %p232, %p233
      %p235 = scmp.ne.s32.totalorder %s227, %s229
      %p236 = scmp.eq.s32.totalorder %s30, 1
      %p237 = por %p235, %p236
      %p238 = scmp.ne.s32.totalorder %s229, %s230
      %p239 = scmp.eq.s32.totalorder %s30, 0
      %p240 = por %p238, %p239
      %p241 = scmp.ne.s32.totalorder %s229, %s230
      %p242 = scmp.eq.s32.totalorder %s31, 1
      %p243 = por %p241, %p242
      %p245 = scmp.ne.s32.totalorder %s230, %s244
      %p246 = scmp.eq.s32.totalorder %s31, 0
      %p247 = por %p245, %p246
      %s249 = sadd.s32 %s248, 1
      %p252 = scmp.eq.s32.totalorder %s25, 1
      %p253 = scmp.ne.s32.totalorder %s248, %s250
      %p254 = scmp.eq.s32.totalorder %s25, 0
      %p255 = por %p253, %p254
      %p256 = scmp.ne.s32.totalorder %s248, %s250
      %p257 = scmp.eq.s32.totalorder %s30, 1
      %p258 = por %p256, %p257
      %p259 = scmp.ne.s32.totalorder %s250, %s251
      %p260 = scmp.eq.s32.totalorder %s30, 0
      %p261 = por %p259, %p260
      %p262 = scmp.ne.s32.totalorder %s250, %s251
      %p263 = scmp.eq.s32.totalorder %s31, 1
      %p264 = por %p262, %p263
      %p266 = scmp.ne.s32.totalorder %s251, %s265
      %p267 = scmp.eq.s32.totalorder %s31, 0
      %p268 = por %p266, %p267
      %s270 = sadd.s32 %s269, 1
      %p273 = scmp.eq.s32.totalorder %s25, 1
      %p274 = scmp.ne.s32.totalorder %s269, %s271
      %p275 = scmp.eq.s32.totalorder %s25, 0
      %p276 = por %p274, %p275
      %p277 = scmp.ne.s32.totalorder %s269, %s271
      %p278 = scmp.eq.s32.totalorder %s30, 1
      %p279 = por %p277, %p278
      %p280 = scmp.ne.s32.totalorder %s271, %s272
      %p281 = scmp.eq.s32.totalorder %s30, 0
      %p282 = por %p280, %p281
      %p283 = scmp.ne.s32.totalorder %s271, %s272
      %p284 = scmp.eq.s32.totalorder %s31, 1
      %p285 = por %p283, %p284
      %p287 = scmp.ne.s32.totalorder %s272, %s286
      %p288 = scmp.eq.s32.totalorder %s31, 0
      %p289 = por %p287, %p288
      %s291 = sadd.s32 %s290, 1
      %p294 = scmp.eq.s32.totalorder %s25, 1
      %p295 = scmp.ne.s32.totalorder %s290, %s292
      %p296 = scmp.eq.s32.totalorder %s25, 0
      %p297 = por %p295, %p296
      %p298 = scmp.ne.s32.totalorder %s290, %s292
      %p299 = scmp.eq.s32.totalorder %s30, 1
      %p300 = por %p298, %p299
      %p301 = scmp.ne.s32.totalorder %s292, %s293
      %p302 = scmp.eq.s32.totalorder %s30, 0
      %p303 = por %p301, %p302
      %p304 = scmp.ne.s32.totalorder %s292, %s293
      %p305 = scmp.eq.s32.totalorder %s31, 1
      %p306 = por %p304, %p305
      %p308 = scmp.ne.s32.totalorder %s293, %s307
      %p309 = scmp.eq.s32.totalorder %s31, 0
      %p310 = por %p308, %p309
      %s312 = sadd.s32 %s311, 1
      %p315 = scmp.eq.s32.totalorder %s25, 1
      %p316 = scmp.ne.s32.totalorder %s311, %s313
      %p317 = scmp.eq.s32.totalorder %s25, 0
      %p318 = por %p316, %p317
      %p319 = scmp.ne.s32.totalorder %s311, %s313
      %p320 = scmp.eq.s32.totalorder %s30, 1
      %p321 = por %p319, %p320
      %p322 = scmp.ne.s32.totalorder %s313, %s314
      %p323 = scmp.eq.s32.totalorder %s30, 0
      %p324 = por %p322, %p323
      %p325 = scmp.ne.s32.totalorder %s313, %s314
      %p326 = scmp.eq.s32.totalorder %s31, 1
      %p327 = por %p325, %p326
      %p329 = scmp.ne.s32.totalorder %s314, %s328
      %p330 = scmp.eq.s32.totalorder %s31, 0
      %p331 = por %p329, %p330
      %s332 = ssub.s32 %s25, %s32
      %p333 = scmp.eq.s32.totalorder %s332, 0
      %s335 = sadd.s32 %s334, 1
      %s336 = scalar_select %p333, %s334, %s335
      %p339 = pneg %p333
      %p340 = scmp.eq.s32.totalorder %s25, 1
      %p341 = por %p339, %p340
      %p342 = scmp.ne.s32.totalorder %s334, %s337
      %p343 = scmp.eq.s32.totalorder %s25, 0
      %p344 = por %p342, %p343
      %p345 = scmp.ne.s32.totalorder %s334, %s337
      %p346 = scmp.eq.s32.totalorder %s30, 1
      %p347 = por %p345, %p346
      %p348 = scmp.ne.s32.totalorder %s337, %s338
      %p349 = scmp.eq.s32.totalorder %s30, 0
      %p350 = por %p348, %p349
      %p351 = scmp.ne.s32.totalorder %s337, %s338
      %p352 = scmp.eq.s32.totalorder %s31, 1
      %p353 = por %p351, %p352
      %p355 = scmp.ne.s32.totalorder %s338, %s354
      %p356 = scmp.eq.s32.totalorder %s31, 0
      %p357 = por %p355, %p356
      %p358 = scmp.le.s32.totalorder 1, %s25
      %p359 = scmp.lt.s32.totalorder %s25, 3
      %p360 = pnand %p358, %p359
      %p361 = pneg %p360
      // Predicated region
      $region9: #{tpu_custom_call.1} parent=5 // pred_check
        _
      $region10: #{tpu_custom_call.1} parent=5 // pred_check_branch
        %363 = sbr.rel (%p360) target = $region12
      $region11: #{tpu_custom_call.1} parent=5 // pred_region
        %s364 = ssub.s32 %s25, 1
        // Predicated region
        $region13: #{tpu_custom_call.1} parent=11 // pred_check
          %p365 = pneg %p72
        $region14: #{tpu_custom_call.1} parent=11 // pred_check_branch
          %367 = sbr.rel (%p365) target = $region16
        $region15: #{tpu_custom_call.1} parent=11 // pred_region
          _
        $region16: #{tpu_custom_call.1} parent=11 // pred_fallthru
          _
        // Predicated region
        $region17: #{tpu_custom_call.1} parent=11 // pred_check
          %p368 = pneg %p93
        $region18: #{tpu_custom_call.1} parent=11 // pred_check_branch
          %370 = sbr.rel (%p368) target = $region20
        $region19: #{tpu_custom_call.1} parent=11 // pred_region
          _
        $region20: #{tpu_custom_call.1} parent=11 // pred_fallthru
          _
        // Predicated region
        $region21: #{tpu_custom_call.1} parent=11 // pred_check
          %p371 = pneg %p114
        $region22: #{tpu_custom_call.1} parent=11 // pred_check_branch
          %373 = sbr.rel (%p371) target = $region24
        $region23: #{tpu_custom_call.1} parent=11 // pred_region
          _
        $region24: #{tpu_custom_call.1} parent=11 // pred_fallthru
          _
        // Predicated region
        $region25: #{tpu_custom_call.1} parent=11 // pred_check
          %p374 = pneg %p135
        $region26: #{tpu_custom_call.1} parent=11 // pred_check_branch
          %376 = sbr.rel (%p374) target = $region28
        $region27: #{tpu_custom_call.1} parent=11 // pred_region
          _
        $region28: #{tpu_custom_call.1} parent=11 // pred_fallthru
          _
        // Predicated region
        $region29: #{tpu_custom_call.1} parent=11 // pred_check
          %p377 = pneg %p156
        $region30: #{tpu_custom_call.1} parent=11 // pred_check_branch
          %379 = sbr.rel (%p377) target = $region32
        $region31: #{tpu_custom_call.1} parent=11 // pred_region
          _
        $region32: #{tpu_custom_call.1} parent=11 // pred_fallthru
          _
        // Predicated region
        $region33: #{tpu_custom_call.1} parent=11 // pred_check
          %p380 = pneg %p177
        $region34: #{tpu_custom_call.1} parent=11 // pred_check_branch
          %382 = sbr.rel (%p380) target = $region36
        $region35: #{tpu_custom_call.1} parent=11 // pred_region
          %s384 = ssub.s32 18432, 18432
          %385 = vsyncadd [#allocation5], %s384
          %s386 = sshll.u32 [#allocation4], 4
          %s387 = int_to_ptr.vmem [resolvable:$true] %s386
          %392 = dma.hbm_to_vmem [thread:$0]  %s6, 18432, %s387, [#allocation5], 128, 128, 8
        $region36: #{tpu_custom_call.1} parent=11 // pred_fallthru
          _
        // Predicated region
        $region37: #{tpu_custom_call.1} parent=11 // pred_check
          %p393 = pneg %p198
        $region38: #{tpu_custom_call.1} parent=11 // pred_check_branch
          %395 = sbr.rel (%p393) target = $region40
        $region39: #{tpu_custom_call.1} parent=11 // pred_region
          _
        $region40: #{tpu_custom_call.1} parent=11 // pred_fallthru
          _
        // Predicated region
        $region41: #{tpu_custom_call.1} parent=11 // pred_check
          %p396 = pneg %p219
        $region42: #{tpu_custom_call.1} parent=11 // pred_check_branch
          %398 = sbr.rel (%p396) target = $region44
        $region43: #{tpu_custom_call.1} parent=11 // pred_region
          _
        $region44: #{tpu_custom_call.1} parent=11 // pred_fallthru
          _
        // Predicated region
        $region45: #{tpu_custom_call.1} parent=11 // pred_check
          %p399 = pneg %p240
        $region46: #{tpu_custom_call.1} parent=11 // pred_check_branch
          %401 = sbr.rel (%p399) target = $region48
        $region47: #{tpu_custom_call.1} parent=11 // pred_region
          _
        $region48: #{tpu_custom_call.1} parent=11 // pred_fallthru
          _
        // Predicated region
        $region49: #{tpu_custom_call.1} parent=11 // pred_check
          %p402 = pneg %p261
        $region50: #{tpu_custom_call.1} parent=11 // pred_check_branch
          %404 = sbr.rel (%p402) target = $region52
        $region51: #{tpu_custom_call.1} parent=11 // pred_region
          %s406 = ssub.s32 18432, 18432
          %407 = vsyncadd [#allocation8], %s406
          %s408 = sshll.u32 [#allocation7], 4
          %s409 = int_to_ptr.vmem [resolvable:$true] %s408
          %414 = dma.hbm_to_vmem [thread:$0]  %s10, 18432, %s409, [#allocation8], 128, 128, 8
        $region52: #{tpu_custom_call.1} parent=11 // pred_fallthru
          _
        // Predicated region
        $region53: #{tpu_custom_call.1} parent=11 // pred_check
          %p415 = pneg %p282
        $region54: #{tpu_custom_call.1} parent=11 // pred_check_branch
          %417 = sbr.rel (%p415) target = $region56
        $region55: #{tpu_custom_call.1} parent=11 // pred_region
          _
        $region56: #{tpu_custom_call.1} parent=11 // pred_fallthru
          _
        // Predicated region
        $region57: #{tpu_custom_call.1} parent=11 // pred_check
          %p418 = pneg %p303
        $region58: #{tpu_custom_call.1} parent=11 // pred_check_branch
          %420 = sbr.rel (%p418) target = $region60
        $region59: #{tpu_custom_call.1} parent=11 // pred_region
          _
        $region60: #{tpu_custom_call.1} parent=11 // pred_fallthru
          _
        // Predicated region
        $region61: #{tpu_custom_call.1} parent=11 // pred_check
          %p421 = pneg %p324
        $region62: #{tpu_custom_call.1} parent=11 // pred_check_branch
          %423 = sbr.rel (%p421) target = $region64
        $region63: #{tpu_custom_call.1} parent=11 // pred_region
          _
        $region64: #{tpu_custom_call.1} parent=11 // pred_fallthru
          _
      $region12: #{tpu_custom_call.1} parent=5 // pred_fallthru
        _
      %p424 = scmp.lt.s32.totalorder %s25, 2
      // Predicated region
      $region65: #{tpu_custom_call.1} parent=5 // pred_check
        %p425 = pneg %p424
      $region66: #{tpu_custom_call.1} parent=5 // pred_check_branch
        %427 = sbr.rel (%p425) target = $region68
      $region67: #{tpu_custom_call.1} parent=5 // pred_region
        // Predicated region
        $region69: #{tpu_custom_call.1} parent=67 // pred_check
          %p428 = pneg %p45
        $region70: #{tpu_custom_call.1} parent=67 // pred_check_branch
          %430 = sbr.rel (%p428) target = $region72
        $region71: #{tpu_custom_call.1} parent=67 // pred_region
          %p431 = scmp.lt.s32.totalorder %s25, 1
          %s432 = scalar_select %p431, %s25, 1
          %s433 = smul.addr %s432, 13
          %s434 = smul.addr %s433, 8
          %s435 = scalar_lea.vmem %s0, %s434
        $region72: #{tpu_custom_call.1} parent=67 // pred_fallthru
          _
      $region68: #{tpu_custom_call.1} parent=5 // pred_fallthru
        _
      %p436 = scmp.le.s32.totalorder 1, %s25
      %p437 = scmp.lt.s32.totalorder %s25, 3
      %p438 = pnand %p436, %p437
      %p439 = pneg %p438
      // Predicated region
      $region73: #{tpu_custom_call.1} parent=5 // pred_check
        _
      $region74: #{tpu_custom_call.1} parent=5 // pred_check_branch
        %441 = sbr.rel (%p438) target = $region76
      $region75: #{tpu_custom_call.1} parent=5 // pred_region
        %s442 = ssub.s32 %s25, 1
        // Predicated region
        $region77: #{tpu_custom_call.1} parent=75 // pred_check
          %p443 = pneg %p177
        $region78: #{tpu_custom_call.1} parent=75 // pred_check_branch
          %445 = sbr.rel (%p443) target = $region80
        $region79: #{tpu_custom_call.1} parent=75 // pred_region
          %446 = dma.done [#allocation5], 18432
        $region80: #{tpu_custom_call.1} parent=75 // pred_fallthru
          _
        // Predicated region
        $region81: #{tpu_custom_call.1} parent=75 // pred_check
          %p447 = pneg %p261
        $region82: #{tpu_custom_call.1} parent=75 // pred_check_branch
          %449 = sbr.rel (%p447) target = $region84
        $region83: #{tpu_custom_call.1} parent=75 // pred_region
          %450 = dma.done [#allocation8], 18432
        $region84: #{tpu_custom_call.1} parent=75 // pred_fallthru
          _
        %p451 = scmp.lt.s32.totalorder %s30, 1
        %s452 = scalar_select %p451, %s30, 1
        %s453 = smul.addr %s452, 13
        %s454 = smul.addr %s453, 8
        %s455 = scalar_lea.vmem %s0, %s454
        %p456 = pneg %p51
        %p457 = pneg %p48
        %p458 = pneg %p72
        %p459 = pneg %p69
        %p460 = pneg %p93
        %p461 = pneg %p90
        %p462 = pneg %p114
        %p463 = pneg %p111
        %p464 = pneg %p135
        %p465 = pneg %p132
        %p466 = pneg %p156
        %p467 = pneg %p153
        %p468 = pneg %p177
        %p469 = pneg %p174
        %p470 = pneg %p198
        %p471 = pneg %p195
        %p472 = pneg %p219
        %p473 = pneg %p216
        %p474 = pneg %p240
        %p475 = pneg %p237
        %p476 = pneg %p261
        %p477 = pneg %p258
        %p478 = pneg %p282
        %p479 = pneg %p279
        %p480 = pneg %p303
        %p481 = pneg %p300
        %p482 = pneg %p324
        %p483 = pneg %p321
        %p484 = pneg %p350
        %p485 = pneg %p347
        %s486 = sand.u32 %s337, 1
        %s487 = scalar_lea.sflag [#allocation6], %s486
        %s488 = sand.u32 %s337, 1
        %s489 = smul.addr %s488, 80
        %s490 = scalar_lea.vmem [#allocation9], %s489
        %p491 = scmp.lt.s32.totalorder %s30, 1
        %s492 = scalar_select %p491, %s30, 1
        %s493 = smul.addr %s492, 13
        %s494 = smul.addr %s493, 8
        %s495 = scalar_lea.vmem %s0, %s494
        %v496 = vld [vmem:[%s1] sm:$0xff]
        %v497 = vld [vmem:[%s1 + $0x8] sm:$0xff]
        %v498 = vld [vmem:[%s1 + $0x10] sm:$0xff]
        %v499 = vld [vmem:[%s1 + $0x18] sm:$0xff]
        %v500 = vld [vmem:[%s1 + $0x20] sm:$0xff]
        %v501 = vld [vmem:[%s1 + $0x28] sm:$0xff]
        %v502 = vld [vmem:[%s1 + $0x30] sm:$0xff]
        %v503 = vld [vmem:[%s1 + $0x38] sm:$0xff]
        %v504 = vld [vmem:[%s1 + $0x40] sm:$0xff]
        %v505 = vld [vmem:[%s1 + $0x48] sm:$0xff]
        %v506 = vld [vmem:[%s495] sm:$0xff]
        %v507 = vld [vmem:[%s495 + $0x8] sm:$0xff]
        %v508 = vld [vmem:[%s495 + $0x10] sm:$0xff]
        %v509 = vld [vmem:[%s495 + $0x18] sm:$0xff]
        %v510 = vld [vmem:[%s495 + $0x20] sm:$0xff]
        %v511 = vld [vmem:[%s495 + $0x28] sm:$0xff]
        %v512 = vld [vmem:[%s495 + $0x30] sm:$0xff]
        %v513 = vld [vmem:[%s495 + $0x38] sm:$0xff]
        %v514 = vld [vmem:[%s495 + $0x40] sm:$0xff]
        %v515 = vld [vmem:[%s495 + $0x48] sm:$0xff]
        %v516 = vld [vmem:[%s2] sm:$0xff]
        %v517 = vld [vmem:[%s495 + $0x1] sm:$0xff]
        %v518 = vld [vmem:[%s495 + $0x9] sm:$0xff]
        %v519 = vld [vmem:[%s495 + $0x11] sm:$0xff]
        %v520 = vld [vmem:[%s495 + $0x19] sm:$0xff]
        %v521 = vld [vmem:[%s495 + $0x21] sm:$0xff]
        %v522 = vld [vmem:[%s495 + $0x29] sm:$0xff]
        %v523 = vld [vmem:[%s495 + $0x31] sm:$0xff]
        %v524 = vld [vmem:[%s495 + $0x39] sm:$0xff]
        %v525 = vld [vmem:[%s495 + $0x41] sm:$0xff]
        %v526 = vld [vmem:[%s495 + $0x49] sm:$0xff]
        %s527 = scalar_lea.vmem %s2, 8
        %v528 = vld [vmem:[%s527] sm:$0xff]
        %vm529 = vcmask 64512
        %v531 = vsel %vm529, %v517, 0
        %v534 = vsel %vm529, %v518, 0
        %v537 = vsel %vm529, %v519, 0
        %v540 = vsel %vm529, %v520, 0
        %v543 = vsel %vm529, %v521, 0
        %v546 = vsel %vm529, %v522, 0
        %v549 = vsel %vm529, %v523, 0
        %v552 = vsel %vm529, %v524, 0
        %v555 = vsel %vm529, %v525, 0
        %v558 = vsel %vm529, %v526, 0
        %560 = vmatprep.subr.mxu0 0.0
        %561 = vmatpush1.msra.mxu0 0.0
        %562 = vmatprep.subr.mxu0 0.0
        %563 = vmatpush1.msra.mxu0 0.0
        %564 = vmatprep.subr.mxu0 0.0
        %565 = vmatpush1.msra.mxu0 0.0
        %566 = vmatprep.subr.mxu0 0.0
        %567 = vmatpush1.msra.mxu0 0.0
        %568 = vmatprep.subr.mxu0 0.0
        %569 = vmatpush1.msra.mxu0 0.0
        %570 = vmatprep.subr.mxu0 0.0
        %571 = vmatpush1.msra.mxu0 0.0
        %572 = vmatprep.subr.mxu0 0.0
        %573 = vmatpush1.msra.mxu0 0.0
        %574 = vmatprep.subr.mxu0 0.0
        %575 = vmatpush1.msra.mxu0 0.0
        %576 = vmatprep.subr.mxu0 0.0
        %577 = vmatpush1.msra.mxu0 0.0
        %578 = vmatprep.subr.mxu0 0.0
        %579 = vmatpush1.msra.mxu0 0.0
        %580 = vmatprep.subr.mxu0 0.0
        %581 = vmatpush1.msra.mxu0 0.0
        %582 = vmatprep.subr.mxu0 0.0
        %583 = vmatpush1.msra.mxu0 0.0
        %584 = vmatprep.subr.mxu0 0.0
        %585 = vmatpush1.msra.mxu0 0.0
        %586 = vmatprep.subr.mxu0 0.0
        %587 = vmatpush1.msra.mxu0 0.0
        %588 = vmatprep.subr.mxu0 0.0
        %589 = vmatpush1.msra.mxu0 0.0
        %590 = vmatprep.subr.mxu0 0.0
        %591 = vmatpush1.msra.mxu0 %v528
        %592 = vmatprep.subr.mxu0 0.0
        %593 = vmatpush2.msra.mxu0 0.0
        %594 = vmatprep.subr.mxu0 0.0
        %595 = vmatpush2.msra.mxu0 0.0
        %596 = vmatprep.subr.mxu0 0.0
        %597 = vmatpush2.msra.mxu0 0.0
        %598 = vmatprep.subr.mxu0 0.0
        %599 = vmatpush2.msra.mxu0 0.0
        %600 = vmatprep.subr.mxu0 0.0
        %601 = vmatpush2.msra.mxu0 0.0
        %602 = vmatprep.subr.mxu0 0.0
        %603 = vmatpush2.msra.mxu0 0.0
        %604 = vmatprep.subr.mxu0 0.0
        %605 = vmatpush2.msra.mxu0 0.0
        %606 = vmatprep.subr.mxu0 0.0
        %607 = vmatpush2.msra.mxu0 0.0
        %608 = vmatprep.subr.mxu0 0.0
        %609 = vmatpush2.msra.mxu0 0.0
        %610 = vmatprep.subr.mxu0 0.0
        %611 = vmatpush2.msra.mxu0 0.0
        %612 = vmatprep.subr.mxu0 0.0
        %613 = vmatpush2.msra.mxu0 0.0
        %614 = vmatprep.subr.mxu0 0.0
        %615 = vmatpush2.msra.mxu0 0.0
        %616 = vmatprep.subr.mxu0 0.0
        %617 = vmatpush2.msra.mxu0 0.0
        %618 = vmatprep.subr.mxu0 0.0
        %619 = vmatpush2.msra.mxu0 0.0
        %620 = vmatprep.subr.mxu0 0.0
        %621 = vmatpush2.msra.mxu0 0.0
        %622 = vmatprep.subr.mxu0 0.0
        %623 = vmatpush2.msra.mxu0 0.0
        %624 = vmatprep.mubr.f32.mxu0 0.0
        %625 = vmatmul.mubr.f32.gmra.mxu0 %v531
        %v626 = vpop.f32.mrf.mxu0
        %v627 = vadd.f32 0.0, %v626
        %v628 = vpop.f32.mrf.mxu0
        %629 = vmatprep.mubr.f32.mxu0 0.0
        %630 = vmatmul.mubr.f32.gmra.mxu0 %v534
        %v631 = vpop.f32.mrf.mxu0
        %v632 = vadd.f32 0.0, %v631
        %v633 = vpop.f32.mrf.mxu0
        %634 = vmatprep.mubr.f32.mxu0 0.0
        %635 = vmatmul.mubr.f32.gmra.mxu0 %v537
        %v636 = vpop.f32.mrf.mxu0
        %v637 = vadd.f32 0.0, %v636
        %v638 = vpop.f32.mrf.mxu0
        %639 = vmatprep.mubr.f32.mxu0 0.0
        %640 = vmatmul.mubr.f32.gmra.mxu0 %v540
        %v641 = vpop.f32.mrf.mxu0
        %v642 = vadd.f32 0.0, %v641
        %v643 = vpop.f32.mrf.mxu0
        %644 = vmatprep.mubr.f32.mxu0 0.0
        %645 = vmatmul.mubr.f32.gmra.mxu0 %v543
        %v646 = vpop.f32.mrf.mxu0
        %v647 = vadd.f32 0.0, %v646
        %v648 = vpop.f32.mrf.mxu0
        %649 = vmatprep.mubr.f32.mxu0 0.0
        %650 = vmatmul.mubr.f32.gmra.mxu0 %v546
        %v651 = vpop.f32.mrf.mxu0
        %v652 = vadd.f32 0.0, %v651
        %v653 = vpop.f32.mrf.mxu0
        %654 = vmatprep.mubr.f32.mxu0 0.0
        %655 = vmatmul.mubr.f32.gmra.mxu0 %v549
        %v656 = vpop.f32.mrf.mxu0
        %v657 = vadd.f32 0.0, %v656
        %v658 = vpop.f32.mrf.mxu0
        %659 = vmatprep.mubr.f32.mxu0 0.0
        %660 = vmatmul.mubr.f32.gmra.mxu0 %v552
        %v661 = vpop.f32.mrf.mxu0
        %v662 = vadd.f32 0.0, %v661
        %v663 = vpop.f32.mrf.mxu0
        %664 = vmatprep.mubr.f32.mxu0 0.0
        %665 = vmatmul.mubr.f32.gmra.mxu0 %v555
        %v666 = vpop.f32.mrf.mxu0
        %v667 = vadd.f32 0.0, %v666
        %v668 = vpop.f32.mrf.mxu0
        %669 = vmatprep.mubr.f32.mxu0 0.0
        %670 = vmatmul.mubr.f32.gmra.mxu0 %v558
        %v671 = vpop.f32.mrf.mxu0
        %v672 = vadd.f32 0.0, %v671
        %v673 = vpop.f32.mrf.mxu0
        %674 = vdwg.mxu0
        %v676 = vsel %vm529, %v506, 0
        %v679 = vsel %vm529, %v507, 0
        %v682 = vsel %vm529, %v508, 0
        %v685 = vsel %vm529, %v509, 0
        %v688 = vsel %vm529, %v510, 0
        %v691 = vsel %vm529, %v511, 0
        %v694 = vsel %vm529, %v512, 0
        %v697 = vsel %vm529, %v513, 0
        %v700 = vsel %vm529, %v514, 0
        %v703 = vsel %vm529, %v515, 0
        %705 = vmatprep.subr.mxu0 0.0
        %706 = vmatpush1.msra.mxu0 0.0
        %707 = vmatprep.subr.mxu0 0.0
        %708 = vmatpush1.msra.mxu0 0.0
        %709 = vmatprep.subr.mxu0 0.0
        %710 = vmatpush1.msra.mxu0 0.0
        %711 = vmatprep.subr.mxu0 0.0
        %712 = vmatpush1.msra.mxu0 0.0
        %713 = vmatprep.subr.mxu0 0.0
        %714 = vmatpush1.msra.mxu0 0.0
        %715 = vmatprep.subr.mxu0 0.0
        %716 = vmatpush1.msra.mxu0 0.0
        %717 = vmatprep.subr.mxu0 0.0
        %718 = vmatpush1.msra.mxu0 0.0
        %719 = vmatprep.subr.mxu0 0.0
        %720 = vmatpush1.msra.mxu0 0.0
        %721 = vmatprep.subr.mxu0 0.0
        %722 = vmatpush1.msra.mxu0 0.0
        %723 = vmatprep.subr.mxu0 0.0
        %724 = vmatpush1.msra.mxu0 0.0
        %725 = vmatprep.subr.mxu0 0.0
        %726 = vmatpush1.msra.mxu0 0.0
        %727 = vmatprep.subr.mxu0 0.0
        %728 = vmatpush1.msra.mxu0 0.0
        %729 = vmatprep.subr.mxu0 0.0
        %730 = vmatpush1.msra.mxu0 0.0
        %731 = vmatprep.subr.mxu0 0.0
        %732 = vmatpush1.msra.mxu0 0.0
        %733 = vmatprep.subr.mxu0 0.0
        %734 = vmatpush1.msra.mxu0 0.0
        %735 = vmatprep.subr.mxu0 0.0
        %736 = vmatpush1.msra.mxu0 %v516
        %737 = vmatprep.subr.mxu0 0.0
        %738 = vmatpush2.msra.mxu0 0.0
        %739 = vmatprep.subr.mxu0 0.0
        %740 = vmatpush2.msra.mxu0 0.0
        %741 = vmatprep.subr.mxu0 0.0
        %742 = vmatpush2.msra.mxu0 0.0
        %743 = vmatprep.subr.mxu0 0.0
        %744 = vmatpush2.msra.mxu0 0.0
        %745 = vmatprep.subr.mxu0 0.0
        %746 = vmatpush2.msra.mxu0 0.0
        %747 = vmatprep.subr.mxu0 0.0
        %748 = vmatpush2.msra.mxu0 0.0
        %749 = vmatprep.subr.mxu0 0.0
        %750 = vmatpush2.msra.mxu0 0.0
        %751 = vmatprep.subr.mxu0 0.0
        %752 = vmatpush2.msra.mxu0 0.0
        %753 = vmatprep.subr.mxu0 0.0
        %754 = vmatpush2.msra.mxu0 0.0
        %755 = vmatprep.subr.mxu0 0.0
        %756 = vmatpush2.msra.mxu0 0.0
        %757 = vmatprep.subr.mxu0 0.0
        %758 = vmatpush2.msra.mxu0 0.0
        %759 = vmatprep.subr.mxu0 0.0
        %760 = vmatpush2.msra.mxu0 0.0
        %761 = vmatprep.subr.mxu0 0.0
        %762 = vmatpush2.msra.mxu0 0.0
        %763 = vmatprep.subr.mxu0 0.0
        %764 = vmatpush2.msra.mxu0 0.0
        %765 = vmatprep.subr.mxu0 0.0
        %766 = vmatpush2.msra.mxu0 0.0
        %767 = vmatprep.subr.mxu0 0.0
        %768 = vmatpush2.msra.mxu0 0.0
        %769 = vmatprep.mubr.f32.mxu0 0.0
        %770 = vmatmul.mubr.f32.gmra.mxu0 %v676
        %v771 = vpop.f32.mrf.mxu0
        %v772 = vadd.f32 %v627, %v771
        %v773 = vpop.f32.mrf.mxu0
        %774 = vmatprep.mubr.f32.mxu0 0.0
        %775 = vmatmul.mubr.f32.gmra.mxu0 %v679
        %v776 = vpop.f32.mrf.mxu0
        %v777 = vadd.f32 %v632, %v776
        %v778 = vpop.f32.mrf.mxu0
        %779 = vmatprep.mubr.f32.mxu0 0.0
        %780 = vmatmul.mubr.f32.gmra.mxu0 %v682
        %v781 = vpop.f32.mrf.mxu0
        %v782 = vadd.f32 %v637, %v781
        %v783 = vpop.f32.mrf.mxu0
        %784 = vmatprep.mubr.f32.mxu0 0.0
        %785 = vmatmul.mubr.f32.gmra.mxu0 %v685
        %v786 = vpop.f32.mrf.mxu0
        %v787 = vadd.f32 %v642, %v786
        %v788 = vpop.f32.mrf.mxu0
        %789 = vmatprep.mubr.f32.mxu0 0.0
        %790 = vmatmul.mubr.f32.gmra.mxu0 %v688
        %v791 = vpop.f32.mrf.mxu0
        %v792 = vadd.f32 %v647, %v791
        %v793 = vpop.f32.mrf.mxu0
        %794 = vmatprep.mubr.f32.mxu0 0.0
        %795 = vmatmul.mubr.f32.gmra.mxu0 %v691
        %v796 = vpop.f32.mrf.mxu0
        %v797 = vadd.f32 %v652, %v796
        %v798 = vpop.f32.mrf.mxu0
        %799 = vmatprep.mubr.f32.mxu0 0.0
        %800 = vmatmul.mubr.f32.gmra.mxu0 %v694
        %v801 = vpop.f32.mrf.mxu0
        %v802 = vadd.f32 %v657, %v801
        %v803 = vpop.f32.mrf.mxu0
        %804 = vmatprep.mubr.f32.mxu0 0.0
        %805 = vmatmul.mubr.f32.gmra.mxu0 %v697
        %v806 = vpop.f32.mrf.mxu0
        %v807 = vadd.f32 %v662, %v806
        %v808 = vpop.f32.mrf.mxu0
        %809 = vmatprep.mubr.f32.mxu0 0.0
        %810 = vmatmul.mubr.f32.gmra.mxu0 %v700
        %v811 = vpop.f32.mrf.mxu0
        %v812 = vadd.f32 %v667, %v811
        %v813 = vpop.f32.mrf.mxu0
        %814 = vmatprep.mubr.f32.mxu0 0.0
        %815 = vmatmul.mubr.f32.gmra.mxu0 %v703
        %v816 = vpop.f32.mrf.mxu0
        %v817 = vadd.f32 %v672, %v816
        %v818 = vpop.f32.mrf.mxu0
        %819 = vdwg.mxu0
        %v820 = vld [vmem:[%s495 + $0x2] sm:$0xff]
        %v821 = vld [vmem:[%s495 + $0xa] sm:$0xff]
        %v822 = vld [vmem:[%s495 + $0x12] sm:$0xff]
        %v823 = vld [vmem:[%s495 + $0x1a] sm:$0xff]
        %v824 = vld [vmem:[%s495 + $0x22] sm:$0xff]
        %v825 = vld [vmem:[%s495 + $0x2a] sm:$0xff]
        %v826 = vld [vmem:[%s495 + $0x32] sm:$0xff]
        %v827 = vld [vmem:[%s495 + $0x3a] sm:$0xff]
        %v828 = vld [vmem:[%s495 + $0x42] sm:$0xff]
        %v829 = vld [vmem:[%s495 + $0x4a] sm:$0xff]
        %s830 = scalar_lea.vmem %s2, 16
        %v831 = vld [vmem:[%s830] sm:$0xff]
        %v833 = vsel %vm529, %v820, 0
        %v836 = vsel %vm529, %v821, 0
        %v839 = vsel %vm529, %v822, 0
        %v842 = vsel %vm529, %v823, 0
        %v845 = vsel %vm529, %v824, 0
        %v848 = vsel %vm529, %v825, 0
        %v851 = vsel %vm529, %v826, 0
        %v854 = vsel %vm529, %v827, 0
        %v857 = vsel %vm529, %v828, 0
        %v860 = vsel %vm529, %v829, 0
        %862 = vmatprep.subr.mxu0 0.0
        %863 = vmatpush1.msra.mxu0 0.0
        %864 = vmatprep.subr.mxu0 0.0
        %865 = vmatpush1.msra.mxu0 0.0
        %866 = vmatprep.subr.mxu0 0.0
        %867 = vmatpush1.msra.mxu0 0.0
        %868 = vmatprep.subr.mxu0 0.0
        %869 = vmatpush1.msra.mxu0 0.0
        %870 = vmatprep.subr.mxu0 0.0
        %871 = vmatpush1.msra.mxu0 0.0
        %872 = vmatprep.subr.mxu0 0.0
        %873 = vmatpush1.msra.mxu0 0.0
        %874 = vmatprep.subr.mxu0 0.0
        %875 = vmatpush1.msra.mxu0 0.0
        %876 = vmatprep.subr.mxu0 0.0
        %877 = vmatpush1.msra.mxu0 0.0
        %878 = vmatprep.subr.mxu0 0.0
        %879 = vmatpush1.msra.mxu0 0.0
        %880 = vmatprep.subr.mxu0 0.0
        %881 = vmatpush1.msra.mxu0 0.0
        %882 = vmatprep.subr.mxu0 0.0
        %883 = vmatpush1.msra.mxu0 0.0
        %884 = vmatprep.subr.mxu0 0.0
        %885 = vmatpush1.msra.mxu0 0.0
        %886 = vmatprep.subr.mxu0 0.0
        %887 = vmatpush1.msra.mxu0 0.0
        %888 = vmatprep.subr.mxu0 0.0
        %889 = vmatpush1.msra.mxu0 0.0
        %890 = vmatprep.subr.mxu0 0.0
        %891 = vmatpush1.msra.mxu0 0.0
        %892 = vmatprep.subr.mxu0 0.0
        %893 = vmatpush1.msra.mxu0 %v831
        %894 = vmatprep.subr.mxu0 0.0
        %895 = vmatpush2.msra.mxu0 0.0
        %896 = vmatprep.subr.mxu0 0.0
        %897 = vmatpush2.msra.mxu0 0.0
        %898 = vmatprep.subr.mxu0 0.0
        %899 = vmatpush2.msra.mxu0 0.0
        %900 = vmatprep.subr.mxu0 0.0
        %901 = vmatpush2.msra.mxu0 0.0
        %902 = vmatprep.subr.mxu0 0.0
        %903 = vmatpush2.msra.mxu0 0.0
        %904 = vmatprep.subr.mxu0 0.0
        %905 = vmatpush2.msra.mxu0 0.0
        %906 = vmatprep.subr.mxu0 0.0
        %907 = vmatpush2.msra.mxu0 0.0
        %908 = vmatprep.subr.mxu0 0.0
        %909 = vmatpush2.msra.mxu0 0.0
        %910 = vmatprep.subr.mxu0 0.0
        %911 = vmatpush2.msra.mxu0 0.0
        %912 = vmatprep.subr.mxu0 0.0
        %913 = vmatpush2.msra.mxu0 0.0
        %914 = vmatprep.subr.mxu0 0.0
        %915 = vmatpush2.msra.mxu0 0.0
        %916 = vmatprep.subr.mxu0 0.0
        %917 = vmatpush2.msra.mxu0 0.0
        %918 = vmatprep.subr.mxu0 0.0
        %919 = vmatpush2.msra.mxu0 0.0
        %920 = vmatprep.subr.mxu0 0.0
        %921 = vmatpush2.msra.mxu0 0.0
        %922 = vmatprep.subr.mxu0 0.0
        %923 = vmatpush2.msra.mxu0 0.0
        %924 = vmatprep.subr.mxu0 0.0
        %925 = vmatpush2.msra.mxu0 0.0
        %926 = vmatprep.mubr.f32.mxu0 0.0
        %927 = vmatmul.mubr.f32.gmra.mxu0 %v833
        %v928 = vpop.f32.mrf.mxu0
        %v929 = vadd.f32 0.0, %v928
        %v930 = vpop.f32.mrf.mxu0
        %931 = vmatprep.mubr.f32.mxu0 0.0
        %932 = vmatmul.mubr.f32.gmra.mxu0 %v836
        %v933 = vpop.f32.mrf.mxu0
        %v934 = vadd.f32 0.0, %v933
        %v935 = vpop.f32.mrf.mxu0
        %936 = vmatprep.mubr.f32.mxu0 0.0
        %937 = vmatmul.mubr.f32.gmra.mxu0 %v839
        %v938 = vpop.f32.mrf.mxu0
        %v939 = vadd.f32 0.0, %v938
        %v940 = vpop.f32.mrf.mxu0
        %941 = vmatprep.mubr.f32.mxu0 0.0
        %942 = vmatmul.mubr.f32.gmra.mxu0 %v842
        %v943 = vpop.f32.mrf.mxu0
        %v944 = vadd.f32 0.0, %v943
        %v945 = vpop.f32.mrf.mxu0
        %946 = vmatprep.mubr.f32.mxu0 0.0
        %947 = vmatmul.mubr.f32.gmra.mxu0 %v845
        %v948 = vpop.f32.mrf.mxu0
        %v949 = vadd.f32 0.0, %v948
        %v950 = vpop.f32.mrf.mxu0
        %951 = vmatprep.mubr.f32.mxu0 0.0
        %952 = vmatmul.mubr.f32.gmra.mxu0 %v848
        %v953 = vpop.f32.mrf.mxu0
        %v954 = vadd.f32 0.0, %v953
        %v955 = vpop.f32.mrf.mxu0
        %956 = vmatprep.mubr.f32.mxu0 0.0
        %957 = vmatmul.mubr.f32.gmra.mxu0 %v851
        %v958 = vpop.f32.mrf.mxu0
        %v959 = vadd.f32 0.0, %v958
        %v960 = vpop.f32.mrf.mxu0
        %961 = vmatprep.mubr.f32.mxu0 0.0
        %962 = vmatmul.mubr.f32.gmra.mxu0 %v854
        %v963 = vpop.f32.mrf.mxu0
        %v964 = vadd.f32 0.0, %v963
        %v965 = vpop.f32.mrf.mxu0
        %966 = vmatprep.mubr.f32.mxu0 0.0
        %967 = vmatmul.mubr.f32.gmra.mxu0 %v857
        %v968 = vpop.f32.mrf.mxu0
        %v969 = vadd.f32 0.0, %v968
        %v970 = vpop.f32.mrf.mxu0
        %971 = vmatprep.mubr.f32.mxu0 0.0
        %972 = vmatmul.mubr.f32.gmra.mxu0 %v860
        %v973 = vpop.f32.mrf.mxu0
        %v974 = vadd.f32 0.0, %v973
        %v975 = vpop.f32.mrf.mxu0
        %976 = vdwg.mxu0
        %v977 = vadd.f32 %v772, %v929
        %v978 = vadd.f32 %v777, %v934
        %v979 = vadd.f32 %v782, %v939
        %v980 = vadd.f32 %v787, %v944
        %v981 = vadd.f32 %v792, %v949
        %v982 = vadd.f32 %v797, %v954
        %v983 = vadd.f32 %v802, %v959
        %v984 = vadd.f32 %v807, %v964
        %v985 = vadd.f32 %v812, %v969
        %v986 = vadd.f32 %v817, %v974
        %v987 = vld [vmem:[%s495 + $0xa] sm:$0xff]
        %v988 = vld [vmem:[%s495 + $0x12] sm:$0xff]
        %v989 = vld [vmem:[%s495 + $0x1a] sm:$0xff]
        %v990 = vld [vmem:[%s495 + $0x22] sm:$0xff]
        %v991 = vld [vmem:[%s495 + $0x2a] sm:$0xff]
        %v992 = vld [vmem:[%s495 + $0x32] sm:$0xff]
        %v993 = vld [vmem:[%s495 + $0x3a] sm:$0xff]
        %v994 = vld [vmem:[%s495 + $0x42] sm:$0xff]
        %v995 = vld [vmem:[%s495 + $0x4a] sm:$0xff]
        %v996 = vld [vmem:[%s495 + $0x52] sm:$0xff]
        %s997 = scalar_lea.vmem %s2, 24
        %v998 = vld [vmem:[%s997] sm:$0xff]
        %v1000 = vsel %vm529, %v987, 0
        %v1003 = vsel %vm529, %v988, 0
        %v1006 = vsel %vm529, %v989, 0
        %v1009 = vsel %vm529, %v990, 0
        %v1012 = vsel %vm529, %v991, 0
        %v1015 = vsel %vm529, %v992, 0
        %v1018 = vsel %vm529, %v993, 0
        %v1021 = vsel %vm529, %v994, 0
        %v1024 = vsel %vm529, %v995, 0
        %v1027 = vsel %vm529, %v996, 0
        %1029 = vmatprep.subr.mxu0 0.0
        %1030 = vmatpush1.msra.mxu0 0.0
        %1031 = vmatprep.subr.mxu0 0.0
        %1032 = vmatpush1.msra.mxu0 0.0
        %1033 = vmatprep.subr.mxu0 0.0
        %1034 = vmatpush1.msra.mxu0 0.0
        %1035 = vmatprep.subr.mxu0 0.0
        %1036 = vmatpush1.msra.mxu0 0.0
        %1037 = vmatprep.subr.mxu0 0.0
        %1038 = vmatpush1.msra.mxu0 0.0
        %1039 = vmatprep.subr.mxu0 0.0
        %1040 = vmatpush1.msra.mxu0 0.0
        %1041 = vmatprep.subr.mxu0 0.0
        %1042 = vmatpush1.msra.mxu0 0.0
        %1043 = vmatprep.subr.mxu0 0.0
        %1044 = vmatpush1.msra.mxu0 0.0
        %1045 = vmatprep.subr.mxu0 0.0
        %1046 = vmatpush1.msra.mxu0 0.0
        %1047 = vmatprep.subr.mxu0 0.0
        %1048 = vmatpush1.msra.mxu0 0.0
        %1049 = vmatprep.subr.mxu0 0.0
        %1050 = vmatpush1.msra.mxu0 0.0
        %1051 = vmatprep.subr.mxu0 0.0
        %1052 = vmatpush1.msra.mxu0 0.0
        %1053 = vmatprep.subr.mxu0 0.0
        %1054 = vmatpush1.msra.mxu0 0.0
        %1055 = vmatprep.subr.mxu0 0.0
        %1056 = vmatpush1.msra.mxu0 0.0
        %1057 = vmatprep.subr.mxu0 0.0
        %1058 = vmatpush1.msra.mxu0 0.0
        %1059 = vmatprep.subr.mxu0 0.0
        %1060 = vmatpush1.msra.mxu0 %v998
        %1061 = vmatprep.subr.mxu0 0.0
        %1062 = vmatpush2.msra.mxu0 0.0
        %1063 = vmatprep.subr.mxu0 0.0
        %1064 = vmatpush2.msra.mxu0 0.0
        %1065 = vmatprep.subr.mxu0 0.0
        %1066 = vmatpush2.msra.mxu0 0.0
        %1067 = vmatprep.subr.mxu0 0.0
        %1068 = vmatpush2.msra.mxu0 0.0
        %1069 = vmatprep.subr.mxu0 0.0
        %1070 = vmatpush2.msra.mxu0 0.0
        %1071 = vmatprep.subr.mxu0 0.0
        %1072 = vmatpush2.msra.mxu0 0.0
        %1073 = vmatprep.subr.mxu0 0.0
        %1074 = vmatpush2.msra.mxu0 0.0
        %1075 = vmatprep.subr.mxu0 0.0
        %1076 = vmatpush2.msra.mxu0 0.0
        %1077 = vmatprep.subr.mxu0 0.0
        %1078 = vmatpush2.msra.mxu0 0.0
        %1079 = vmatprep.subr.mxu0 0.0
        %1080 = vmatpush2.msra.mxu0 0.0
        %1081 = vmatprep.subr.mxu0 0.0
        %1082 = vmatpush2.msra.mxu0 0.0
        %1083 = vmatprep.subr.mxu0 0.0
        %1084 = vmatpush2.msra.mxu0 0.0
        %1085 = vmatprep.subr.mxu0 0.0
        %1086 = vmatpush2.msra.mxu0 0.0
        %1087 = vmatprep.subr.mxu0 0.0
        %1088 = vmatpush2.msra.mxu0 0.0
        %1089 = vmatprep.subr.mxu0 0.0
        %1090 = vmatpush2.msra.mxu0 0.0
        %1091 = vmatprep.subr.mxu0 0.0
        %1092 = vmatpush2.msra.mxu0 0.0
        %1093 = vmatprep.mubr.f32.mxu0 0.0
        %1094 = vmatmul.mubr.f32.gmra.mxu0 %v1000
        %v1095 = vpop.f32.mrf.mxu0
        %v1096 = vadd.f32 0.0, %v1095
        %v1097 = vpop.f32.mrf.mxu0
        %1098 = vmatprep.mubr.f32.mxu0 0.0
        %1099 = vmatmul.mubr.f32.gmra.mxu0 %v1003
        %v1100 = vpop.f32.mrf.mxu0
        %v1101 = vadd.f32 0.0, %v1100
        %v1102 = vpop.f32.mrf.mxu0
        %1103 = vmatprep.mubr.f32.mxu0 0.0
        %1104 = vmatmul.mubr.f32.gmra.mxu0 %v1006
        %v1105 = vpop.f32.mrf.mxu0
        %v1106 = vadd.f32 0.0, %v1105
        %v1107 = vpop.f32.mrf.mxu0
        %1108 = vmatprep.mubr.f32.mxu0 0.0
        %1109 = vmatmul.mubr.f32.gmra.mxu0 %v1009
        %v1110 = vpop.f32.mrf.mxu0
        %v1111 = vadd.f32 0.0, %v1110
        %v1112 = vpop.f32.mrf.mxu0
        %1113 = vmatprep.mubr.f32.mxu0 0.0
        %1114 = vmatmul.mubr.f32.gmra.mxu0 %v1012
        %v1115 = vpop.f32.mrf.mxu0
        %v1116 = vadd.f32 0.0, %v1115
        %v1117 = vpop.f32.mrf.mxu0
        %1118 = vmatprep.mubr.f32.mxu0 0.0
        %1119 = vmatmul.mubr.f32.gmra.mxu0 %v1015
        %v1120 = vpop.f32.mrf.mxu0
        %v1121 = vadd.f32 0.0, %v1120
        %v1122 = vpop.f32.mrf.mxu0
        %1123 = vmatprep.mubr.f32.mxu0 0.0
        %1124 = vmatmul.mubr.f32.gmra.mxu0 %v1018
        %v1125 = vpop.f32.mrf.mxu0
        %v1126 = vadd.f32 0.0, %v1125
        %v1127 = vpop.f32.mrf.mxu0
        %1128 = vmatprep.mubr.f32.mxu0 0.0
        %1129 = vmatmul.mubr.f32.gmra.mxu0 %v1021
        %v1130 = vpop.f32.mrf.mxu0
        %v1131 = vadd.f32 0.0, %v1130
        %v1132 = vpop.f32.mrf.mxu0
        %1133 = vmatprep.mubr.f32.mxu0 0.0
        %1134 = vmatmul.mubr.f32.gmra.mxu0 %v1024
        %v1135 = vpop.f32.mrf.mxu0
        %v1136 = vadd.f32 0.0, %v1135
        %v1137 = vpop.f32.mrf.mxu0
        %1138 = vmatprep.mubr.f32.mxu0 0.0
        %1139 = vmatmul.mubr.f32.gmra.mxu0 %v1027
        %v1140 = vpop.f32.mrf.mxu0
        %v1141 = vadd.f32 0.0, %v1140
        %v1142 = vpop.f32.mrf.mxu0
        %1143 = vdwg.mxu0
        %v1144 = vadd.f32 %v977, %v1096
        %v1145 = vadd.f32 %v978, %v1101
        %v1146 = vadd.f32 %v979, %v1106
        %v1147 = vadd.f32 %v980, %v1111
        %v1148 = vadd.f32 %v981, %v1116
        %v1149 = vadd.f32 %v982, %v1121
        %v1150 = vadd.f32 %v983, %v1126
        %v1151 = vadd.f32 %v984, %v1131
        %v1152 = vadd.f32 %v985, %v1136
        %v1153 = vadd.f32 %v986, %v1141
        %v1154 = vld [vmem:[%s495 + $0xb] sm:$0xff]
        %v1155 = vld [vmem:[%s495 + $0x13] sm:$0xff]
        %v1156 = vld [vmem:[%s495 + $0x1b] sm:$0xff]
        %v1157 = vld [vmem:[%s495 + $0x23] sm:$0xff]
        %v1158 = vld [vmem:[%s495 + $0x2b] sm:$0xff]
        %v1159 = vld [vmem:[%s495 + $0x33] sm:$0xff]
        %v1160 = vld [vmem:[%s495 + $0x3b] sm:$0xff]
        %v1161 = vld [vmem:[%s495 + $0x43] sm:$0xff]
        %v1162 = vld [vmem:[%s495 + $0x4b] sm:$0xff]
        %v1163 = vld [vmem:[%s495 + $0x53] sm:$0xff]
        %s1164 = scalar_lea.vmem %s2, 32
        %v1165 = vld [vmem:[%s1164] sm:$0xff]
        %v1167 = vsel %vm529, %v1154, 0
        %v1170 = vsel %vm529, %v1155, 0
        %v1173 = vsel %vm529, %v1156, 0
        %v1176 = vsel %vm529, %v1157, 0
        %v1179 = vsel %vm529, %v1158, 0
        %v1182 = vsel %vm529, %v1159, 0
        %v1185 = vsel %vm529, %v1160, 0
        %v1188 = vsel %vm529, %v1161, 0
        %v1191 = vsel %vm529, %v1162, 0
        %v1194 = vsel %vm529, %v1163, 0
        %1196 = vmatprep.subr.mxu0 0.0
        %1197 = vmatpush1.msra.mxu0 0.0
        %1198 = vmatprep.subr.mxu0 0.0
        %1199 = vmatpush1.msra.mxu0 0.0
        %1200 = vmatprep.subr.mxu0 0.0
        %1201 = vmatpush1.msra.mxu0 0.0
        %1202 = vmatprep.subr.mxu0 0.0
        %1203 = vmatpush1.msra.mxu0 0.0
        %1204 = vmatprep.subr.mxu0 0.0
        %1205 = vmatpush1.msra.mxu0 0.0
        %1206 = vmatprep.subr.mxu0 0.0
        %1207 = vmatpush1.msra.mxu0 0.0
        %1208 = vmatprep.subr.mxu0 0.0
        %1209 = vmatpush1.msra.mxu0 0.0
        %1210 = vmatprep.subr.mxu0 0.0
        %1211 = vmatpush1.msra.mxu0 0.0
        %1212 = vmatprep.subr.mxu0 0.0
        %1213 = vmatpush1.msra.mxu0 0.0
        %1214 = vmatprep.subr.mxu0 0.0
        %1215 = vmatpush1.msra.mxu0 0.0
        %1216 = vmatprep.subr.mxu0 0.0
        %1217 = vmatpush1.msra.mxu0 0.0
        %1218 = vmatprep.subr.mxu0 0.0
        %1219 = vmatpush1.msra.mxu0 0.0
        %1220 = vmatprep.subr.mxu0 0.0
        %1221 = vmatpush1.msra.mxu0 0.0
        %1222 = vmatprep.subr.mxu0 0.0
        %1223 = vmatpush1.msra.mxu0 0.0
        %1224 = vmatprep.subr.mxu0 0.0
        %1225 = vmatpush1.msra.mxu0 0.0
        %1226 = vmatprep.subr.mxu0 0.0
        %1227 = vmatpush1.msra.mxu0 %v1165
        %1228 = vmatprep.subr.mxu0 0.0
        %1229 = vmatpush2.msra.mxu0 0.0
        %1230 = vmatprep.subr.mxu0 0.0
        %1231 = vmatpush2.msra.mxu0 0.0
        %1232 = vmatprep.subr.mxu0 0.0
        %1233 = vmatpush2.msra.mxu0 0.0
        %1234 = vmatprep.subr.mxu0 0.0
        %1235 = vmatpush2.msra.mxu0 0.0
        %1236 = vmatprep.subr.mxu0 0.0
        %1237 = vmatpush2.msra.mxu0 0.0
        %1238 = vmatprep.subr.mxu0 0.0
        %1239 = vmatpush2.msra.mxu0 0.0
        %1240 = vmatprep.subr.mxu0 0.0
        %1241 = vmatpush2.msra.mxu0 0.0
        %1242 = vmatprep.subr.mxu0 0.0
        %1243 = vmatpush2.msra.mxu0 0.0
        %1244 = vmatprep.subr.mxu0 0.0
        %1245 = vmatpush2.msra.mxu0 0.0
        %1246 = vmatprep.subr.mxu0 0.0
        %1247 = vmatpush2.msra.mxu0 0.0
        %1248 = vmatprep.subr.mxu0 0.0
        %1249 = vmatpush2.msra.mxu0 0.0
        %1250 = vmatprep.subr.mxu0 0.0
        %1251 = vmatpush2.msra.mxu0 0.0
        %1252 = vmatprep.subr.mxu0 0.0
        %1253 = vmatpush2.msra.mxu0 0.0
        %1254 = vmatprep.subr.mxu0 0.0
        %1255 = vmatpush2.msra.mxu0 0.0
        %1256 = vmatprep.subr.mxu0 0.0
        %1257 = vmatpush2.msra.mxu0 0.0
        %1258 = vmatprep.subr.mxu0 0.0
        %1259 = vmatpush2.msra.mxu0 0.0
        %1260 = vmatprep.mubr.f32.mxu0 0.0
        %1261 = vmatmul.mubr.f32.gmra.mxu0 %v1167
        %v1262 = vpop.f32.mrf.mxu0
        %v1263 = vadd.f32 0.0, %v1262
        %v1264 = vpop.f32.mrf.mxu0
        %1265 = vmatprep.mubr.f32.mxu0 0.0
        %1266 = vmatmul.mubr.f32.gmra.mxu0 %v1170
        %v1267 = vpop.f32.mrf.mxu0
        %v1268 = vadd.f32 0.0, %v1267
        %v1269 = vpop.f32.mrf.mxu0
        %1270 = vmatprep.mubr.f32.mxu0 0.0
        %1271 = vmatmul.mubr.f32.gmra.mxu0 %v1173
        %v1272 = vpop.f32.mrf.mxu0
        %v1273 = vadd.f32 0.0, %v1272
        %v1274 = vpop.f32.mrf.mxu0
        %1275 = vmatprep.mubr.f32.mxu0 0.0
        %1276 = vmatmul.mubr.f32.gmra.mxu0 %v1176
        %v1277 = vpop.f32.mrf.mxu0
        %v1278 = vadd.f32 0.0, %v1277
        %v1279 = vpop.f32.mrf.mxu0
        %1280 = vmatprep.mubr.f32.mxu0 0.0
        %1281 = vmatmul.mubr.f32.gmra.mxu0 %v1179
        %v1282 = vpop.f32.mrf.mxu0
        %v1283 = vadd.f32 0.0, %v1282
        %v1284 = vpop.f32.mrf.mxu0
        %1285 = vmatprep.mubr.f32.mxu0 0.0
        %1286 = vmatmul.mubr.f32.gmra.mxu0 %v1182
        %v1287 = vpop.f32.mrf.mxu0
        %v1288 = vadd.f32 0.0, %v1287
        %v1289 = vpop.f32.mrf.mxu0
        %1290 = vmatprep.mubr.f32.mxu0 0.0
        %1291 = vmatmul.mubr.f32.gmra.mxu0 %v1185
        %v1292 = vpop.f32.mrf.mxu0
        %v1293 = vadd.f32 0.0, %v1292
        %v1294 = vpop.f32.mrf.mxu0
        %1295 = vmatprep.mubr.f32.mxu0 0.0
        %1296 = vmatmul.mubr.f32.gmra.mxu0 %v1188
        %v1297 = vpop.f32.mrf.mxu0
        %v1298 = vadd.f32 0.0, %v1297
        %v1299 = vpop.f32.mrf.mxu0
        %1300 = vmatprep.mubr.f32.mxu0 0.0
        %1301 = vmatmul.mubr.f32.gmra.mxu0 %v1191
        %v1302 = vpop.f32.mrf.mxu0
        %v1303 = vadd.f32 0.0, %v1302
        %v1304 = vpop.f32.mrf.mxu0
        %1305 = vmatprep.mubr.f32.mxu0 0.0
        %1306 = vmatmul.mubr.f32.gmra.mxu0 %v1194
        %v1307 = vpop.f32.mrf.mxu0
        %v1308 = vadd.f32 0.0, %v1307
        %v1309 = vpop.f32.mrf.mxu0
        %1310 = vdwg.mxu0
        %v1311 = vadd.f32 %v1144, %v1263
        %v1312 = vadd.f32 %v1145, %v1268
        %v1313 = vadd.f32 %v1146, %v1273
        %v1314 = vadd.f32 %v1147, %v1278
        %v1315 = vadd.f32 %v1148, %v1283
        %v1316 = vadd.f32 %v1149, %v1288
        %v1317 = vadd.f32 %v1150, %v1293
        %v1318 = vadd.f32 %v1151, %v1298
        %v1319 = vadd.f32 %v1152, %v1303
        %v1320 = vadd.f32 %v1153, %v1308
        %v1321 = vld [vmem:[%s495 + $0xc] sm:$0xff]
        %v1322 = vld [vmem:[%s495 + $0x14] sm:$0xff]
        %v1323 = vld [vmem:[%s495 + $0x1c] sm:$0xff]
        %v1324 = vld [vmem:[%s495 + $0x24] sm:$0xff]
        %v1325 = vld [vmem:[%s495 + $0x2c] sm:$0xff]
        %v1326 = vld [vmem:[%s495 + $0x34] sm:$0xff]
        %v1327 = vld [vmem:[%s495 + $0x3c] sm:$0xff]
        %v1328 = vld [vmem:[%s495 + $0x44] sm:$0xff]
        %v1329 = vld [vmem:[%s495 + $0x4c] sm:$0xff]
        %v1330 = vld [vmem:[%s495 + $0x54] sm:$0xff]
        %s1331 = scalar_lea.vmem %s2, 40
        %v1332 = vld [vmem:[%s1331] sm:$0xff]
        %v1334 = vsel %vm529, %v1321, 0
        %v1337 = vsel %vm529, %v1322, 0
        %v1340 = vsel %vm529, %v1323, 0
        %v1343 = vsel %vm529, %v1324, 0
        %v1346 = vsel %vm529, %v1325, 0
        %v1349 = vsel %vm529, %v1326, 0
        %v1352 = vsel %vm529, %v1327, 0
        %v1355 = vsel %vm529, %v1328, 0
        %v1358 = vsel %vm529, %v1329, 0
        %v1361 = vsel %vm529, %v1330, 0
        %1363 = vmatprep.subr.mxu0 0.0
        %1364 = vmatpush1.msra.mxu0 0.0
        %1365 = vmatprep.subr.mxu0 0.0
        %1366 = vmatpush1.msra.mxu0 0.0
        %1367 = vmatprep.subr.mxu0 0.0
        %1368 = vmatpush1.msra.mxu0 0.0
        %1369 = vmatprep.subr.mxu0 0.0
        %1370 = vmatpush1.msra.mxu0 0.0
        %1371 = vmatprep.subr.mxu0 0.0
        %1372 = vmatpush1.msra.mxu0 0.0
        %1373 = vmatprep.subr.mxu0 0.0
        %1374 = vmatpush1.msra.mxu0 0.0
        %1375 = vmatprep.subr.mxu0 0.0
        %1376 = vmatpush1.msra.mxu0 0.0
        %1377 = vmatprep.subr.mxu0 0.0
        %1378 = vmatpush1.msra.mxu0 0.0
        %1379 = vmatprep.subr.mxu0 0.0
        %1380 = vmatpush1.msra.mxu0 0.0
        %1381 = vmatprep.subr.mxu0 0.0
        %1382 = vmatpush1.msra.mxu0 0.0
        %1383 = vmatprep.subr.mxu0 0.0
        %1384 = vmatpush1.msra.mxu0 0.0
        %1385 = vmatprep.subr.mxu0 0.0
        %1386 = vmatpush1.msra.mxu0 0.0
        %1387 = vmatprep.subr.mxu0 0.0
        %1388 = vmatpush1.msra.mxu0 0.0
        %1389 = vmatprep.subr.mxu0 0.0
        %1390 = vmatpush1.msra.mxu0 0.0
        %1391 = vmatprep.subr.mxu0 0.0
        %1392 = vmatpush1.msra.mxu0 0.0
        %1393 = vmatprep.subr.mxu0 0.0
        %1394 = vmatpush1.msra.mxu0 %v1332
        %1395 = vmatprep.subr.mxu0 0.0
        %1396 = vmatpush2.msra.mxu0 0.0
        %1397 = vmatprep.subr.mxu0 0.0
        %1398 = vmatpush2.msra.mxu0 0.0
        %1399 = vmatprep.subr.mxu0 0.0
        %1400 = vmatpush2.msra.mxu0 0.0
        %1401 = vmatprep.subr.mxu0 0.0
        %1402 = vmatpush2.msra.mxu0 0.0
        %1403 = vmatprep.subr.mxu0 0.0
        %1404 = vmatpush2.msra.mxu0 0.0
        %1405 = vmatprep.subr.mxu0 0.0
        %1406 = vmatpush2.msra.mxu0 0.0
        %1407 = vmatprep.subr.mxu0 0.0
        %1408 = vmatpush2.msra.mxu0 0.0
        %1409 = vmatprep.subr.mxu0 0.0
        %1410 = vmatpush2.msra.mxu0 0.0
        %1411 = vmatprep.subr.mxu0 0.0
        %1412 = vmatpush2.msra.mxu0 0.0
        %1413 = vmatprep.subr.mxu0 0.0
        %1414 = vmatpush2.msra.mxu0 0.0
        %1415 = vmatprep.subr.mxu0 0.0
        %1416 = vmatpush2.msra.mxu0 0.0
        %1417 = vmatprep.subr.mxu0 0.0
        %1418 = vmatpush2.msra.mxu0 0.0
        %1419 = vmatprep.subr.mxu0 0.0
        %1420 = vmatpush2.msra.mxu0 0.0
        %1421 = vmatprep.subr.mxu0 0.0
        %1422 = vmatpush2.msra.mxu0 0.0
        %1423 = vmatprep.subr.mxu0 0.0
        %1424 = vmatpush2.msra.mxu0 0.0
        %1425 = vmatprep.subr.mxu0 0.0
        %1426 = vmatpush2.msra.mxu0 0.0
        %1427 = vmatprep.mubr.f32.mxu0 0.0
        %1428 = vmatmul.mubr.f32.gmra.mxu0 %v1334
        %v1429 = vpop.f32.mrf.mxu0
        %v1430 = vadd.f32 0.0, %v1429
        %v1431 = vpop.f32.mrf.mxu0
        %1432 = vmatprep.mubr.f32.mxu0 0.0
        %1433 = vmatmul.mubr.f32.gmra.mxu0 %v1337
        %v1434 = vpop.f32.mrf.mxu0
        %v1435 = vadd.f32 0.0, %v1434
        %v1436 = vpop.f32.mrf.mxu0
        %1437 = vmatprep.mubr.f32.mxu0 0.0
        %1438 = vmatmul.mubr.f32.gmra.mxu0 %v1340
        %v1439 = vpop.f32.mrf.mxu0
        %v1440 = vadd.f32 0.0, %v1439
        %v1441 = vpop.f32.mrf.mxu0
        %1442 = vmatprep.mubr.f32.mxu0 0.0
        %1443 = vmatmul.mubr.f32.gmra.mxu0 %v1343
        %v1444 = vpop.f32.mrf.mxu0
        %v1445 = vadd.f32 0.0, %v1444
        %v1446 = vpop.f32.mrf.mxu0
        %1447 = vmatprep.mubr.f32.mxu0 0.0
        %1448 = vmatmul.mubr.f32.gmra.mxu0 %v1346
        %v1449 = vpop.f32.mrf.mxu0
        %v1450 = vadd.f32 0.0, %v1449
        %v1451 = vpop.f32.mrf.mxu0
        %1452 = vmatprep.mubr.f32.mxu0 0.0
        %1453 = vmatmul.mubr.f32.gmra.mxu0 %v1349
        %v1454 = vpop.f32.mrf.mxu0
        %v1455 = vadd.f32 0.0, %v1454
        %v1456 = vpop.f32.mrf.mxu0
        %1457 = vmatprep.mubr.f32.mxu0 0.0
        %1458 = vmatmul.mubr.f32.gmra.mxu0 %v1352
        %v1459 = vpop.f32.mrf.mxu0
        %v1460 = vadd.f32 0.0, %v1459
        %v1461 = vpop.f32.mrf.mxu0
        %1462 = vmatprep.mubr.f32.mxu0 0.0
        %1463 = vmatmul.mubr.f32.gmra.mxu0 %v1355
        %v1464 = vpop.f32.mrf.mxu0
        %v1465 = vadd.f32 0.0, %v1464
        %v1466 = vpop.f32.mrf.mxu0
        %1467 = vmatprep.mubr.f32.mxu0 0.0
        %1468 = vmatmul.mubr.f32.gmra.mxu0 %v1358
        %v1469 = vpop.f32.mrf.mxu0
        %v1470 = vadd.f32 0.0, %v1469
        %v1471 = vpop.f32.mrf.mxu0
        %1472 = vmatprep.mubr.f32.mxu0 0.0
        %1473 = vmatmul.mubr.f32.gmra.mxu0 %v1361
        %v1474 = vpop.f32.mrf.mxu0
        %v1475 = vadd.f32 0.0, %v1474
        %v1476 = vpop.f32.mrf.mxu0
        %1477 = vdwg.mxu0
        %v1478 = vadd.f32 %v1311, %v1430
        %v1479 = vadd.f32 %v1312, %v1435
        %v1480 = vadd.f32 %v1313, %v1440
        %v1481 = vadd.f32 %v1314, %v1445
        %v1482 = vadd.f32 %v1315, %v1450
        %v1483 = vadd.f32 %v1316, %v1455
        %v1484 = vadd.f32 %v1317, %v1460
        %v1485 = vadd.f32 %v1318, %v1465
        %v1486 = vadd.f32 %v1319, %v1470
        %v1487 = vadd.f32 %v1320, %v1475
        %v1488 = vld [vmem:[%s495 + $0x14] sm:$0xff]
        %v1489 = vld [vmem:[%s495 + $0x1c] sm:$0xff]
        %v1490 = vld [vmem:[%s495 + $0x24] sm:$0xff]
        %v1491 = vld [vmem:[%s495 + $0x2c] sm:$0xff]
        %v1492 = vld [vmem:[%s495 + $0x34] sm:$0xff]
        %v1493 = vld [vmem:[%s495 + $0x3c] sm:$0xff]
        %v1494 = vld [vmem:[%s495 + $0x44] sm:$0xff]
        %v1495 = vld [vmem:[%s495 + $0x4c] sm:$0xff]
        %v1496 = vld [vmem:[%s495 + $0x54] sm:$0xff]
        %v1497 = vld [vmem:[%s495 + $0x5c] sm:$0xff]
        %s1498 = scalar_lea.vmem %s2, 48
        %v1499 = vld [vmem:[%s1498] sm:$0xff]
        %v1501 = vsel %vm529, %v1488, 0
        %v1504 = vsel %vm529, %v1489, 0
        %v1507 = vsel %vm529, %v1490, 0
        %v1510 = vsel %vm529, %v1491, 0
        %v1513 = vsel %vm529, %v1492, 0
        %v1516 = vsel %vm529, %v1493, 0
        %v1519 = vsel %vm529, %v1494, 0
        %v1522 = vsel %vm529, %v1495, 0
        %v1525 = vsel %vm529, %v1496, 0
        %v1528 = vsel %vm529, %v1497, 0
        %1530 = vmatprep.subr.mxu0 0.0
        %1531 = vmatpush1.msra.mxu0 0.0
        %1532 = vmatprep.subr.mxu0 0.0
        %1533 = vmatpush1.msra.mxu0 0.0
        %1534 = vmatprep.subr.mxu0 0.0
        %1535 = vmatpush1.msra.mxu0 0.0
        %1536 = vmatprep.subr.mxu0 0.0
        %1537 = vmatpush1.msra.mxu0 0.0
        %1538 = vmatprep.subr.mxu0 0.0
        %1539 = vmatpush1.msra.mxu0 0.0
        %1540 = vmatprep.subr.mxu0 0.0
        %1541 = vmatpush1.msra.mxu0 0.0
        %1542 = vmatprep.subr.mxu0 0.0
        %1543 = vmatpush1.msra.mxu0 0.0
        %1544 = vmatprep.subr.mxu0 0.0
        %1545 = vmatpush1.msra.mxu0 0.0
        %1546 = vmatprep.subr.mxu0 0.0
        %1547 = vmatpush1.msra.mxu0 0.0
        %1548 = vmatprep.subr.mxu0 0.0
        %1549 = vmatpush1.msra.mxu0 0.0
        %1550 = vmatprep.subr.mxu0 0.0
        %1551 = vmatpush1.msra.mxu0 0.0
        %1552 = vmatprep.subr.mxu0 0.0
        %1553 = vmatpush1.msra.mxu0 0.0
        %1554 = vmatprep.subr.mxu0 0.0
        %1555 = vmatpush1.msra.mxu0 0.0
        %1556 = vmatprep.subr.mxu0 0.0
        %1557 = vmatpush1.msra.mxu0 0.0
        %1558 = vmatprep.subr.mxu0 0.0
        %1559 = vmatpush1.msra.mxu0 0.0
        %1560 = vmatprep.subr.mxu0 0.0
        %1561 = vmatpush1.msra.mxu0 %v1499
        %1562 = vmatprep.subr.mxu0 0.0
        %1563 = vmatpush2.msra.mxu0 0.0
        %1564 = vmatprep.subr.mxu0 0.0
        %1565 = vmatpush2.msra.mxu0 0.0
        %1566 = vmatprep.subr.mxu0 0.0
        %1567 = vmatpush2.msra.mxu0 0.0
        %1568 = vmatprep.subr.mxu0 0.0
        %1569 = vmatpush2.msra.mxu0 0.0
        %1570 = vmatprep.subr.mxu0 0.0
        %1571 = vmatpush2.msra.mxu0 0.0
        %1572 = vmatprep.subr.mxu0 0.0
        %1573 = vmatpush2.msra.mxu0 0.0
        %1574 = vmatprep.subr.mxu0 0.0
        %1575 = vmatpush2.msra.mxu0 0.0
        %1576 = vmatprep.subr.mxu0 0.0
        %1577 = vmatpush2.msra.mxu0 0.0
        %1578 = vmatprep.subr.mxu0 0.0
        %1579 = vmatpush2.msra.mxu0 0.0
        %1580 = vmatprep.subr.mxu0 0.0
        %1581 = vmatpush2.msra.mxu0 0.0
        %1582 = vmatprep.subr.mxu0 0.0
        %1583 = vmatpush2.msra.mxu0 0.0
        %1584 = vmatprep.subr.mxu0 0.0
        %1585 = vmatpush2.msra.mxu0 0.0
        %1586 = vmatprep.subr.mxu0 0.0
        %1587 = vmatpush2.msra.mxu0 0.0
        %1588 = vmatprep.subr.mxu0 0.0
        %1589 = vmatpush2.msra.mxu0 0.0
        %1590 = vmatprep.subr.mxu0 0.0
        %1591 = vmatpush2.msra.mxu0 0.0
        %1592 = vmatprep.subr.mxu0 0.0
        %1593 = vmatpush2.msra.mxu0 0.0
        %1594 = vmatprep.mubr.f32.mxu0 0.0
        %1595 = vmatmul.mubr.f32.gmra.mxu0 %v1501
        %v1596 = vpop.f32.mrf.mxu0
        %v1597 = vadd.f32 0.0, %v1596
        %v1598 = vpop.f32.mrf.mxu0
        %1599 = vmatprep.mubr.f32.mxu0 0.0
        %1600 = vmatmul.mubr.f32.gmra.mxu0 %v1504
        %v1601 = vpop.f32.mrf.mxu0
        %v1602 = vadd.f32 0.0, %v1601
        %v1603 = vpop.f32.mrf.mxu0
        %1604 = vmatprep.mubr.f32.mxu0 0.0
        %1605 = vmatmul.mubr.f32.gmra.mxu0 %v1507
        %v1606 = vpop.f32.mrf.mxu0
        %v1607 = vadd.f32 0.0, %v1606
        %v1608 = vpop.f32.mrf.mxu0
        %1609 = vmatprep.mubr.f32.mxu0 0.0
        %1610 = vmatmul.mubr.f32.gmra.mxu0 %v1510
        %v1611 = vpop.f32.mrf.mxu0
        %v1612 = vadd.f32 0.0, %v1611
        %v1613 = vpop.f32.mrf.mxu0
        %1614 = vmatprep.mubr.f32.mxu0 0.0
        %1615 = vmatmul.mubr.f32.gmra.mxu0 %v1513
        %v1616 = vpop.f32.mrf.mxu0
        %v1617 = vadd.f32 0.0, %v1616
        %v1618 = vpop.f32.mrf.mxu0
        %1619 = vmatprep.mubr.f32.mxu0 0.0
        %1620 = vmatmul.mubr.f32.gmra.mxu0 %v1516
        %v1621 = vpop.f32.mrf.mxu0
        %v1622 = vadd.f32 0.0, %v1621
        %v1623 = vpop.f32.mrf.mxu0
        %1624 = vmatprep.mubr.f32.mxu0 0.0
        %1625 = vmatmul.mubr.f32.gmra.mxu0 %v1519
        %v1626 = vpop.f32.mrf.mxu0
        %v1627 = vadd.f32 0.0, %v1626
        %v1628 = vpop.f32.mrf.mxu0
        %1629 = vmatprep.mubr.f32.mxu0 0.0
        %1630 = vmatmul.mubr.f32.gmra.mxu0 %v1522
        %v1631 = vpop.f32.mrf.mxu0
        %v1632 = vadd.f32 0.0, %v1631
        %v1633 = vpop.f32.mrf.mxu0
        %1634 = vmatprep.mubr.f32.mxu0 0.0
        %1635 = vmatmul.mubr.f32.gmra.mxu0 %v1525
        %v1636 = vpop.f32.mrf.mxu0
        %v1637 = vadd.f32 0.0, %v1636
        %v1638 = vpop.f32.mrf.mxu0
        %1639 = vmatprep.mubr.f32.mxu0 0.0
        %1640 = vmatmul.mubr.f32.gmra.mxu0 %v1528
        %v1641 = vpop.f32.mrf.mxu0
        %v1642 = vadd.f32 0.0, %v1641
        %v1643 = vpop.f32.mrf.mxu0
        %1644 = vdwg.mxu0
        %v1645 = vadd.f32 %v1478, %v1597
        %v1646 = vadd.f32 %v1479, %v1602
        %v1647 = vadd.f32 %v1480, %v1607
        %v1648 = vadd.f32 %v1481, %v1612
        %v1649 = vadd.f32 %v1482, %v1617
        %v1650 = vadd.f32 %v1483, %v1622
        %v1651 = vadd.f32 %v1484, %v1627
        %v1652 = vadd.f32 %v1485, %v1632
        %v1653 = vadd.f32 %v1486, %v1637
        %v1654 = vadd.f32 %v1487, %v1642
        %v1655 = vld [vmem:[%s495 + $0x15] sm:$0xff]
        %v1656 = vld [vmem:[%s495 + $0x1d] sm:$0xff]
        %v1657 = vld [vmem:[%s495 + $0x25] sm:$0xff]
        %v1658 = vld [vmem:[%s495 + $0x2d] sm:$0xff]
        %v1659 = vld [vmem:[%s495 + $0x35] sm:$0xff]
        %v1660 = vld [vmem:[%s495 + $0x3d] sm:$0xff]
        %v1661 = vld [vmem:[%s495 + $0x45] sm:$0xff]
        %v1662 = vld [vmem:[%s495 + $0x4d] sm:$0xff]
        %v1663 = vld [vmem:[%s495 + $0x55] sm:$0xff]
        %v1664 = vld [vmem:[%s495 + $0x5d] sm:$0xff]
        %s1665 = scalar_lea.vmem %s2, 56
        %v1666 = vld [vmem:[%s1665] sm:$0xff]
        %v1668 = vsel %vm529, %v1655, 0
        %v1671 = vsel %vm529, %v1656, 0
        %v1674 = vsel %vm529, %v1657, 0
        %v1677 = vsel %vm529, %v1658, 0
        %v1680 = vsel %vm529, %v1659, 0
        %v1683 = vsel %vm529, %v1660, 0
        %v1686 = vsel %vm529, %v1661, 0
        %v1689 = vsel %vm529, %v1662, 0
        %v1692 = vsel %vm529, %v1663, 0
        %v1695 = vsel %vm529, %v1664, 0
        %1697 = vmatprep.subr.mxu0 0.0
        %1698 = vmatpush1.msra.mxu0 0.0
        %1699 = vmatprep.subr.mxu0 0.0
        %1700 = vmatpush1.msra.mxu0 0.0
        %1701 = vmatprep.subr.mxu0 0.0
        %1702 = vmatpush1.msra.mxu0 0.0
        %1703 = vmatprep.subr.mxu0 0.0
        %1704 = vmatpush1.msra.mxu0 0.0
        %1705 = vmatprep.subr.mxu0 0.0
        %1706 = vmatpush1.msra.mxu0 0.0
        %1707 = vmatprep.subr.mxu0 0.0
        %1708 = vmatpush1.msra.mxu0 0.0
        %1709 = vmatprep.subr.mxu0 0.0
        %1710 = vmatpush1.msra.mxu0 0.0
        %1711 = vmatprep.subr.mxu0 0.0
        %1712 = vmatpush1.msra.mxu0 0.0
        %1713 = vmatprep.subr.mxu0 0.0
        %1714 = vmatpush1.msra.mxu0 0.0
        %1715 = vmatprep.subr.mxu0 0.0
        %1716 = vmatpush1.msra.mxu0 0.0
        %1717 = vmatprep.subr.mxu0 0.0
        %1718 = vmatpush1.msra.mxu0 0.0
        %1719 = vmatprep.subr.mxu0 0.0
        %1720 = vmatpush1.msra.mxu0 0.0
        %1721 = vmatprep.subr.mxu0 0.0
        %1722 = vmatpush1.msra.mxu0 0.0
        %1723 = vmatprep.subr.mxu0 0.0
        %1724 = vmatpush1.msra.mxu0 0.0
        %1725 = vmatprep.subr.mxu0 0.0
        %1726 = vmatpush1.msra.mxu0 0.0
        %1727 = vmatprep.subr.mxu0 0.0
        %1728 = vmatpush1.msra.mxu0 %v1666
        %1729 = vmatprep.subr.mxu0 0.0
        %1730 = vmatpush2.msra.mxu0 0.0
        %1731 = vmatprep.subr.mxu0 0.0
        %1732 = vmatpush2.msra.mxu0 0.0
        %1733 = vmatprep.subr.mxu0 0.0
        %1734 = vmatpush2.msra.mxu0 0.0
        %1735 = vmatprep.subr.mxu0 0.0
        %1736 = vmatpush2.msra.mxu0 0.0
        %1737 = vmatprep.subr.mxu0 0.0
        %1738 = vmatpush2.msra.mxu0 0.0
        %1739 = vmatprep.subr.mxu0 0.0
        %1740 = vmatpush2.msra.mxu0 0.0
        %1741 = vmatprep.subr.mxu0 0.0
        %1742 = vmatpush2.msra.mxu0 0.0
        %1743 = vmatprep.subr.mxu0 0.0
        %1744 = vmatpush2.msra.mxu0 0.0
        %1745 = vmatprep.subr.mxu0 0.0
        %1746 = vmatpush2.msra.mxu0 0.0
        %1747 = vmatprep.subr.mxu0 0.0
        %1748 = vmatpush2.msra.mxu0 0.0
        %1749 = vmatprep.subr.mxu0 0.0
        %1750 = vmatpush2.msra.mxu0 0.0
        %1751 = vmatprep.subr.mxu0 0.0
        %1752 = vmatpush2.msra.mxu0 0.0
        %1753 = vmatprep.subr.mxu0 0.0
        %1754 = vmatpush2.msra.mxu0 0.0
        %1755 = vmatprep.subr.mxu0 0.0
        %1756 = vmatpush2.msra.mxu0 0.0
        %1757 = vmatprep.subr.mxu0 0.0
        %1758 = vmatpush2.msra.mxu0 0.0
        %1759 = vmatprep.subr.mxu0 0.0
        %1760 = vmatpush2.msra.mxu0 0.0
        %1761 = vmatprep.mubr.f32.mxu0 0.0
        %1762 = vmatmul.mubr.f32.gmra.mxu0 %v1668
        %v1763 = vpop.f32.mrf.mxu0
        %v1764 = vadd.f32 0.0, %v1763
        %v1765 = vpop.f32.mrf.mxu0
        %1766 = vmatprep.mubr.f32.mxu0 0.0
        %1767 = vmatmul.mubr.f32.gmra.mxu0 %v1671
        %v1768 = vpop.f32.mrf.mxu0
        %v1769 = vadd.f32 0.0, %v1768
        %v1770 = vpop.f32.mrf.mxu0
        %1771 = vmatprep.mubr.f32.mxu0 0.0
        %1772 = vmatmul.mubr.f32.gmra.mxu0 %v1674
        %v1773 = vpop.f32.mrf.mxu0
        %v1774 = vadd.f32 0.0, %v1773
        %v1775 = vpop.f32.mrf.mxu0
        %1776 = vmatprep.mubr.f32.mxu0 0.0
        %1777 = vmatmul.mubr.f32.gmra.mxu0 %v1677
        %v1778 = vpop.f32.mrf.mxu0
        %v1779 = vadd.f32 0.0, %v1778
        %v1780 = vpop.f32.mrf.mxu0
        %1781 = vmatprep.mubr.f32.mxu0 0.0
        %1782 = vmatmul.mubr.f32.gmra.mxu0 %v1680
        %v1783 = vpop.f32.mrf.mxu0
        %v1784 = vadd.f32 0.0, %v1783
        %v1785 = vpop.f32.mrf.mxu0
        %1786 = vmatprep.mubr.f32.mxu0 0.0
        %1787 = vmatmul.mubr.f32.gmra.mxu0 %v1683
        %v1788 = vpop.f32.mrf.mxu0
        %v1789 = vadd.f32 0.0, %v1788
        %v1790 = vpop.f32.mrf.mxu0
        %1791 = vmatprep.mubr.f32.mxu0 0.0
        %1792 = vmatmul.mubr.f32.gmra.mxu0 %v1686
        %v1793 = vpop.f32.mrf.mxu0
        %v1794 = vadd.f32 0.0, %v1793
        %v1795 = vpop.f32.mrf.mxu0
        %1796 = vmatprep.mubr.f32.mxu0 0.0
        %1797 = vmatmul.mubr.f32.gmra.mxu0 %v1689
        %v1798 = vpop.f32.mrf.mxu0
        %v1799 = vadd.f32 0.0, %v1798
        %v1800 = vpop.f32.mrf.mxu0
        %1801 = vmatprep.mubr.f32.mxu0 0.0
        %1802 = vmatmul.mubr.f32.gmra.mxu0 %v1692
        %v1803 = vpop.f32.mrf.mxu0
        %v1804 = vadd.f32 0.0, %v1803
        %v1805 = vpop.f32.mrf.mxu0
        %1806 = vmatprep.mubr.f32.mxu0 0.0
        %1807 = vmatmul.mubr.f32.gmra.mxu0 %v1695
        %v1808 = vpop.f32.mrf.mxu0
        %v1809 = vadd.f32 0.0, %v1808
        %v1810 = vpop.f32.mrf.mxu0
        %1811 = vdwg.mxu0
        %v1812 = vadd.f32 %v1645, %v1764
        %v1813 = vadd.f32 %v1646, %v1769
        %v1814 = vadd.f32 %v1647, %v1774
        %v1815 = vadd.f32 %v1648, %v1779
        %v1816 = vadd.f32 %v1649, %v1784
        %v1817 = vadd.f32 %v1650, %v1789
        %v1818 = vadd.f32 %v1651, %v1794
        %v1819 = vadd.f32 %v1652, %v1799
        %v1820 = vadd.f32 %v1653, %v1804
        %v1821 = vadd.f32 %v1654, %v1809
        %v1822 = vld [vmem:[%s495 + $0x16] sm:$0xff]
        %v1823 = vld [vmem:[%s495 + $0x1e] sm:$0xff]
        %v1824 = vld [vmem:[%s495 + $0x26] sm:$0xff]
        %v1825 = vld [vmem:[%s495 + $0x2e] sm:$0xff]
        %v1826 = vld [vmem:[%s495 + $0x36] sm:$0xff]
        %v1827 = vld [vmem:[%s495 + $0x3e] sm:$0xff]
        %v1828 = vld [vmem:[%s495 + $0x46] sm:$0xff]
        %v1829 = vld [vmem:[%s495 + $0x4e] sm:$0xff]
        %v1830 = vld [vmem:[%s495 + $0x56] sm:$0xff]
        %v1831 = vld [vmem:[%s495 + $0x5e] sm:$0xff]
        %s1832 = scalar_lea.vmem %s2, 64
        %v1833 = vld [vmem:[%s1832] sm:$0xff]
        %v1835 = vsel %vm529, %v1822, 0
        %v1838 = vsel %vm529, %v1823, 0
        %v1841 = vsel %vm529, %v1824, 0
        %v1844 = vsel %vm529, %v1825, 0
        %v1847 = vsel %vm529, %v1826, 0
        %v1850 = vsel %vm529, %v1827, 0
        %v1853 = vsel %vm529, %v1828, 0
        %v1856 = vsel %vm529, %v1829, 0
        %v1859 = vsel %vm529, %v1830, 0
        %v1862 = vsel %vm529, %v1831, 0
        %1864 = vmatprep.subr.mxu0 0.0
        %1865 = vmatpush1.msra.mxu0 0.0
        %1866 = vmatprep.subr.mxu0 0.0
        %1867 = vmatpush1.msra.mxu0 0.0
        %1868 = vmatprep.subr.mxu0 0.0
        %1869 = vmatpush1.msra.mxu0 0.0
        %1870 = vmatprep.subr.mxu0 0.0
        %1871 = vmatpush1.msra.mxu0 0.0
        %1872 = vmatprep.subr.mxu0 0.0
        %1873 = vmatpush1.msra.mxu0 0.0
        %1874 = vmatprep.subr.mxu0 0.0
        %1875 = vmatpush1.msra.mxu0 0.0
        %1876 = vmatprep.subr.mxu0 0.0
        %1877 = vmatpush1.msra.mxu0 0.0
        %1878 = vmatprep.subr.mxu0 0.0
        %1879 = vmatpush1.msra.mxu0 0.0
        %1880 = vmatprep.subr.mxu0 0.0
        %1881 = vmatpush1.msra.mxu0 0.0
        %1882 = vmatprep.subr.mxu0 0.0
        %1883 = vmatpush1.msra.mxu0 0.0
        %1884 = vmatprep.subr.mxu0 0.0
        %1885 = vmatpush1.msra.mxu0 0.0
        %1886 = vmatprep.subr.mxu0 0.0
        %1887 = vmatpush1.msra.mxu0 0.0
        %1888 = vmatprep.subr.mxu0 0.0
        %1889 = vmatpush1.msra.mxu0 0.0
        %1890 = vmatprep.subr.mxu0 0.0
        %1891 = vmatpush1.msra.mxu0 0.0
        %1892 = vmatprep.subr.mxu0 0.0
        %1893 = vmatpush1.msra.mxu0 0.0
        %1894 = vmatprep.subr.mxu0 0.0
        %1895 = vmatpush1.msra.mxu0 %v1833
        %1896 = vmatprep.subr.mxu0 0.0
        %1897 = vmatpush2.msra.mxu0 0.0
        %1898 = vmatprep.subr.mxu0 0.0
        %1899 = vmatpush2.msra.mxu0 0.0
        %1900 = vmatprep.subr.mxu0 0.0
        %1901 = vmatpush2.msra.mxu0 0.0
        %1902 = vmatprep.subr.mxu0 0.0
        %1903 = vmatpush2.msra.mxu0 0.0
        %1904 = vmatprep.subr.mxu0 0.0
        %1905 = vmatpush2.msra.mxu0 0.0
        %1906 = vmatprep.subr.mxu0 0.0
        %1907 = vmatpush2.msra.mxu0 0.0
        %1908 = vmatprep.subr.mxu0 0.0
        %1909 = vmatpush2.msra.mxu0 0.0
        %1910 = vmatprep.subr.mxu0 0.0
        %1911 = vmatpush2.msra.mxu0 0.0
        %1912 = vmatprep.subr.mxu0 0.0
        %1913 = vmatpush2.msra.mxu0 0.0
        %1914 = vmatprep.subr.mxu0 0.0
        %1915 = vmatpush2.msra.mxu0 0.0
        %1916 = vmatprep.subr.mxu0 0.0
        %1917 = vmatpush2.msra.mxu0 0.0
        %1918 = vmatprep.subr.mxu0 0.0
        %1919 = vmatpush2.msra.mxu0 0.0
        %1920 = vmatprep.subr.mxu0 0.0
        %1921 = vmatpush2.msra.mxu0 0.0
        %1922 = vmatprep.subr.mxu0 0.0
        %1923 = vmatpush2.msra.mxu0 0.0
        %1924 = vmatprep.subr.mxu0 0.0
        %1925 = vmatpush2.msra.mxu0 0.0
        %1926 = vmatprep.subr.mxu0 0.0
        %1927 = vmatpush2.msra.mxu0 0.0
        %1928 = vmatprep.mubr.f32.mxu0 0.0
        %1929 = vmatmul.mubr.f32.gmra.mxu0 %v1835
        %v1930 = vpop.f32.mrf.mxu0
        %v1931 = vadd.f32 0.0, %v1930
        %v1932 = vpop.f32.mrf.mxu0
        %1933 = vmatprep.mubr.f32.mxu0 0.0
        %1934 = vmatmul.mubr.f32.gmra.mxu0 %v1838
        %v1935 = vpop.f32.mrf.mxu0
        %v1936 = vadd.f32 0.0, %v1935
        %v1937 = vpop.f32.mrf.mxu0
        %1938 = vmatprep.mubr.f32.mxu0 0.0
        %1939 = vmatmul.mubr.f32.gmra.mxu0 %v1841
        %v1940 = vpop.f32.mrf.mxu0
        %v1941 = vadd.f32 0.0, %v1940
        %v1942 = vpop.f32.mrf.mxu0
        %1943 = vmatprep.mubr.f32.mxu0 0.0
        %1944 = vmatmul.mubr.f32.gmra.mxu0 %v1844
        %v1945 = vpop.f32.mrf.mxu0
        %v1946 = vadd.f32 0.0, %v1945
        %v1947 = vpop.f32.mrf.mxu0
        %1948 = vmatprep.mubr.f32.mxu0 0.0
        %1949 = vmatmul.mubr.f32.gmra.mxu0 %v1847
        %v1950 = vpop.f32.mrf.mxu0
        %v1951 = vadd.f32 0.0, %v1950
        %v1952 = vpop.f32.mrf.mxu0
        %1953 = vmatprep.mubr.f32.mxu0 0.0
        %1954 = vmatmul.mubr.f32.gmra.mxu0 %v1850
        %v1955 = vpop.f32.mrf.mxu0
        %v1956 = vadd.f32 0.0, %v1955
        %v1957 = vpop.f32.mrf.mxu0
        %1958 = vmatprep.mubr.f32.mxu0 0.0
        %1959 = vmatmul.mubr.f32.gmra.mxu0 %v1853
        %v1960 = vpop.f32.mrf.mxu0
        %v1961 = vadd.f32 0.0, %v1960
        %v1962 = vpop.f32.mrf.mxu0
        %1963 = vmatprep.mubr.f32.mxu0 0.0
        %1964 = vmatmul.mubr.f32.gmra.mxu0 %v1856
        %v1965 = vpop.f32.mrf.mxu0
        %v1966 = vadd.f32 0.0, %v1965
        %v1967 = vpop.f32.mrf.mxu0
        %1968 = vmatprep.mubr.f32.mxu0 0.0
        %1969 = vmatmul.mubr.f32.gmra.mxu0 %v1859
        %v1970 = vpop.f32.mrf.mxu0
        %v1971 = vadd.f32 0.0, %v1970
        %v1972 = vpop.f32.mrf.mxu0
        %1973 = vmatprep.mubr.f32.mxu0 0.0
        %1974 = vmatmul.mubr.f32.gmra.mxu0 %v1862
        %v1975 = vpop.f32.mrf.mxu0
        %v1976 = vadd.f32 0.0, %v1975
        %v1977 = vpop.f32.mrf.mxu0
        %1978 = vdwg.mxu0
        %v1979 = vadd.f32 %v1812, %v1931
        %v1980 = vadd.f32 %v1813, %v1936
        %v1981 = vadd.f32 %v1814, %v1941
        %v1982 = vadd.f32 %v1815, %v1946
        %v1983 = vadd.f32 %v1816, %v1951
        %v1984 = vadd.f32 %v1817, %v1956
        %v1985 = vadd.f32 %v1818, %v1961
        %v1986 = vadd.f32 %v1819, %v1966
        %v1987 = vadd.f32 %v1820, %v1971
        %v1988 = vadd.f32 %v1821, %v1976
        %v1989 = vld [vmem:[%s3] sm:$0x1]
        %v1991 = vlaneseq
        %v1992 = vshrl.u32 %v1991, 7
        %v1993 = vsub.s32 0, %v1992
        %v1994 = vrot.slane %v1989, %v1993
        %v1996 = vadd.f32 %v1979, %v1994
        %v1997 = vadd.f32 %v1980, %v1994
        %v1998 = vadd.f32 %v1981, %v1994
        %v1999 = vadd.f32 %v1982, %v1994
        %v2000 = vadd.f32 %v1983, %v1994
        %v2001 = vadd.f32 %v1984, %v1994
        %v2002 = vadd.f32 %v1985, %v1994
        %v2003 = vadd.f32 %v1986, %v1994
        %v2004 = vadd.f32 %v1987, %v1994
        %v2005 = vadd.f32 %v1988, %v1994
        %2007 = vset.pattern.permute.xlu0 0
        %2008 = vperm.xlu0 %2007, %v496
        %v2009 = vpop.permute.xlu0 %2008
        %2012 = vset.pattern.permute.xlu0 0
        %2013 = vperm.xlu0 %2012, %v497
        %v2014 = vpop.permute.xlu0 %2013
        %2017 = vset.pattern.permute.xlu0 0
        %2018 = vperm.xlu0 %2017, %v498
        %v2019 = vpop.permute.xlu0 %2018
        %2022 = vset.pattern.permute.xlu0 0
        %2023 = vperm.xlu0 %2022, %v499
        %v2024 = vpop.permute.xlu0 %2023
        %2027 = vset.pattern.permute.xlu0 0
        %2028 = vperm.xlu0 %2027, %v500
        %v2029 = vpop.permute.xlu0 %2028
        %2032 = vset.pattern.permute.xlu0 0
        %2033 = vperm.xlu0 %2032, %v501
        %v2034 = vpop.permute.xlu0 %2033
        %2037 = vset.pattern.permute.xlu0 0
        %2038 = vperm.xlu0 %2037, %v502
        %v2039 = vpop.permute.xlu0 %2038
        %2042 = vset.pattern.permute.xlu0 0
        %2043 = vperm.xlu0 %2042, %v503
        %v2044 = vpop.permute.xlu0 %2043
        %2047 = vset.pattern.permute.xlu0 0
        %2048 = vperm.xlu0 %2047, %v504
        %v2049 = vpop.permute.xlu0 %2048
        %2052 = vset.pattern.permute.xlu0 0
        %2053 = vperm.xlu0 %2052, %v505
        %v2054 = vpop.permute.xlu0 %2053
        %v2056 = vmul.f32 %v1996, %v2009
        %v2057 = vmul.f32 %v1997, %v2014
        %v2058 = vmul.f32 %v1998, %v2019
        %v2059 = vmul.f32 %v1999, %v2024
        %v2060 = vmul.f32 %v2000, %v2029
        %v2061 = vmul.f32 %v2001, %v2034
        %v2062 = vmul.f32 %v2002, %v2039
        %v2063 = vmul.f32 %v2003, %v2044
        %v2064 = vmul.f32 %v2004, %v2049
        %v2065 = vmul.f32 %v2005, %v2054
        %v2066 = vadd.f32 %v2056, %v2057
        %v2067 = vadd.f32 %v2066, %v2058
        %v2068 = vadd.f32 %v2067, %v2059
        %v2069 = vadd.f32 %v2068, %v2060
        %v2070 = vadd.f32 %v2069, %v2061
        %v2071 = vadd.f32 %v2070, %v2062
        %v2072 = vadd.f32 %v2071, %v2063
        %v2073 = vadd.f32 %v2072, %v2064
        %v2074 = vadd.f32 %v2073, %v2065
        %2075 = vadd.xlane.f32.xlu0 %v2074
        %v2076 = vpop.xlane.xlu0 %2075
        %v2077 = vrot.slane %v2076, 4
        %v2078 = vadd.f32 %v2076, %v2077
        %v2079 = vrot.slane %v2078, 2
        %v2080 = vadd.f32 %v2078, %v2079
        %v2081 = vrot.slane %v2080, 1
        %v2082 = vadd.f32 %v2080, %v2081
        %s2083 = vtos %v2082
        %v2084 = vrcp.pop 512.0
        %s2085 = vtos %v2084
        %s2086 = smul.f32 %s2083, %s2085
        %v2087 = vmul.f32 %v2056, %v2056
        %v2088 = vmul.f32 %v2057, %v2057
        %v2089 = vmul.f32 %v2058, %v2058
        %v2090 = vmul.f32 %v2059, %v2059
        %v2091 = vmul.f32 %v2060, %v2060
        %v2092 = vmul.f32 %v2061, %v2061
        %v2093 = vmul.f32 %v2062, %v2062
        %v2094 = vmul.f32 %v2063, %v2063
        %v2095 = vmul.f32 %v2064, %v2064
        %v2096 = vmul.f32 %v2065, %v2065
        %v2097 = vadd.f32 %v2087, %v2088
        %v2098 = vadd.f32 %v2097, %v2089
        %v2099 = vadd.f32 %v2098, %v2090
        %v2100 = vadd.f32 %v2099, %v2091
        %v2101 = vadd.f32 %v2100, %v2092
        %v2102 = vadd.f32 %v2101, %v2093
        %v2103 = vadd.f32 %v2102, %v2094
        %v2104 = vadd.f32 %v2103, %v2095
        %v2105 = vadd.f32 %v2104, %v2096
        %2106 = vadd.xlane.f32.xlu0 %v2105
        %v2107 = vpop.xlane.xlu0 %2106
        %v2108 = vrot.slane %v2107, 4
        %v2109 = vadd.f32 %v2107, %v2108
        %v2110 = vrot.slane %v2109, 2
        %v2111 = vadd.f32 %v2109, %v2110
        %v2112 = vrot.slane %v2111, 1
        %v2113 = vadd.f32 %v2111, %v2112
        %s2114 = vtos %v2113
        %v2115 = vrcp.pop 512.0
        %s2116 = vtos %v2115
        %s2117 = smul.f32 %s2114, %s2116
        %s2118 = smul.f32 %s2086, %s2086
        %s2119 = ssub.f32 %s2117, %s2118
        %s2120 = smax.f32 %s2119, 0.0
        %v2121 = vld [vmem:[%s4] sm:$0x1]
        %s2122 = sadd.f32 %s2120, 1e-05
        %v2123 = vstv %s2122
        %v2124 = vrsqrt.pop %v2123
        %s2125 = vtos %v2124
        %v2126 = vstv %s2125
        %v2127 = vmul.f32 %v2121, %v2126
        %v2128 = vld [vmem:[%s5] sm:$0x1]
        %v2129 = vstv %s2086
        %v2130 = vmul.f32 %v2129, %v2127
        %v2131 = vsub.f32 %v2128, %v2130
        %v2133 = vlaneseq
        %v2134 = vshrl.u32 %v2133, 7
        %v2135 = vsub.s32 0, %v2134
        %v2136 = vrot.slane %v2127, %v2135
        %v2138 = vmul.f32 %v1996, %v2136
        %v2139 = vmul.f32 %v1997, %v2136
        %v2140 = vmul.f32 %v1998, %v2136
        %v2141 = vmul.f32 %v1999, %v2136
        %v2142 = vmul.f32 %v2000, %v2136
        %v2143 = vmul.f32 %v2001, %v2136
        %v2144 = vmul.f32 %v2002, %v2136
        %v2145 = vmul.f32 %v2003, %v2136
        %v2146 = vmul.f32 %v2004, %v2136
        %v2147 = vmul.f32 %v2005, %v2136
        %v2149 = vlaneseq
        %v2150 = vshrl.u32 %v2149, 7
        %v2151 = vsub.s32 0, %v2150
        %v2152 = vrot.slane %v2131, %v2151
        %v2154 = vadd.f32 %v2138, %v2152
        %v2155 = vadd.f32 %v2139, %v2152
        %v2156 = vadd.f32 %v2140, %v2152
        %v2157 = vadd.f32 %v2141, %v2152
        %v2158 = vadd.f32 %v2142, %v2152
        %v2159 = vadd.f32 %v2143, %v2152
        %v2160 = vadd.f32 %v2144, %v2152
        %v2161 = vadd.f32 %v2145, %v2152
        %v2162 = vadd.f32 %v2146, %v2152
        %v2163 = vadd.f32 %v2147, %v2152
        %v2164 = vmul.f32 %v2154, %v2009
        %v2165 = vmul.f32 %v2155, %v2014
        %v2166 = vmul.f32 %v2156, %v2019
        %v2167 = vmul.f32 %v2157, %v2024
        %v2168 = vmul.f32 %v2158, %v2029
        %v2169 = vmul.f32 %v2159, %v2034
        %v2170 = vmul.f32 %v2160, %v2039
        %v2171 = vmul.f32 %v2161, %v2044
        %v2172 = vmul.f32 %v2162, %v2049
        %v2173 = vmul.f32 %v2163, %v2054
        %2174 = vst [vmem:[#allocation2] sm:$0xff] 0.0
        %2175 = vst [vmem:[#allocation2 + $0x8] sm:$0xff] 0.0
        %2176 = vst [vmem:[#allocation2 + $0x10] sm:$0xff] 0.0
        %2177 = vst [vmem:[#allocation2 + $0x18] sm:$0xff] 0.0
        %2178 = vst [vmem:[#allocation2 + $0x20] sm:$0xff] 0.0
        %2179 = vst [vmem:[#allocation2 + $0x28] sm:$0xff] 0.0
        %2180 = vst [vmem:[#allocation2 + $0x30] sm:$0xff] 0.0
        %2181 = vst [vmem:[#allocation2 + $0x38] sm:$0xff] 0.0
        %2182 = vst [vmem:[#allocation2 + $0x40] sm:$0xff] 0.0
        %2183 = vst [vmem:[#allocation2 + $0x48] sm:$0xff] 0.0
        %2184 = vst [vmem:[#allocation2 + $0x50] sm:$0xff] 0.0
        %2185 = vst [vmem:[#allocation2 + $0x58] sm:$0xff] 0.0
        %2186 = vst [vmem:[#allocation2 + $0x60] sm:$0xff] 0.0
        %2187 = vst [vmem:[#allocation2 + $0xb] sm:$0xff] %v2164
        %2188 = vst [vmem:[#allocation2 + $0x13] sm:$0xff] %v2165
        %2189 = vst [vmem:[#allocation2 + $0x1b] sm:$0xff] %v2166
        %2190 = vst [vmem:[#allocation2 + $0x23] sm:$0xff] %v2167
        %2191 = vst [vmem:[#allocation2 + $0x2b] sm:$0xff] %v2168
        %2192 = vst [vmem:[#allocation2 + $0x33] sm:$0xff] %v2169
        %2193 = vst [vmem:[#allocation2 + $0x3b] sm:$0xff] %v2170
        %2194 = vst [vmem:[#allocation2 + $0x43] sm:$0xff] %v2171
        %2195 = vst [vmem:[#allocation2 + $0x4b] sm:$0xff] %v2172
        %2196 = vst [vmem:[#allocation2 + $0x53] sm:$0xff] %v2173
        %v2197 = vld [vmem:[#allocation2] sm:$0xff]
        %v2198 = vld [vmem:[#allocation2 + $0x8] sm:$0xff]
        %v2199 = vld [vmem:[#allocation2 + $0x10] sm:$0xff]
        %v2200 = vld [vmem:[#allocation2 + $0x18] sm:$0xff]
        %v2201 = vld [vmem:[#allocation2 + $0x20] sm:$0xff]
        %v2202 = vld [vmem:[#allocation2 + $0x28] sm:$0xff]
        %v2203 = vld [vmem:[#allocation2 + $0x30] sm:$0xff]
        %v2204 = vld [vmem:[#allocation2 + $0x38] sm:$0xff]
        %v2205 = vld [vmem:[#allocation2 + $0x40] sm:$0xff]
        %v2206 = vld [vmem:[#allocation2 + $0x48] sm:$0xff]
        %v2207 = vld [vmem:[#allocation4] sm:$0xff]
        %v2208 = vld [vmem:[#allocation4 + $0x8] sm:$0xff]
        %v2209 = vld [vmem:[#allocation4 + $0x10] sm:$0xff]
        %v2210 = vld [vmem:[#allocation4 + $0x18] sm:$0xff]
        %v2211 = vld [vmem:[#allocation4 + $0x20] sm:$0xff]
        %v2212 = vld [vmem:[#allocation4 + $0x28] sm:$0xff]
        %v2213 = vld [vmem:[#allocation4 + $0x30] sm:$0xff]
        %v2214 = vld [vmem:[#allocation4 + $0x38] sm:$0xff]
        %v2215 = vld [vmem:[#allocation4 + $0x40] sm:$0xff]
        %v2216 = vld [vmem:[#allocation4 + $0x48] sm:$0xff]
        %v2217 = vld [vmem:[#allocation4 + $0x50] sm:$0xff]
        %v2218 = vld [vmem:[#allocation4 + $0x58] sm:$0xff]
        %v2219 = vld [vmem:[#allocation4 + $0x60] sm:$0xff]
        %v2220 = vld [vmem:[#allocation4 + $0x68] sm:$0xff]
        %v2221 = vld [vmem:[#allocation4 + $0x70] sm:$0xff]
        %v2222 = vld [vmem:[#allocation4 + $0x78] sm:$0xff]
        %v2223 = vld [vmem:[#allocation2 + $0x1] sm:$0xff]
        %v2224 = vld [vmem:[#allocation2 + $0x9] sm:$0xff]
        %v2225 = vld [vmem:[#allocation2 + $0x11] sm:$0xff]
        %v2226 = vld [vmem:[#allocation2 + $0x19] sm:$0xff]
        %v2227 = vld [vmem:[#allocation2 + $0x21] sm:$0xff]
        %v2228 = vld [vmem:[#allocation2 + $0x29] sm:$0xff]
        %v2229 = vld [vmem:[#allocation2 + $0x31] sm:$0xff]
        %v2230 = vld [vmem:[#allocation2 + $0x39] sm:$0xff]
        %v2231 = vld [vmem:[#allocation2 + $0x41] sm:$0xff]
        %v2232 = vld [vmem:[#allocation2 + $0x49] sm:$0xff]
        %s2233 = scalar_lea.vmem [#allocation4], 128
        %v2234 = vld [vmem:[%s2233] sm:$0xff]
        %v2235 = vld [vmem:[%s2233 + $0x8] sm:$0xff]
        %v2236 = vld [vmem:[%s2233 + $0x10] sm:$0xff]
        %v2237 = vld [vmem:[%s2233 + $0x18] sm:$0xff]
        %v2238 = vld [vmem:[%s2233 + $0x20] sm:$0xff]
        %v2239 = vld [vmem:[%s2233 + $0x28] sm:$0xff]
        %v2240 = vld [vmem:[%s2233 + $0x30] sm:$0xff]
        %v2241 = vld [vmem:[%s2233 + $0x38] sm:$0xff]
        %v2242 = vld [vmem:[%s2233 + $0x40] sm:$0xff]
        %v2243 = vld [vmem:[%s2233 + $0x48] sm:$0xff]
        %v2244 = vld [vmem:[%s2233 + $0x50] sm:$0xff]
        %v2245 = vld [vmem:[%s2233 + $0x58] sm:$0xff]
        %v2246 = vld [vmem:[%s2233 + $0x60] sm:$0xff]
        %v2247 = vld [vmem:[%s2233 + $0x68] sm:$0xff]
        %v2248 = vld [vmem:[%s2233 + $0x70] sm:$0xff]
        %v2249 = vld [vmem:[%s2233 + $0x78] sm:$0xff]
        %2250 = vmatprep.subr.mxu0 0.0
        %2251 = vmatpush1.msra.mxu0 %v2249
        %2252 = vmatprep.subr.mxu0 0.0
        %2253 = vmatpush1.msra.mxu0 %v2248
        %2254 = vmatprep.subr.mxu0 0.0
        %2255 = vmatpush1.msra.mxu0 %v2247
        %2256 = vmatprep.subr.mxu0 0.0
        %2257 = vmatpush1.msra.mxu0 %v2246
        %2258 = vmatprep.subr.mxu0 0.0
        %2259 = vmatpush1.msra.mxu0 %v2245
        %2260 = vmatprep.subr.mxu0 0.0
        %2261 = vmatpush1.msra.mxu0 %v2244
        %2262 = vmatprep.subr.mxu0 0.0
        %2263 = vmatpush1.msra.mxu0 %v2243
        %2264 = vmatprep.subr.mxu0 0.0
        %2265 = vmatpush1.msra.mxu0 %v2242
        %2266 = vmatprep.subr.mxu0 0.0
        %2267 = vmatpush1.msra.mxu0 %v2241
        %2268 = vmatprep.subr.mxu0 0.0
        %2269 = vmatpush1.msra.mxu0 %v2240
        %2270 = vmatprep.subr.mxu0 0.0
        %2271 = vmatpush1.msra.mxu0 %v2239
        %2272 = vmatprep.subr.mxu0 0.0
        %2273 = vmatpush1.msra.mxu0 %v2238
        %2274 = vmatprep.subr.mxu0 0.0
        %2275 = vmatpush1.msra.mxu0 %v2237
        %2276 = vmatprep.subr.mxu0 0.0
        %2277 = vmatpush1.msra.mxu0 %v2236
        %2278 = vmatprep.subr.mxu0 0.0
        %2279 = vmatpush1.msra.mxu0 %v2235
        %2280 = vmatprep.subr.mxu0 0.0
        %2281 = vmatpush1.msra.mxu0 %v2234
        %2282 = vmatprep.subr.mxu0 0.0
        %2283 = vmatpush2.msra.mxu0 0.0
        %2284 = vmatprep.subr.mxu0 0.0
        %2285 = vmatpush2.msra.mxu0 0.0
        %2286 = vmatprep.subr.mxu0 0.0
        %2287 = vmatpush2.msra.mxu0 0.0
        %2288 = vmatprep.subr.mxu0 0.0
        %2289 = vmatpush2.msra.mxu0 0.0
        %2290 = vmatprep.subr.mxu0 0.0
        %2291 = vmatpush2.msra.mxu0 0.0
        %2292 = vmatprep.subr.mxu0 0.0
        %2293 = vmatpush2.msra.mxu0 0.0
        %2294 = vmatprep.subr.mxu0 0.0
        %2295 = vmatpush2.msra.mxu0 0.0
        %2296 = vmatprep.subr.mxu0 0.0
        %2297 = vmatpush2.msra.mxu0 0.0
        %2298 = vmatprep.subr.mxu0 0.0
        %2299 = vmatpush2.msra.mxu0 0.0
        %2300 = vmatprep.subr.mxu0 0.0
        %2301 = vmatpush2.msra.mxu0 0.0
        %2302 = vmatprep.subr.mxu0 0.0
        %2303 = vmatpush2.msra.mxu0 0.0
        %2304 = vmatprep.subr.mxu0 0.0
        %2305 = vmatpush2.msra.mxu0 0.0
        %2306 = vmatprep.subr.mxu0 0.0
        %2307 = vmatpush2.msra.mxu0 0.0
        %2308 = vmatprep.subr.mxu0 0.0
        %2309 = vmatpush2.msra.mxu0 0.0
        %2310 = vmatprep.subr.mxu0 0.0
        %2311 = vmatpush2.msra.mxu0 0.0
        %2312 = vmatprep.subr.mxu0 0.0
        %2313 = vmatpush2.msra.mxu0 0.0
        %2314 = vmatprep.mubr.f32.mxu0 0.0
        %2315 = vmatmul.mubr.f32.gmra.mxu0 %v2223
        %v2316 = vpop.f32.mrf.mxu0
        %v2317 = vadd.f32 0.0, %v2316
        %v2318 = vpop.f32.mrf.mxu0
        %2319 = vmatprep.mubr.f32.mxu0 0.0
        %2320 = vmatmul.mubr.f32.gmra.mxu0 %v2224
        %v2321 = vpop.f32.mrf.mxu0
        %v2322 = vadd.f32 0.0, %v2321
        %v2323 = vpop.f32.mrf.mxu0
        %2324 = vmatprep.mubr.f32.mxu0 0.0
        %2325 = vmatmul.mubr.f32.gmra.mxu0 %v2225
        %v2326 = vpop.f32.mrf.mxu0
        %v2327 = vadd.f32 0.0, %v2326
        %v2328 = vpop.f32.mrf.mxu0
        %2329 = vmatprep.mubr.f32.mxu0 0.0
        %2330 = vmatmul.mubr.f32.gmra.mxu0 %v2226
        %v2331 = vpop.f32.mrf.mxu0
        %v2332 = vadd.f32 0.0, %v2331
        %v2333 = vpop.f32.mrf.mxu0
        %2334 = vmatprep.mubr.f32.mxu0 0.0
        %2335 = vmatmul.mubr.f32.gmra.mxu0 %v2227
        %v2336 = vpop.f32.mrf.mxu0
        %v2337 = vadd.f32 0.0, %v2336
        %v2338 = vpop.f32.mrf.mxu0
        %2339 = vmatprep.mubr.f32.mxu0 0.0
        %2340 = vmatmul.mubr.f32.gmra.mxu0 %v2228
        %v2341 = vpop.f32.mrf.mxu0
        %v2342 = vadd.f32 0.0, %v2341
        %v2343 = vpop.f32.mrf.mxu0
        %2344 = vmatprep.mubr.f32.mxu0 0.0
        %2345 = vmatmul.mubr.f32.gmra.mxu0 %v2229
        %v2346 = vpop.f32.mrf.mxu0
        %v2347 = vadd.f32 0.0, %v2346
        %v2348 = vpop.f32.mrf.mxu0
        %2349 = vmatprep.mubr.f32.mxu0 0.0
        %2350 = vmatmul.mubr.f32.gmra.mxu0 %v2230
        %v2351 = vpop.f32.mrf.mxu0
        %v2352 = vadd.f32 0.0, %v2351
        %v2353 = vpop.f32.mrf.mxu0
        %2354 = vmatprep.mubr.f32.mxu0 0.0
        %2355 = vmatmul.mubr.f32.gmra.mxu0 %v2231
        %v2356 = vpop.f32.mrf.mxu0
        %v2357 = vadd.f32 0.0, %v2356
        %v2358 = vpop.f32.mrf.mxu0
        %2359 = vmatprep.mubr.f32.mxu0 0.0
        %2360 = vmatmul.mubr.f32.gmra.mxu0 %v2232
        %v2361 = vpop.f32.mrf.mxu0
        %v2362 = vadd.f32 0.0, %v2361
        %v2363 = vpop.f32.mrf.mxu0
        %2364 = vdwg.mxu0
        %2365 = vmatprep.subr.mxu0 0.0
        %2366 = vmatpush1.msra.mxu0 %v2222
        %2367 = vmatprep.subr.mxu0 0.0
        %2368 = vmatpush1.msra.mxu0 %v2221
        %2369 = vmatprep.subr.mxu0 0.0
        %2370 = vmatpush1.msra.mxu0 %v2220
        %2371 = vmatprep.subr.mxu0 0.0
        %2372 = vmatpush1.msra.mxu0 %v2219
        %2373 = vmatprep.subr.mxu0 0.0
        %2374 = vmatpush1.msra.mxu0 %v2218
        %2375 = vmatprep.subr.mxu0 0.0
        %2376 = vmatpush1.msra.mxu0 %v2217
        %2377 = vmatprep.subr.mxu0 0.0
        %2378 = vmatpush1.msra.mxu0 %v2216
        %2379 = vmatprep.subr.mxu0 0.0
        %2380 = vmatpush1.msra.mxu0 %v2215
        %2381 = vmatprep.subr.mxu0 0.0
        %2382 = vmatpush1.msra.mxu0 %v2214
        %2383 = vmatprep.subr.mxu0 0.0
        %2384 = vmatpush1.msra.mxu0 %v2213
        %2385 = vmatprep.subr.mxu0 0.0
        %2386 = vmatpush1.msra.mxu0 %v2212
        %2387 = vmatprep.subr.mxu0 0.0
        %2388 = vmatpush1.msra.mxu0 %v2211
        %2389 = vmatprep.subr.mxu0 0.0
        %2390 = vmatpush1.msra.mxu0 %v2210
        %2391 = vmatprep.subr.mxu0 0.0
        %2392 = vmatpush1.msra.mxu0 %v2209
        %2393 = vmatprep.subr.mxu0 0.0
        %2394 = vmatpush1.msra.mxu0 %v2208
        %2395 = vmatprep.subr.mxu0 0.0
        %2396 = vmatpush1.msra.mxu0 %v2207
        %2397 = vmatprep.subr.mxu0 0.0
        %2398 = vmatpush2.msra.mxu0 0.0
        %2399 = vmatprep.subr.mxu0 0.0
        %2400 = vmatpush2.msra.mxu0 0.0
        %2401 = vmatprep.subr.mxu0 0.0
        %2402 = vmatpush2.msra.mxu0 0.0
        %2403 = vmatprep.subr.mxu0 0.0
        %2404 = vmatpush2.msra.mxu0 0.0
        %2405 = vmatprep.subr.mxu0 0.0
        %2406 = vmatpush2.msra.mxu0 0.0
        %2407 = vmatprep.subr.mxu0 0.0
        %2408 = vmatpush2.msra.mxu0 0.0
        %2409 = vmatprep.subr.mxu0 0.0
        %2410 = vmatpush2.msra.mxu0 0.0
        %2411 = vmatprep.subr.mxu0 0.0
        %2412 = vmatpush2.msra.mxu0 0.0
        %2413 = vmatprep.subr.mxu0 0.0
        %2414 = vmatpush2.msra.mxu0 0.0
        %2415 = vmatprep.subr.mxu0 0.0
        %2416 = vmatpush2.msra.mxu0 0.0
        %2417 = vmatprep.subr.mxu0 0.0
        %2418 = vmatpush2.msra.mxu0 0.0
        %2419 = vmatprep.subr.mxu0 0.0
        %2420 = vmatpush2.msra.mxu0 0.0
        %2421 = vmatprep.subr.mxu0 0.0
        %2422 = vmatpush2.msra.mxu0 0.0
        %2423 = vmatprep.subr.mxu0 0.0
        %2424 = vmatpush2.msra.mxu0 0.0
        %2425 = vmatprep.subr.mxu0 0.0
        %2426 = vmatpush2.msra.mxu0 0.0
        %2427 = vmatprep.subr.mxu0 0.0
        %2428 = vmatpush2.msra.mxu0 0.0
        %2429 = vmatprep.mubr.f32.mxu0 0.0
        %2430 = vmatmul.mubr.f32.gmra.mxu0 %v2197
        %v2431 = vpop.f32.mrf.mxu0
        %v2432 = vadd.f32 %v2317, %v2431
        %v2433 = vpop.f32.mrf.mxu0
        %2434 = vmatprep.mubr.f32.mxu0 0.0
        %2435 = vmatmul.mubr.f32.gmra.mxu0 %v2198
        %v2436 = vpop.f32.mrf.mxu0
        %v2437 = vadd.f32 %v2322, %v2436
        %v2438 = vpop.f32.mrf.mxu0
        %2439 = vmatprep.mubr.f32.mxu0 0.0
        %2440 = vmatmul.mubr.f32.gmra.mxu0 %v2199
        %v2441 = vpop.f32.mrf.mxu0
        %v2442 = vadd.f32 %v2327, %v2441
        %v2443 = vpop.f32.mrf.mxu0
        %2444 = vmatprep.mubr.f32.mxu0 0.0
        %2445 = vmatmul.mubr.f32.gmra.mxu0 %v2200
        %v2446 = vpop.f32.mrf.mxu0
        %v2447 = vadd.f32 %v2332, %v2446
        %v2448 = vpop.f32.mrf.mxu0
        %2449 = vmatprep.mubr.f32.mxu0 0.0
        %2450 = vmatmul.mubr.f32.gmra.mxu0 %v2201
        %v2451 = vpop.f32.mrf.mxu0
        %v2452 = vadd.f32 %v2337, %v2451
        %v2453 = vpop.f32.mrf.mxu0
        %2454 = vmatprep.mubr.f32.mxu0 0.0
        %2455 = vmatmul.mubr.f32.gmra.mxu0 %v2202
        %v2456 = vpop.f32.mrf.mxu0
        %v2457 = vadd.f32 %v2342, %v2456
        %v2458 = vpop.f32.mrf.mxu0
        %2459 = vmatprep.mubr.f32.mxu0 0.0
        %2460 = vmatmul.mubr.f32.gmra.mxu0 %v2203
        %v2461 = vpop.f32.mrf.mxu0
        %v2462 = vadd.f32 %v2347, %v2461
        %v2463 = vpop.f32.mrf.mxu0
        %2464 = vmatprep.mubr.f32.mxu0 0.0
        %2465 = vmatmul.mubr.f32.gmra.mxu0 %v2204
        %v2466 = vpop.f32.mrf.mxu0
        %v2467 = vadd.f32 %v2352, %v2466
        %v2468 = vpop.f32.mrf.mxu0
        %2469 = vmatprep.mubr.f32.mxu0 0.0
        %2470 = vmatmul.mubr.f32.gmra.mxu0 %v2205
        %v2471 = vpop.f32.mrf.mxu0
        %v2472 = vadd.f32 %v2357, %v2471
        %v2473 = vpop.f32.mrf.mxu0
        %2474 = vmatprep.mubr.f32.mxu0 0.0
        %2475 = vmatmul.mubr.f32.gmra.mxu0 %v2206
        %v2476 = vpop.f32.mrf.mxu0
        %v2477 = vadd.f32 %v2362, %v2476
        %v2478 = vpop.f32.mrf.mxu0
        %2479 = vdwg.mxu0
        %v2480 = vld [vmem:[#allocation2 + $0x2] sm:$0xff]
        %v2481 = vld [vmem:[#allocation2 + $0xa] sm:$0xff]
        %v2482 = vld [vmem:[#allocation2 + $0x12] sm:$0xff]
        %v2483 = vld [vmem:[#allocation2 + $0x1a] sm:$0xff]
        %v2484 = vld [vmem:[#allocation2 + $0x22] sm:$0xff]
        %v2485 = vld [vmem:[#allocation2 + $0x2a] sm:$0xff]
        %v2486 = vld [vmem:[#allocation2 + $0x32] sm:$0xff]
        %v2487 = vld [vmem:[#allocation2 + $0x3a] sm:$0xff]
        %v2488 = vld [vmem:[#allocation2 + $0x42] sm:$0xff]
        %v2489 = vld [vmem:[#allocation2 + $0x4a] sm:$0xff]
        %s2490 = scalar_lea.vmem [#allocation4], 256
        %v2491 = vld [vmem:[%s2490] sm:$0xff]
        %v2492 = vld [vmem:[%s2490 + $0x8] sm:$0xff]
        %v2493 = vld [vmem:[%s2490 + $0x10] sm:$0xff]
        %v2494 = vld [vmem:[%s2490 + $0x18] sm:$0xff]
        %v2495 = vld [vmem:[%s2490 + $0x20] sm:$0xff]
        %v2496 = vld [vmem:[%s2490 + $0x28] sm:$0xff]
        %v2497 = vld [vmem:[%s2490 + $0x30] sm:$0xff]
        %v2498 = vld [vmem:[%s2490 + $0x38] sm:$0xff]
        %v2499 = vld [vmem:[%s2490 + $0x40] sm:$0xff]
        %v2500 = vld [vmem:[%s2490 + $0x48] sm:$0xff]
        %v2501 = vld [vmem:[%s2490 + $0x50] sm:$0xff]
        %v2502 = vld [vmem:[%s2490 + $0x58] sm:$0xff]
        %v2503 = vld [vmem:[%s2490 + $0x60] sm:$0xff]
        %v2504 = vld [vmem:[%s2490 + $0x68] sm:$0xff]
        %v2505 = vld [vmem:[%s2490 + $0x70] sm:$0xff]
        %v2506 = vld [vmem:[%s2490 + $0x78] sm:$0xff]
        %2507 = vmatprep.subr.mxu0 0.0
        %2508 = vmatpush1.msra.mxu0 %v2506
        %2509 = vmatprep.subr.mxu0 0.0
        %2510 = vmatpush1.msra.mxu0 %v2505
        %2511 = vmatprep.subr.mxu0 0.0
        %2512 = vmatpush1.msra.mxu0 %v2504
        %2513 = vmatprep.subr.mxu0 0.0
        %2514 = vmatpush1.msra.mxu0 %v2503
        %2515 = vmatprep.subr.mxu0 0.0
        %2516 = vmatpush1.msra.mxu0 %v2502
        %2517 = vmatprep.subr.mxu0 0.0
        %2518 = vmatpush1.msra.mxu0 %v2501
        %2519 = vmatprep.subr.mxu0 0.0
        %2520 = vmatpush1.msra.mxu0 %v2500
        %2521 = vmatprep.subr.mxu0 0.0
        %2522 = vmatpush1.msra.mxu0 %v2499
        %2523 = vmatprep.subr.mxu0 0.0
        %2524 = vmatpush1.msra.mxu0 %v2498
        %2525 = vmatprep.subr.mxu0 0.0
        %2526 = vmatpush1.msra.mxu0 %v2497
        %2527 = vmatprep.subr.mxu0 0.0
        %2528 = vmatpush1.msra.mxu0 %v2496
        %2529 = vmatprep.subr.mxu0 0.0
        %2530 = vmatpush1.msra.mxu0 %v2495
        %2531 = vmatprep.subr.mxu0 0.0
        %2532 = vmatpush1.msra.mxu0 %v2494
        %2533 = vmatprep.subr.mxu0 0.0
        %2534 = vmatpush1.msra.mxu0 %v2493
        %2535 = vmatprep.subr.mxu0 0.0
        %2536 = vmatpush1.msra.mxu0 %v2492
        %2537 = vmatprep.subr.mxu0 0.0
        %2538 = vmatpush1.msra.mxu0 %v2491
        %2539 = vmatprep.subr.mxu0 0.0
        %2540 = vmatpush2.msra.mxu0 0.0
        %2541 = vmatprep.subr.mxu0 0.0
        %2542 = vmatpush2.msra.mxu0 0.0
        %2543 = vmatprep.subr.mxu0 0.0
        %2544 = vmatpush2.msra.mxu0 0.0
        %2545 = vmatprep.subr.mxu0 0.0
        %2546 = vmatpush2.msra.mxu0 0.0
        %2547 = vmatprep.subr.mxu0 0.0
        %2548 = vmatpush2.msra.mxu0 0.0
        %2549 = vmatprep.subr.mxu0 0.0
        %2550 = vmatpush2.msra.mxu0 0.0
        %2551 = vmatprep.subr.mxu0 0.0
        %2552 = vmatpush2.msra.mxu0 0.0
        %2553 = vmatprep.subr.mxu0 0.0
        %2554 = vmatpush2.msra.mxu0 0.0
        %2555 = vmatprep.subr.mxu0 0.0
        %2556 = vmatpush2.msra.mxu0 0.0
        %2557 = vmatprep.subr.mxu0 0.0
        %2558 = vmatpush2.msra.mxu0 0.0
        %2559 = vmatprep.subr.mxu0 0.0
        %2560 = vmatpush2.msra.mxu0 0.0
        %2561 = vmatprep.subr.mxu0 0.0
        %2562 = vmatpush2.msra.mxu0 0.0
        %2563 = vmatprep.subr.mxu0 0.0
        %2564 = vmatpush2.msra.mxu0 0.0
        %2565 = vmatprep.subr.mxu0 0.0
        %2566 = vmatpush2.msra.mxu0 0.0
        %2567 = vmatprep.subr.mxu0 0.0
        %2568 = vmatpush2.msra.mxu0 0.0
        %2569 = vmatprep.subr.mxu0 0.0
        %2570 = vmatpush2.msra.mxu0 0.0
        %2571 = vmatprep.mubr.f32.mxu0 0.0
        %2572 = vmatmul.mubr.f32.gmra.mxu0 %v2480
        %v2573 = vpop.f32.mrf.mxu0
        %v2574 = vadd.f32 0.0, %v2573
        %v2575 = vpop.f32.mrf.mxu0
        %2576 = vmatprep.mubr.f32.mxu0 0.0
        %2577 = vmatmul.mubr.f32.gmra.mxu0 %v2481
        %v2578 = vpop.f32.mrf.mxu0
        %v2579 = vadd.f32 0.0, %v2578
        %v2580 = vpop.f32.mrf.mxu0
        %2581 = vmatprep.mubr.f32.mxu0 0.0
        %2582 = vmatmul.mubr.f32.gmra.mxu0 %v2482
        %v2583 = vpop.f32.mrf.mxu0
        %v2584 = vadd.f32 0.0, %v2583
        %v2585 = vpop.f32.mrf.mxu0
        %2586 = vmatprep.mubr.f32.mxu0 0.0
        %2587 = vmatmul.mubr.f32.gmra.mxu0 %v2483
        %v2588 = vpop.f32.mrf.mxu0
        %v2589 = vadd.f32 0.0, %v2588
        %v2590 = vpop.f32.mrf.mxu0
        %2591 = vmatprep.mubr.f32.mxu0 0.0
        %2592 = vmatmul.mubr.f32.gmra.mxu0 %v2484
        %v2593 = vpop.f32.mrf.mxu0
        %v2594 = vadd.f32 0.0, %v2593
        %v2595 = vpop.f32.mrf.mxu0
        %2596 = vmatprep.mubr.f32.mxu0 0.0
        %2597 = vmatmul.mubr.f32.gmra.mxu0 %v2485
        %v2598 = vpop.f32.mrf.mxu0
        %v2599 = vadd.f32 0.0, %v2598
        %v2600 = vpop.f32.mrf.mxu0
        %2601 = vmatprep.mubr.f32.mxu0 0.0
        %2602 = vmatmul.mubr.f32.gmra.mxu0 %v2486
        %v2603 = vpop.f32.mrf.mxu0
        %v2604 = vadd.f32 0.0, %v2603
        %v2605 = vpop.f32.mrf.mxu0
        %2606 = vmatprep.mubr.f32.mxu0 0.0
        %2607 = vmatmul.mubr.f32.gmra.mxu0 %v2487
        %v2608 = vpop.f32.mrf.mxu0
        %v2609 = vadd.f32 0.0, %v2608
        %v2610 = vpop.f32.mrf.mxu0
        %2611 = vmatprep.mubr.f32.mxu0 0.0
        %2612 = vmatmul.mubr.f32.gmra.mxu0 %v2488
        %v2613 = vpop.f32.mrf.mxu0
        %v2614 = vadd.f32 0.0, %v2613
        %v2615 = vpop.f32.mrf.mxu0
        %2616 = vmatprep.mubr.f32.mxu0 0.0
        %2617 = vmatmul.mubr.f32.gmra.mxu0 %v2489
        %v2618 = vpop.f32.mrf.mxu0
        %v2619 = vadd.f32 0.0, %v2618
        %v2620 = vpop.f32.mrf.mxu0
        %2621 = vdwg.mxu0
        %v2622 = vadd.f32 %v2432, %v2574
        %v2623 = vadd.f32 %v2437, %v2579
        %v2624 = vadd.f32 %v2442, %v2584
        %v2625 = vadd.f32 %v2447, %v2589
        %v2626 = vadd.f32 %v2452, %v2594
        %v2627 = vadd.f32 %v2457, %v2599
        %v2628 = vadd.f32 %v2462, %v2604
        %v2629 = vadd.f32 %v2467, %v2609
        %v2630 = vadd.f32 %v2472, %v2614
        %v2631 = vadd.f32 %v2477, %v2619
        %v2632 = vld [vmem:[#allocation2 + $0xa] sm:$0xff]
        %v2633 = vld [vmem:[#allocation2 + $0x12] sm:$0xff]
        %v2634 = vld [vmem:[#allocation2 + $0x1a] sm:$0xff]
        %v2635 = vld [vmem:[#allocation2 + $0x22] sm:$0xff]
        %v2636 = vld [vmem:[#allocation2 + $0x2a] sm:$0xff]
        %v2637 = vld [vmem:[#allocation2 + $0x32] sm:$0xff]
        %v2638 = vld [vmem:[#allocation2 + $0x3a] sm:$0xff]
        %v2639 = vld [vmem:[#allocation2 + $0x42] sm:$0xff]
        %v2640 = vld [vmem:[#allocation2 + $0x4a] sm:$0xff]
        %v2641 = vld [vmem:[#allocation2 + $0x52] sm:$0xff]
        %s2642 = scalar_lea.vmem [#allocation4], 384
        %v2643 = vld [vmem:[%s2642] sm:$0xff]
        %v2644 = vld [vmem:[%s2642 + $0x8] sm:$0xff]
        %v2645 = vld [vmem:[%s2642 + $0x10] sm:$0xff]
        %v2646 = vld [vmem:[%s2642 + $0x18] sm:$0xff]
        %v2647 = vld [vmem:[%s2642 + $0x20] sm:$0xff]
        %v2648 = vld [vmem:[%s2642 + $0x28] sm:$0xff]
        %v2649 = vld [vmem:[%s2642 + $0x30] sm:$0xff]
        %v2650 = vld [vmem:[%s2642 + $0x38] sm:$0xff]
        %v2651 = vld [vmem:[%s2642 + $0x40] sm:$0xff]
        %v2652 = vld [vmem:[%s2642 + $0x48] sm:$0xff]
        %v2653 = vld [vmem:[%s2642 + $0x50] sm:$0xff]
        %v2654 = vld [vmem:[%s2642 + $0x58] sm:$0xff]
        %v2655 = vld [vmem:[%s2642 + $0x60] sm:$0xff]
        %v2656 = vld [vmem:[%s2642 + $0x68] sm:$0xff]
        %v2657 = vld [vmem:[%s2642 + $0x70] sm:$0xff]
        %v2658 = vld [vmem:[%s2642 + $0x78] sm:$0xff]
        %2659 = vmatprep.subr.mxu0 0.0
        %2660 = vmatpush1.msra.mxu0 %v2658
        %2661 = vmatprep.subr.mxu0 0.0
        %2662 = vmatpush1.msra.mxu0 %v2657
        %2663 = vmatprep.subr.mxu0 0.0
        %2664 = vmatpush1.msra.mxu0 %v2656
        %2665 = vmatprep.subr.mxu0 0.0
        %2666 = vmatpush1.msra.mxu0 %v2655
        %2667 = vmatprep.subr.mxu0 0.0
        %2668 = vmatpush1.msra.mxu0 %v2654
        %2669 = vmatprep.subr.mxu0 0.0
        %2670 = vmatpush1.msra.mxu0 %v2653
        %2671 = vmatprep.subr.mxu0 0.0
        %2672 = vmatpush1.msra.mxu0 %v2652
        %2673 = vmatprep.subr.mxu0 0.0
        %2674 = vmatpush1.msra.mxu0 %v2651
        %2675 = vmatprep.subr.mxu0 0.0
        %2676 = vmatpush1.msra.mxu0 %v2650
        %2677 = vmatprep.subr.mxu0 0.0
        %2678 = vmatpush1.msra.mxu0 %v2649
        %2679 = vmatprep.subr.mxu0 0.0
        %2680 = vmatpush1.msra.mxu0 %v2648
        %2681 = vmatprep.subr.mxu0 0.0
        %2682 = vmatpush1.msra.mxu0 %v2647
        %2683 = vmatprep.subr.mxu0 0.0
        %2684 = vmatpush1.msra.mxu0 %v2646
        %2685 = vmatprep.subr.mxu0 0.0
        %2686 = vmatpush1.msra.mxu0 %v2645
        %2687 = vmatprep.subr.mxu0 0.0
        %2688 = vmatpush1.msra.mxu0 %v2644
        %2689 = vmatprep.subr.mxu0 0.0
        %2690 = vmatpush1.msra.mxu0 %v2643
        %2691 = vmatprep.subr.mxu0 0.0
        %2692 = vmatpush2.msra.mxu0 0.0
        %2693 = vmatprep.subr.mxu0 0.0
        %2694 = vmatpush2.msra.mxu0 0.0
        %2695 = vmatprep.subr.mxu0 0.0
        %2696 = vmatpush2.msra.mxu0 0.0
        %2697 = vmatprep.subr.mxu0 0.0
        %2698 = vmatpush2.msra.mxu0 0.0
        %2699 = vmatprep.subr.mxu0 0.0
        %2700 = vmatpush2.msra.mxu0 0.0
        %2701 = vmatprep.subr.mxu0 0.0
        %2702 = vmatpush2.msra.mxu0 0.0
        %2703 = vmatprep.subr.mxu0 0.0
        %2704 = vmatpush2.msra.mxu0 0.0
        %2705 = vmatprep.subr.mxu0 0.0
        %2706 = vmatpush2.msra.mxu0 0.0
        %2707 = vmatprep.subr.mxu0 0.0
        %2708 = vmatpush2.msra.mxu0 0.0
        %2709 = vmatprep.subr.mxu0 0.0
        %2710 = vmatpush2.msra.mxu0 0.0
        %2711 = vmatprep.subr.mxu0 0.0
        %2712 = vmatpush2.msra.mxu0 0.0
        %2713 = vmatprep.subr.mxu0 0.0
        %2714 = vmatpush2.msra.mxu0 0.0
        %2715 = vmatprep.subr.mxu0 0.0
        %2716 = vmatpush2.msra.mxu0 0.0
        %2717 = vmatprep.subr.mxu0 0.0
        %2718 = vmatpush2.msra.mxu0 0.0
        %2719 = vmatprep.subr.mxu0 0.0
        %2720 = vmatpush2.msra.mxu0 0.0
        %2721 = vmatprep.subr.mxu0 0.0
        %2722 = vmatpush2.msra.mxu0 0.0
        %2723 = vmatprep.mubr.f32.mxu0 0.0
        %2724 = vmatmul.mubr.f32.gmra.mxu0 %v2632
        %v2725 = vpop.f32.mrf.mxu0
        %v2726 = vadd.f32 0.0, %v2725
        %v2727 = vpop.f32.mrf.mxu0
        %2728 = vmatprep.mubr.f32.mxu0 0.0
        %2729 = vmatmul.mubr.f32.gmra.mxu0 %v2633
        %v2730 = vpop.f32.mrf.mxu0
        %v2731 = vadd.f32 0.0, %v2730
        %v2732 = vpop.f32.mrf.mxu0
        %2733 = vmatprep.mubr.f32.mxu0 0.0
        %2734 = vmatmul.mubr.f32.gmra.mxu0 %v2634
        %v2735 = vpop.f32.mrf.mxu0
        %v2736 = vadd.f32 0.0, %v2735
        %v2737 = vpop.f32.mrf.mxu0
        %2738 = vmatprep.mubr.f32.mxu0 0.0
        %2739 = vmatmul.mubr.f32.gmra.mxu0 %v2635
        %v2740 = vpop.f32.mrf.mxu0
        %v2741 = vadd.f32 0.0, %v2740
        %v2742 = vpop.f32.mrf.mxu0
        %2743 = vmatprep.mubr.f32.mxu0 0.0
        %2744 = vmatmul.mubr.f32.gmra.mxu0 %v2636
        %v2745 = vpop.f32.mrf.mxu0
        %v2746 = vadd.f32 0.0, %v2745
        %v2747 = vpop.f32.mrf.mxu0
        %2748 = vmatprep.mubr.f32.mxu0 0.0
        %2749 = vmatmul.mubr.f32.gmra.mxu0 %v2637
        %v2750 = vpop.f32.mrf.mxu0
        %v2751 = vadd.f32 0.0, %v2750
        %v2752 = vpop.f32.mrf.mxu0
        %2753 = vmatprep.mubr.f32.mxu0 0.0
        %2754 = vmatmul.mubr.f32.gmra.mxu0 %v2638
        %v2755 = vpop.f32.mrf.mxu0
        %v2756 = vadd.f32 0.0, %v2755
        %v2757 = vpop.f32.mrf.mxu0
        %2758 = vmatprep.mubr.f32.mxu0 0.0
        %2759 = vmatmul.mubr.f32.gmra.mxu0 %v2639
        %v2760 = vpop.f32.mrf.mxu0
        %v2761 = vadd.f32 0.0, %v2760
        %v2762 = vpop.f32.mrf.mxu0
        %2763 = vmatprep.mubr.f32.mxu0 0.0
        %2764 = vmatmul.mubr.f32.gmra.mxu0 %v2640
        %v2765 = vpop.f32.mrf.mxu0
        %v2766 = vadd.f32 0.0, %v2765
        %v2767 = vpop.f32.mrf.mxu0
        %2768 = vmatprep.mubr.f32.mxu0 0.0
        %2769 = vmatmul.mubr.f32.gmra.mxu0 %v2641
        %v2770 = vpop.f32.mrf.mxu0
        %v2771 = vadd.f32 0.0, %v2770
        %v2772 = vpop.f32.mrf.mxu0
        %2773 = vdwg.mxu0
        %v2774 = vadd.f32 %v2622, %v2726
        %v2775 = vadd.f32 %v2623, %v2731
        %v2776 = vadd.f32 %v2624, %v2736
        %v2777 = vadd.f32 %v2625, %v2741
        %v2778 = vadd.f32 %v2626, %v2746
        %v2779 = vadd.f32 %v2627, %v2751
        %v2780 = vadd.f32 %v2628, %v2756
        %v2781 = vadd.f32 %v2629, %v2761
        %v2782 = vadd.f32 %v2630, %v2766
        %v2783 = vadd.f32 %v2631, %v2771
        %v2784 = vld [vmem:[#allocation2 + $0xb] sm:$0xff]
        %v2785 = vld [vmem:[#allocation2 + $0x13] sm:$0xff]
        %v2786 = vld [vmem:[#allocation2 + $0x1b] sm:$0xff]
        %v2787 = vld [vmem:[#allocation2 + $0x23] sm:$0xff]
        %v2788 = vld [vmem:[#allocation2 + $0x2b] sm:$0xff]
        %v2789 = vld [vmem:[#allocation2 + $0x33] sm:$0xff]
        %v2790 = vld [vmem:[#allocation2 + $0x3b] sm:$0xff]
        %v2791 = vld [vmem:[#allocation2 + $0x43] sm:$0xff]
        %v2792 = vld [vmem:[#allocation2 + $0x4b] sm:$0xff]
        %v2793 = vld [vmem:[#allocation2 + $0x53] sm:$0xff]
        %s2794 = scalar_lea.vmem [#allocation4], 512
        %v2795 = vld [vmem:[%s2794] sm:$0xff]
        %v2796 = vld [vmem:[%s2794 + $0x8] sm:$0xff]
        %v2797 = vld [vmem:[%s2794 + $0x10] sm:$0xff]
        %v2798 = vld [vmem:[%s2794 + $0x18] sm:$0xff]
        %v2799 = vld [vmem:[%s2794 + $0x20] sm:$0xff]
        %v2800 = vld [vmem:[%s2794 + $0x28] sm:$0xff]
        %v2801 = vld [vmem:[%s2794 + $0x30] sm:$0xff]
        %v2802 = vld [vmem:[%s2794 + $0x38] sm:$0xff]
        %v2803 = vld [vmem:[%s2794 + $0x40] sm:$0xff]
        %v2804 = vld [vmem:[%s2794 + $0x48] sm:$0xff]
        %v2805 = vld [vmem:[%s2794 + $0x50] sm:$0xff]
        %v2806 = vld [vmem:[%s2794 + $0x58] sm:$0xff]
        %v2807 = vld [vmem:[%s2794 + $0x60] sm:$0xff]
        %v2808 = vld [vmem:[%s2794 + $0x68] sm:$0xff]
        %v2809 = vld [vmem:[%s2794 + $0x70] sm:$0xff]
        %v2810 = vld [vmem:[%s2794 + $0x78] sm:$0xff]
        %2811 = vmatprep.subr.mxu0 0.0
        %2812 = vmatpush1.msra.mxu0 %v2810
        %2813 = vmatprep.subr.mxu0 0.0
        %2814 = vmatpush1.msra.mxu0 %v2809
        %2815 = vmatprep.subr.mxu0 0.0
        %2816 = vmatpush1.msra.mxu0 %v2808
        %2817 = vmatprep.subr.mxu0 0.0
        %2818 = vmatpush1.msra.mxu0 %v2807
        %2819 = vmatprep.subr.mxu0 0.0
        %2820 = vmatpush1.msra.mxu0 %v2806
        %2821 = vmatprep.subr.mxu0 0.0
        %2822 = vmatpush1.msra.mxu0 %v2805
        %2823 = vmatprep.subr.mxu0 0.0
        %2824 = vmatpush1.msra.mxu0 %v2804
        %2825 = vmatprep.subr.mxu0 0.0
        %2826 = vmatpush1.msra.mxu0 %v2803
        %2827 = vmatprep.subr.mxu0 0.0
        %2828 = vmatpush1.msra.mxu0 %v2802
        %2829 = vmatprep.subr.mxu0 0.0
        %2830 = vmatpush1.msra.mxu0 %v2801
        %2831 = vmatprep.subr.mxu0 0.0
        %2832 = vmatpush1.msra.mxu0 %v2800
        %2833 = vmatprep.subr.mxu0 0.0
        %2834 = vmatpush1.msra.mxu0 %v2799
        %2835 = vmatprep.subr.mxu0 0.0
        %2836 = vmatpush1.msra.mxu0 %v2798
        %2837 = vmatprep.subr.mxu0 0.0
        %2838 = vmatpush1.msra.mxu0 %v2797
        %2839 = vmatprep.subr.mxu0 0.0
        %2840 = vmatpush1.msra.mxu0 %v2796
        %2841 = vmatprep.subr.mxu0 0.0
        %2842 = vmatpush1.msra.mxu0 %v2795
        %2843 = vmatprep.subr.mxu0 0.0
        %2844 = vmatpush2.msra.mxu0 0.0
        %2845 = vmatprep.subr.mxu0 0.0
        %2846 = vmatpush2.msra.mxu0 0.0
        %2847 = vmatprep.subr.mxu0 0.0
        %2848 = vmatpush2.msra.mxu0 0.0
        %2849 = vmatprep.subr.mxu0 0.0
        %2850 = vmatpush2.msra.mxu0 0.0
        %2851 = vmatprep.subr.mxu0 0.0
        %2852 = vmatpush2.msra.mxu0 0.0
        %2853 = vmatprep.subr.mxu0 0.0
        %2854 = vmatpush2.msra.mxu0 0.0
        %2855 = vmatprep.subr.mxu0 0.0
        %2856 = vmatpush2.msra.mxu0 0.0
        %2857 = vmatprep.subr.mxu0 0.0
        %2858 = vmatpush2.msra.mxu0 0.0
        %2859 = vmatprep.subr.mxu0 0.0
        %2860 = vmatpush2.msra.mxu0 0.0
        %2861 = vmatprep.subr.mxu0 0.0
        %2862 = vmatpush2.msra.mxu0 0.0
        %2863 = vmatprep.subr.mxu0 0.0
        %2864 = vmatpush2.msra.mxu0 0.0
        %2865 = vmatprep.subr.mxu0 0.0
        %2866 = vmatpush2.msra.mxu0 0.0
        %2867 = vmatprep.subr.mxu0 0.0
        %2868 = vmatpush2.msra.mxu0 0.0
        %2869 = vmatprep.subr.mxu0 0.0
        %2870 = vmatpush2.msra.mxu0 0.0
        %2871 = vmatprep.subr.mxu0 0.0
        %2872 = vmatpush2.msra.mxu0 0.0
        %2873 = vmatprep.subr.mxu0 0.0
        %2874 = vmatpush2.msra.mxu0 0.0
        %2875 = vmatprep.mubr.f32.mxu0 0.0
        %2876 = vmatmul.mubr.f32.gmra.mxu0 %v2784
        %v2877 = vpop.f32.mrf.mxu0
        %v2878 = vadd.f32 0.0, %v2877
        %v2879 = vpop.f32.mrf.mxu0
        %2880 = vmatprep.mubr.f32.mxu0 0.0
        %2881 = vmatmul.mubr.f32.gmra.mxu0 %v2785
        %v2882 = vpop.f32.mrf.mxu0
        %v2883 = vadd.f32 0.0, %v2882
        %v2884 = vpop.f32.mrf.mxu0
        %2885 = vmatprep.mubr.f32.mxu0 0.0
        %2886 = vmatmul.mubr.f32.gmra.mxu0 %v2786
        %v2887 = vpop.f32.mrf.mxu0
        %v2888 = vadd.f32 0.0, %v2887
        %v2889 = vpop.f32.mrf.mxu0
        %2890 = vmatprep.mubr.f32.mxu0 0.0
        %2891 = vmatmul.mubr.f32.gmra.mxu0 %v2787
        %v2892 = vpop.f32.mrf.mxu0
        %v2893 = vadd.f32 0.0, %v2892
        %v2894 = vpop.f32.mrf.mxu0
        %2895 = vmatprep.mubr.f32.mxu0 0.0
        %2896 = vmatmul.mubr.f32.gmra.mxu0 %v2788
        %v2897 = vpop.f32.mrf.mxu0
        %v2898 = vadd.f32 0.0, %v2897
        %v2899 = vpop.f32.mrf.mxu0
        %2900 = vmatprep.mubr.f32.mxu0 0.0
        %2901 = vmatmul.mubr.f32.gmra.mxu0 %v2789
        %v2902 = vpop.f32.mrf.mxu0
        %v2903 = vadd.f32 0.0, %v2902
        %v2904 = vpop.f32.mrf.mxu0
        %2905 = vmatprep.mubr.f32.mxu0 0.0
        %2906 = vmatmul.mubr.f32.gmra.mxu0 %v2790
        %v2907 = vpop.f32.mrf.mxu0
        %v2908 = vadd.f32 0.0, %v2907
        %v2909 = vpop.f32.mrf.mxu0
        %2910 = vmatprep.mubr.f32.mxu0 0.0
        %2911 = vmatmul.mubr.f32.gmra.mxu0 %v2791
        %v2912 = vpop.f32.mrf.mxu0
        %v2913 = vadd.f32 0.0, %v2912
        %v2914 = vpop.f32.mrf.mxu0
        %2915 = vmatprep.mubr.f32.mxu0 0.0
        %2916 = vmatmul.mubr.f32.gmra.mxu0 %v2792
        %v2917 = vpop.f32.mrf.mxu0
        %v2918 = vadd.f32 0.0, %v2917
        %v2919 = vpop.f32.mrf.mxu0
        %2920 = vmatprep.mubr.f32.mxu0 0.0
        %2921 = vmatmul.mubr.f32.gmra.mxu0 %v2793
        %v2922 = vpop.f32.mrf.mxu0
        %v2923 = vadd.f32 0.0, %v2922
        %v2924 = vpop.f32.mrf.mxu0
        %2925 = vdwg.mxu0
        %v2926 = vadd.f32 %v2774, %v2878
        %v2927 = vadd.f32 %v2775, %v2883
        %v2928 = vadd.f32 %v2776, %v2888
        %v2929 = vadd.f32 %v2777, %v2893
        %v2930 = vadd.f32 %v2778, %v2898
        %v2931 = vadd.f32 %v2779, %v2903
        %v2932 = vadd.f32 %v2780, %v2908
        %v2933 = vadd.f32 %v2781, %v2913
        %v2934 = vadd.f32 %v2782, %v2918
        %v2935 = vadd.f32 %v2783, %v2923
        %v2936 = vld [vmem:[#allocation2 + $0xc] sm:$0xff]
        %v2937 = vld [vmem:[#allocation2 + $0x14] sm:$0xff]
        %v2938 = vld [vmem:[#allocation2 + $0x1c] sm:$0xff]
        %v2939 = vld [vmem:[#allocation2 + $0x24] sm:$0xff]
        %v2940 = vld [vmem:[#allocation2 + $0x2c] sm:$0xff]
        %v2941 = vld [vmem:[#allocation2 + $0x34] sm:$0xff]
        %v2942 = vld [vmem:[#allocation2 + $0x3c] sm:$0xff]
        %v2943 = vld [vmem:[#allocation2 + $0x44] sm:$0xff]
        %v2944 = vld [vmem:[#allocation2 + $0x4c] sm:$0xff]
        %v2945 = vld [vmem:[#allocation2 + $0x54] sm:$0xff]
        %s2946 = scalar_lea.vmem [#allocation4], 640
        %v2947 = vld [vmem:[%s2946] sm:$0xff]
        %v2948 = vld [vmem:[%s2946 + $0x8] sm:$0xff]
        %v2949 = vld [vmem:[%s2946 + $0x10] sm:$0xff]
        %v2950 = vld [vmem:[%s2946 + $0x18] sm:$0xff]
        %v2951 = vld [vmem:[%s2946 + $0x20] sm:$0xff]
        %v2952 = vld [vmem:[%s2946 + $0x28] sm:$0xff]
        %v2953 = vld [vmem:[%s2946 + $0x30] sm:$0xff]
        %v2954 = vld [vmem:[%s2946 + $0x38] sm:$0xff]
        %v2955 = vld [vmem:[%s2946 + $0x40] sm:$0xff]
        %v2956 = vld [vmem:[%s2946 + $0x48] sm:$0xff]
        %v2957 = vld [vmem:[%s2946 + $0x50] sm:$0xff]
        %v2958 = vld [vmem:[%s2946 + $0x58] sm:$0xff]
        %v2959 = vld [vmem:[%s2946 + $0x60] sm:$0xff]
        %v2960 = vld [vmem:[%s2946 + $0x68] sm:$0xff]
        %v2961 = vld [vmem:[%s2946 + $0x70] sm:$0xff]
        %v2962 = vld [vmem:[%s2946 + $0x78] sm:$0xff]
        %2963 = vmatprep.subr.mxu0 0.0
        %2964 = vmatpush1.msra.mxu0 %v2962
        %2965 = vmatprep.subr.mxu0 0.0
        %2966 = vmatpush1.msra.mxu0 %v2961
        %2967 = vmatprep.subr.mxu0 0.0
        %2968 = vmatpush1.msra.mxu0 %v2960
        %2969 = vmatprep.subr.mxu0 0.0
        %2970 = vmatpush1.msra.mxu0 %v2959
        %2971 = vmatprep.subr.mxu0 0.0
        %2972 = vmatpush1.msra.mxu0 %v2958
        %2973 = vmatprep.subr.mxu0 0.0
        %2974 = vmatpush1.msra.mxu0 %v2957
        %2975 = vmatprep.subr.mxu0 0.0
        %2976 = vmatpush1.msra.mxu0 %v2956
        %2977 = vmatprep.subr.mxu0 0.0
        %2978 = vmatpush1.msra.mxu0 %v2955
        %2979 = vmatprep.subr.mxu0 0.0
        %2980 = vmatpush1.msra.mxu0 %v2954
        %2981 = vmatprep.subr.mxu0 0.0
        %2982 = vmatpush1.msra.mxu0 %v2953
        %2983 = vmatprep.subr.mxu0 0.0
        %2984 = vmatpush1.msra.mxu0 %v2952
        %2985 = vmatprep.subr.mxu0 0.0
        %2986 = vmatpush1.msra.mxu0 %v2951
        %2987 = vmatprep.subr.mxu0 0.0
        %2988 = vmatpush1.msra.mxu0 %v2950
        %2989 = vmatprep.subr.mxu0 0.0
        %2990 = vmatpush1.msra.mxu0 %v2949
        %2991 = vmatprep.subr.mxu0 0.0
        %2992 = vmatpush1.msra.mxu0 %v2948
        %2993 = vmatprep.subr.mxu0 0.0
        %2994 = vmatpush1.msra.mxu0 %v2947
        %2995 = vmatprep.subr.mxu0 0.0
        %2996 = vmatpush2.msra.mxu0 0.0
        %2997 = vmatprep.subr.mxu0 0.0
        %2998 = vmatpush2.msra.mxu0 0.0
        %2999 = vmatprep.subr.mxu0 0.0
        %3000 = vmatpush2.msra.mxu0 0.0
        %3001 = vmatprep.subr.mxu0 0.0
        %3002 = vmatpush2.msra.mxu0 0.0
        %3003 = vmatprep.subr.mxu0 0.0
        %3004 = vmatpush2.msra.mxu0 0.0
        %3005 = vmatprep.subr.mxu0 0.0
        %3006 = vmatpush2.msra.mxu0 0.0
        %3007 = vmatprep.subr.mxu0 0.0
        %3008 = vmatpush2.msra.mxu0 0.0
        %3009 = vmatprep.subr.mxu0 0.0
        %3010 = vmatpush2.msra.mxu0 0.0
        %3011 = vmatprep.subr.mxu0 0.0
        %3012 = vmatpush2.msra.mxu0 0.0
        %3013 = vmatprep.subr.mxu0 0.0
        %3014 = vmatpush2.msra.mxu0 0.0
        %3015 = vmatprep.subr.mxu0 0.0
        %3016 = vmatpush2.msra.mxu0 0.0
        %3017 = vmatprep.subr.mxu0 0.0
        %3018 = vmatpush2.msra.mxu0 0.0
        %3019 = vmatprep.subr.mxu0 0.0
        %3020 = vmatpush2.msra.mxu0 0.0
        %3021 = vmatprep.subr.mxu0 0.0
        %3022 = vmatpush2.msra.mxu0 0.0
        %3023 = vmatprep.subr.mxu0 0.0
        %3024 = vmatpush2.msra.mxu0 0.0
        %3025 = vmatprep.subr.mxu0 0.0
        %3026 = vmatpush2.msra.mxu0 0.0
        %3027 = vmatprep.mubr.f32.mxu0 0.0
        %3028 = vmatmul.mubr.f32.gmra.mxu0 %v2936
        %v3029 = vpop.f32.mrf.mxu0
        %v3030 = vadd.f32 0.0, %v3029
        %v3031 = vpop.f32.mrf.mxu0
        %3032 = vmatprep.mubr.f32.mxu0 0.0
        %3033 = vmatmul.mubr.f32.gmra.mxu0 %v2937
        %v3034 = vpop.f32.mrf.mxu0
        %v3035 = vadd.f32 0.0, %v3034
        %v3036 = vpop.f32.mrf.mxu0
        %3037 = vmatprep.mubr.f32.mxu0 0.0
        %3038 = vmatmul.mubr.f32.gmra.mxu0 %v2938
        %v3039 = vpop.f32.mrf.mxu0
        %v3040 = vadd.f32 0.0, %v3039
        %v3041 = vpop.f32.mrf.mxu0
        %3042 = vmatprep.mubr.f32.mxu0 0.0
        %3043 = vmatmul.mubr.f32.gmra.mxu0 %v2939
        %v3044 = vpop.f32.mrf.mxu0
        %v3045 = vadd.f32 0.0, %v3044
        %v3046 = vpop.f32.mrf.mxu0
        %3047 = vmatprep.mubr.f32.mxu0 0.0
        %3048 = vmatmul.mubr.f32.gmra.mxu0 %v2940
        %v3049 = vpop.f32.mrf.mxu0
        %v3050 = vadd.f32 0.0, %v3049
        %v3051 = vpop.f32.mrf.mxu0
        %3052 = vmatprep.mubr.f32.mxu0 0.0
        %3053 = vmatmul.mubr.f32.gmra.mxu0 %v2941
        %v3054 = vpop.f32.mrf.mxu0
        %v3055 = vadd.f32 0.0, %v3054
        %v3056 = vpop.f32.mrf.mxu0
        %3057 = vmatprep.mubr.f32.mxu0 0.0
        %3058 = vmatmul.mubr.f32.gmra.mxu0 %v2942
        %v3059 = vpop.f32.mrf.mxu0
        %v3060 = vadd.f32 0.0, %v3059
        %v3061 = vpop.f32.mrf.mxu0
        %3062 = vmatprep.mubr.f32.mxu0 0.0
        %3063 = vmatmul.mubr.f32.gmra.mxu0 %v2943
        %v3064 = vpop.f32.mrf.mxu0
        %v3065 = vadd.f32 0.0, %v3064
        %v3066 = vpop.f32.mrf.mxu0
        %3067 = vmatprep.mubr.f32.mxu0 0.0
        %3068 = vmatmul.mubr.f32.gmra.mxu0 %v2944
        %v3069 = vpop.f32.mrf.mxu0
        %v3070 = vadd.f32 0.0, %v3069
        %v3071 = vpop.f32.mrf.mxu0
        %3072 = vmatprep.mubr.f32.mxu0 0.0
        %3073 = vmatmul.mubr.f32.gmra.mxu0 %v2945
        %v3074 = vpop.f32.mrf.mxu0
        %v3075 = vadd.f32 0.0, %v3074
        %v3076 = vpop.f32.mrf.mxu0
        %3077 = vdwg.mxu0
        %v3078 = vadd.f32 %v2926, %v3030
        %v3079 = vadd.f32 %v2927, %v3035
        %v3080 = vadd.f32 %v2928, %v3040
        %v3081 = vadd.f32 %v2929, %v3045
        %v3082 = vadd.f32 %v2930, %v3050
        %v3083 = vadd.f32 %v2931, %v3055
        %v3084 = vadd.f32 %v2932, %v3060
        %v3085 = vadd.f32 %v2933, %v3065
        %v3086 = vadd.f32 %v2934, %v3070
        %v3087 = vadd.f32 %v2935, %v3075
        %v3088 = vld [vmem:[#allocation2 + $0x14] sm:$0xff]
        %v3089 = vld [vmem:[#allocation2 + $0x1c] sm:$0xff]
        %v3090 = vld [vmem:[#allocation2 + $0x24] sm:$0xff]
        %v3091 = vld [vmem:[#allocation2 + $0x2c] sm:$0xff]
        %v3092 = vld [vmem:[#allocation2 + $0x34] sm:$0xff]
        %v3093 = vld [vmem:[#allocation2 + $0x3c] sm:$0xff]
        %v3094 = vld [vmem:[#allocation2 + $0x44] sm:$0xff]
        %v3095 = vld [vmem:[#allocation2 + $0x4c] sm:$0xff]
        %v3096 = vld [vmem:[#allocation2 + $0x54] sm:$0xff]
        %v3097 = vld [vmem:[#allocation2 + $0x5c] sm:$0xff]
        %s3098 = scalar_lea.vmem [#allocation4], 768
        %v3099 = vld [vmem:[%s3098] sm:$0xff]
        %v3100 = vld [vmem:[%s3098 + $0x8] sm:$0xff]
        %v3101 = vld [vmem:[%s3098 + $0x10] sm:$0xff]
        %v3102 = vld [vmem:[%s3098 + $0x18] sm:$0xff]
        %v3103 = vld [vmem:[%s3098 + $0x20] sm:$0xff]
        %v3104 = vld [vmem:[%s3098 + $0x28] sm:$0xff]
        %v3105 = vld [vmem:[%s3098 + $0x30] sm:$0xff]
        %v3106 = vld [vmem:[%s3098 + $0x38] sm:$0xff]
        %v3107 = vld [vmem:[%s3098 + $0x40] sm:$0xff]
        %v3108 = vld [vmem:[%s3098 + $0x48] sm:$0xff]
        %v3109 = vld [vmem:[%s3098 + $0x50] sm:$0xff]
        %v3110 = vld [vmem:[%s3098 + $0x58] sm:$0xff]
        %v3111 = vld [vmem:[%s3098 + $0x60] sm:$0xff]
        %v3112 = vld [vmem:[%s3098 + $0x68] sm:$0xff]
        %v3113 = vld [vmem:[%s3098 + $0x70] sm:$0xff]
        %v3114 = vld [vmem:[%s3098 + $0x78] sm:$0xff]
        %3115 = vmatprep.subr.mxu0 0.0
        %3116 = vmatpush1.msra.mxu0 %v3114
        %3117 = vmatprep.subr.mxu0 0.0
        %3118 = vmatpush1.msra.mxu0 %v3113
        %3119 = vmatprep.subr.mxu0 0.0
        %3120 = vmatpush1.msra.mxu0 %v3112
        %3121 = vmatprep.subr.mxu0 0.0
        %3122 = vmatpush1.msra.mxu0 %v3111
        %3123 = vmatprep.subr.mxu0 0.0
        %3124 = vmatpush1.msra.mxu0 %v3110
        %3125 = vmatprep.subr.mxu0 0.0
        %3126 = vmatpush1.msra.mxu0 %v3109
        %3127 = vmatprep.subr.mxu0 0.0
        %3128 = vmatpush1.msra.mxu0 %v3108
        %3129 = vmatprep.subr.mxu0 0.0
        %3130 = vmatpush1.msra.mxu0 %v3107
        %3131 = vmatprep.subr.mxu0 0.0
        %3132 = vmatpush1.msra.mxu0 %v3106
        %3133 = vmatprep.subr.mxu0 0.0
        %3134 = vmatpush1.msra.mxu0 %v3105
        %3135 = vmatprep.subr.mxu0 0.0
        %3136 = vmatpush1.msra.mxu0 %v3104
        %3137 = vmatprep.subr.mxu0 0.0
        %3138 = vmatpush1.msra.mxu0 %v3103
        %3139 = vmatprep.subr.mxu0 0.0
        %3140 = vmatpush1.msra.mxu0 %v3102
        %3141 = vmatprep.subr.mxu0 0.0
        %3142 = vmatpush1.msra.mxu0 %v3101
        %3143 = vmatprep.subr.mxu0 0.0
        %3144 = vmatpush1.msra.mxu0 %v3100
        %3145 = vmatprep.subr.mxu0 0.0
        %3146 = vmatpush1.msra.mxu0 %v3099
        %3147 = vmatprep.subr.mxu0 0.0
        %3148 = vmatpush2.msra.mxu0 0.0
        %3149 = vmatprep.subr.mxu0 0.0
        %3150 = vmatpush2.msra.mxu0 0.0
        %3151 = vmatprep.subr.mxu0 0.0
        %3152 = vmatpush2.msra.mxu0 0.0
        %3153 = vmatprep.subr.mxu0 0.0
        %3154 = vmatpush2.msra.mxu0 0.0
        %3155 = vmatprep.subr.mxu0 0.0
        %3156 = vmatpush2.msra.mxu0 0.0
        %3157 = vmatprep.subr.mxu0 0.0
        %3158 = vmatpush2.msra.mxu0 0.0
        %3159 = vmatprep.subr.mxu0 0.0
        %3160 = vmatpush2.msra.mxu0 0.0
        %3161 = vmatprep.subr.mxu0 0.0
        %3162 = vmatpush2.msra.mxu0 0.0
        %3163 = vmatprep.subr.mxu0 0.0
        %3164 = vmatpush2.msra.mxu0 0.0
        %3165 = vmatprep.subr.mxu0 0.0
        %3166 = vmatpush2.msra.mxu0 0.0
        %3167 = vmatprep.subr.mxu0 0.0
        %3168 = vmatpush2.msra.mxu0 0.0
        %3169 = vmatprep.subr.mxu0 0.0
        %3170 = vmatpush2.msra.mxu0 0.0
        %3171 = vmatprep.subr.mxu0 0.0
        %3172 = vmatpush2.msra.mxu0 0.0
        %3173 = vmatprep.subr.mxu0 0.0
        %3174 = vmatpush2.msra.mxu0 0.0
        %3175 = vmatprep.subr.mxu0 0.0
        %3176 = vmatpush2.msra.mxu0 0.0
        %3177 = vmatprep.subr.mxu0 0.0
        %3178 = vmatpush2.msra.mxu0 0.0
        %3179 = vmatprep.mubr.f32.mxu0 0.0
        %3180 = vmatmul.mubr.f32.gmra.mxu0 %v3088
        %v3181 = vpop.f32.mrf.mxu0
        %v3182 = vadd.f32 0.0, %v3181
        %v3183 = vpop.f32.mrf.mxu0
        %3184 = vmatprep.mubr.f32.mxu0 0.0
        %3185 = vmatmul.mubr.f32.gmra.mxu0 %v3089
        %v3186 = vpop.f32.mrf.mxu0
        %v3187 = vadd.f32 0.0, %v3186
        %v3188 = vpop.f32.mrf.mxu0
        %3189 = vmatprep.mubr.f32.mxu0 0.0
        %3190 = vmatmul.mubr.f32.gmra.mxu0 %v3090
        %v3191 = vpop.f32.mrf.mxu0
        %v3192 = vadd.f32 0.0, %v3191
        %v3193 = vpop.f32.mrf.mxu0
        %3194 = vmatprep.mubr.f32.mxu0 0.0
        %3195 = vmatmul.mubr.f32.gmra.mxu0 %v3091
        %v3196 = vpop.f32.mrf.mxu0
        %v3197 = vadd.f32 0.0, %v3196
        %v3198 = vpop.f32.mrf.mxu0
        %3199 = vmatprep.mubr.f32.mxu0 0.0
        %3200 = vmatmul.mubr.f32.gmra.mxu0 %v3092
        %v3201 = vpop.f32.mrf.mxu0
        %v3202 = vadd.f32 0.0, %v3201
        %v3203 = vpop.f32.mrf.mxu0
        %3204 = vmatprep.mubr.f32.mxu0 0.0
        %3205 = vmatmul.mubr.f32.gmra.mxu0 %v3093
        %v3206 = vpop.f32.mrf.mxu0
        %v3207 = vadd.f32 0.0, %v3206
        %v3208 = vpop.f32.mrf.mxu0
        %3209 = vmatprep.mubr.f32.mxu0 0.0
        %3210 = vmatmul.mubr.f32.gmra.mxu0 %v3094
        %v3211 = vpop.f32.mrf.mxu0
        %v3212 = vadd.f32 0.0, %v3211
        %v3213 = vpop.f32.mrf.mxu0
        %3214 = vmatprep.mubr.f32.mxu0 0.0
        %3215 = vmatmul.mubr.f32.gmra.mxu0 %v3095
        %v3216 = vpop.f32.mrf.mxu0
        %v3217 = vadd.f32 0.0, %v3216
        %v3218 = vpop.f32.mrf.mxu0
        %3219 = vmatprep.mubr.f32.mxu0 0.0
        %3220 = vmatmul.mubr.f32.gmra.mxu0 %v3096
        %v3221 = vpop.f32.mrf.mxu0
        %v3222 = vadd.f32 0.0, %v3221
        %v3223 = vpop.f32.mrf.mxu0
        %3224 = vmatprep.mubr.f32.mxu0 0.0
        %3225 = vmatmul.mubr.f32.gmra.mxu0 %v3097
        %v3226 = vpop.f32.mrf.mxu0
        %v3227 = vadd.f32 0.0, %v3226
        %v3228 = vpop.f32.mrf.mxu0
        %3229 = vdwg.mxu0
        %v3230 = vadd.f32 %v3078, %v3182
        %v3231 = vadd.f32 %v3079, %v3187
        %v3232 = vadd.f32 %v3080, %v3192
        %v3233 = vadd.f32 %v3081, %v3197
        %v3234 = vadd.f32 %v3082, %v3202
        %v3235 = vadd.f32 %v3083, %v3207
        %v3236 = vadd.f32 %v3084, %v3212
        %v3237 = vadd.f32 %v3085, %v3217
        %v3238 = vadd.f32 %v3086, %v3222
        %v3239 = vadd.f32 %v3087, %v3227
        %v3240 = vld [vmem:[#allocation2 + $0x15] sm:$0xff]
        %v3241 = vld [vmem:[#allocation2 + $0x1d] sm:$0xff]
        %v3242 = vld [vmem:[#allocation2 + $0x25] sm:$0xff]
        %v3243 = vld [vmem:[#allocation2 + $0x2d] sm:$0xff]
        %v3244 = vld [vmem:[#allocation2 + $0x35] sm:$0xff]
        %v3245 = vld [vmem:[#allocation2 + $0x3d] sm:$0xff]
        %v3246 = vld [vmem:[#allocation2 + $0x45] sm:$0xff]
        %v3247 = vld [vmem:[#allocation2 + $0x4d] sm:$0xff]
        %v3248 = vld [vmem:[#allocation2 + $0x55] sm:$0xff]
        %v3249 = vld [vmem:[#allocation2 + $0x5d] sm:$0xff]
        %s3250 = scalar_lea.vmem [#allocation4], 896
        %v3251 = vld [vmem:[%s3250] sm:$0xff]
        %v3252 = vld [vmem:[%s3250 + $0x8] sm:$0xff]
        %v3253 = vld [vmem:[%s3250 + $0x10] sm:$0xff]
        %v3254 = vld [vmem:[%s3250 + $0x18] sm:$0xff]
        %v3255 = vld [vmem:[%s3250 + $0x20] sm:$0xff]
        %v3256 = vld [vmem:[%s3250 + $0x28] sm:$0xff]
        %v3257 = vld [vmem:[%s3250 + $0x30] sm:$0xff]
        %v3258 = vld [vmem:[%s3250 + $0x38] sm:$0xff]
        %v3259 = vld [vmem:[%s3250 + $0x40] sm:$0xff]
        %v3260 = vld [vmem:[%s3250 + $0x48] sm:$0xff]
        %v3261 = vld [vmem:[%s3250 + $0x50] sm:$0xff]
        %v3262 = vld [vmem:[%s3250 + $0x58] sm:$0xff]
        %v3263 = vld [vmem:[%s3250 + $0x60] sm:$0xff]
        %v3264 = vld [vmem:[%s3250 + $0x68] sm:$0xff]
        %v3265 = vld [vmem:[%s3250 + $0x70] sm:$0xff]
        %v3266 = vld [vmem:[%s3250 + $0x78] sm:$0xff]
        %3267 = vmatprep.subr.mxu0 0.0
        %3268 = vmatpush1.msra.mxu0 %v3266
        %3269 = vmatprep.subr.mxu0 0.0
        %3270 = vmatpush1.msra.mxu0 %v3265
        %3271 = vmatprep.subr.mxu0 0.0
        %3272 = vmatpush1.msra.mxu0 %v3264
        %3273 = vmatprep.subr.mxu0 0.0
        %3274 = vmatpush1.msra.mxu0 %v3263
        %3275 = vmatprep.subr.mxu0 0.0
        %3276 = vmatpush1.msra.mxu0 %v3262
        %3277 = vmatprep.subr.mxu0 0.0
        %3278 = vmatpush1.msra.mxu0 %v3261
        %3279 = vmatprep.subr.mxu0 0.0
        %3280 = vmatpush1.msra.mxu0 %v3260
        %3281 = vmatprep.subr.mxu0 0.0
        %3282 = vmatpush1.msra.mxu0 %v3259
        %3283 = vmatprep.subr.mxu0 0.0
        %3284 = vmatpush1.msra.mxu0 %v3258
        %3285 = vmatprep.subr.mxu0 0.0
        %3286 = vmatpush1.msra.mxu0 %v3257
        %3287 = vmatprep.subr.mxu0 0.0
        %3288 = vmatpush1.msra.mxu0 %v3256
        %3289 = vmatprep.subr.mxu0 0.0
        %3290 = vmatpush1.msra.mxu0 %v3255
        %3291 = vmatprep.subr.mxu0 0.0
        %3292 = vmatpush1.msra.mxu0 %v3254
        %3293 = vmatprep.subr.mxu0 0.0
        %3294 = vmatpush1.msra.mxu0 %v3253
        %3295 = vmatprep.subr.mxu0 0.0
        %3296 = vmatpush1.msra.mxu0 %v3252
        %3297 = vmatprep.subr.mxu0 0.0
        %3298 = vmatpush1.msra.mxu0 %v3251
        %3299 = vmatprep.subr.mxu0 0.0
        %3300 = vmatpush2.msra.mxu0 0.0
        %3301 = vmatprep.subr.mxu0 0.0
        %3302 = vmatpush2.msra.mxu0 0.0
        %3303 = vmatprep.subr.mxu0 0.0
        %3304 = vmatpush2.msra.mxu0 0.0
        %3305 = vmatprep.subr.mxu0 0.0
        %3306 = vmatpush2.msra.mxu0 0.0
        %3307 = vmatprep.subr.mxu0 0.0
        %3308 = vmatpush2.msra.mxu0 0.0
        %3309 = vmatprep.subr.mxu0 0.0
        %3310 = vmatpush2.msra.mxu0 0.0
        %3311 = vmatprep.subr.mxu0 0.0
        %3312 = vmatpush2.msra.mxu0 0.0
        %3313 = vmatprep.subr.mxu0 0.0
        %3314 = vmatpush2.msra.mxu0 0.0
        %3315 = vmatprep.subr.mxu0 0.0
        %3316 = vmatpush2.msra.mxu0 0.0
        %3317 = vmatprep.subr.mxu0 0.0
        %3318 = vmatpush2.msra.mxu0 0.0
        %3319 = vmatprep.subr.mxu0 0.0
        %3320 = vmatpush2.msra.mxu0 0.0
        %3321 = vmatprep.subr.mxu0 0.0
        %3322 = vmatpush2.msra.mxu0 0.0
        %3323 = vmatprep.subr.mxu0 0.0
        %3324 = vmatpush2.msra.mxu0 0.0
        %3325 = vmatprep.subr.mxu0 0.0
        %3326 = vmatpush2.msra.mxu0 0.0
        %3327 = vmatprep.subr.mxu0 0.0
        %3328 = vmatpush2.msra.mxu0 0.0
        %3329 = vmatprep.subr.mxu0 0.0
        %3330 = vmatpush2.msra.mxu0 0.0
        %3331 = vmatprep.mubr.f32.mxu0 0.0
        %3332 = vmatmul.mubr.f32.gmra.mxu0 %v3240
        %v3333 = vpop.f32.mrf.mxu0
        %v3334 = vadd.f32 0.0, %v3333
        %v3335 = vpop.f32.mrf.mxu0
        %3336 = vmatprep.mubr.f32.mxu0 0.0
        %3337 = vmatmul.mubr.f32.gmra.mxu0 %v3241
        %v3338 = vpop.f32.mrf.mxu0
        %v3339 = vadd.f32 0.0, %v3338
        %v3340 = vpop.f32.mrf.mxu0
        %3341 = vmatprep.mubr.f32.mxu0 0.0
        %3342 = vmatmul.mubr.f32.gmra.mxu0 %v3242
        %v3343 = vpop.f32.mrf.mxu0
        %v3344 = vadd.f32 0.0, %v3343
        %v3345 = vpop.f32.mrf.mxu0
        %3346 = vmatprep.mubr.f32.mxu0 0.0
        %3347 = vmatmul.mubr.f32.gmra.mxu0 %v3243
        %v3348 = vpop.f32.mrf.mxu0
        %v3349 = vadd.f32 0.0, %v3348
        %v3350 = vpop.f32.mrf.mxu0
        %3351 = vmatprep.mubr.f32.mxu0 0.0
        %3352 = vmatmul.mubr.f32.gmra.mxu0 %v3244
        %v3353 = vpop.f32.mrf.mxu0
        %v3354 = vadd.f32 0.0, %v3353
        %v3355 = vpop.f32.mrf.mxu0
        %3356 = vmatprep.mubr.f32.mxu0 0.0
        %3357 = vmatmul.mubr.f32.gmra.mxu0 %v3245
        %v3358 = vpop.f32.mrf.mxu0
        %v3359 = vadd.f32 0.0, %v3358
        %v3360 = vpop.f32.mrf.mxu0
        %3361 = vmatprep.mubr.f32.mxu0 0.0
        %3362 = vmatmul.mubr.f32.gmra.mxu0 %v3246
        %v3363 = vpop.f32.mrf.mxu0
        %v3364 = vadd.f32 0.0, %v3363
        %v3365 = vpop.f32.mrf.mxu0
        %3366 = vmatprep.mubr.f32.mxu0 0.0
        %3367 = vmatmul.mubr.f32.gmra.mxu0 %v3247
        %v3368 = vpop.f32.mrf.mxu0
        %v3369 = vadd.f32 0.0, %v3368
        %v3370 = vpop.f32.mrf.mxu0
        %3371 = vmatprep.mubr.f32.mxu0 0.0
        %3372 = vmatmul.mubr.f32.gmra.mxu0 %v3248
        %v3373 = vpop.f32.mrf.mxu0
        %v3374 = vadd.f32 0.0, %v3373
        %v3375 = vpop.f32.mrf.mxu0
        %3376 = vmatprep.mubr.f32.mxu0 0.0
        %3377 = vmatmul.mubr.f32.gmra.mxu0 %v3249
        %v3378 = vpop.f32.mrf.mxu0
        %v3379 = vadd.f32 0.0, %v3378
        %v3380 = vpop.f32.mrf.mxu0
        %3381 = vdwg.mxu0
        %v3382 = vadd.f32 %v3230, %v3334
        %v3383 = vadd.f32 %v3231, %v3339
        %v3384 = vadd.f32 %v3232, %v3344
        %v3385 = vadd.f32 %v3233, %v3349
        %v3386 = vadd.f32 %v3234, %v3354
        %v3387 = vadd.f32 %v3235, %v3359
        %v3388 = vadd.f32 %v3236, %v3364
        %v3389 = vadd.f32 %v3237, %v3369
        %v3390 = vadd.f32 %v3238, %v3374
        %v3391 = vadd.f32 %v3239, %v3379
        %v3392 = vld [vmem:[#allocation2 + $0x16] sm:$0xff]
        %v3393 = vld [vmem:[#allocation2 + $0x1e] sm:$0xff]
        %v3394 = vld [vmem:[#allocation2 + $0x26] sm:$0xff]
        %v3395 = vld [vmem:[#allocation2 + $0x2e] sm:$0xff]
        %v3396 = vld [vmem:[#allocation2 + $0x36] sm:$0xff]
        %v3397 = vld [vmem:[#allocation2 + $0x3e] sm:$0xff]
        %v3398 = vld [vmem:[#allocation2 + $0x46] sm:$0xff]
        %v3399 = vld [vmem:[#allocation2 + $0x4e] sm:$0xff]
        %v3400 = vld [vmem:[#allocation2 + $0x56] sm:$0xff]
        %v3401 = vld [vmem:[#allocation2 + $0x5e] sm:$0xff]
        %s3402 = scalar_lea.vmem [#allocation4], 1024
        %v3403 = vld [vmem:[%s3402] sm:$0xff]
        %v3404 = vld [vmem:[%s3402 + $0x8] sm:$0xff]
        %v3405 = vld [vmem:[%s3402 + $0x10] sm:$0xff]
        %v3406 = vld [vmem:[%s3402 + $0x18] sm:$0xff]
        %v3407 = vld [vmem:[%s3402 + $0x20] sm:$0xff]
        %v3408 = vld [vmem:[%s3402 + $0x28] sm:$0xff]
        %v3409 = vld [vmem:[%s3402 + $0x30] sm:$0xff]
        %v3410 = vld [vmem:[%s3402 + $0x38] sm:$0xff]
        %v3411 = vld [vmem:[%s3402 + $0x40] sm:$0xff]
        %v3412 = vld [vmem:[%s3402 + $0x48] sm:$0xff]
        %v3413 = vld [vmem:[%s3402 + $0x50] sm:$0xff]
        %v3414 = vld [vmem:[%s3402 + $0x58] sm:$0xff]
        %v3415 = vld [vmem:[%s3402 + $0x60] sm:$0xff]
        %v3416 = vld [vmem:[%s3402 + $0x68] sm:$0xff]
        %v3417 = vld [vmem:[%s3402 + $0x70] sm:$0xff]
        %v3418 = vld [vmem:[%s3402 + $0x78] sm:$0xff]
        %3419 = vmatprep.subr.mxu0 0.0
        %3420 = vmatpush1.msra.mxu0 %v3418
        %3421 = vmatprep.subr.mxu0 0.0
        %3422 = vmatpush1.msra.mxu0 %v3417
        %3423 = vmatprep.subr.mxu0 0.0
        %3424 = vmatpush1.msra.mxu0 %v3416
        %3425 = vmatprep.subr.mxu0 0.0
        %3426 = vmatpush1.msra.mxu0 %v3415
        %3427 = vmatprep.subr.mxu0 0.0
        %3428 = vmatpush1.msra.mxu0 %v3414
        %3429 = vmatprep.subr.mxu0 0.0
        %3430 = vmatpush1.msra.mxu0 %v3413
        %3431 = vmatprep.subr.mxu0 0.0
        %3432 = vmatpush1.msra.mxu0 %v3412
        %3433 = vmatprep.subr.mxu0 0.0
        %3434 = vmatpush1.msra.mxu0 %v3411
        %3435 = vmatprep.subr.mxu0 0.0
        %3436 = vmatpush1.msra.mxu0 %v3410
        %3437 = vmatprep.subr.mxu0 0.0
        %3438 = vmatpush1.msra.mxu0 %v3409
        %3439 = vmatprep.subr.mxu0 0.0
        %3440 = vmatpush1.msra.mxu0 %v3408
        %3441 = vmatprep.subr.mxu0 0.0
        %3442 = vmatpush1.msra.mxu0 %v3407
        %3443 = vmatprep.subr.mxu0 0.0
        %3444 = vmatpush1.msra.mxu0 %v3406
        %3445 = vmatprep.subr.mxu0 0.0
        %3446 = vmatpush1.msra.mxu0 %v3405
        %3447 = vmatprep.subr.mxu0 0.0
        %3448 = vmatpush1.msra.mxu0 %v3404
        %3449 = vmatprep.subr.mxu0 0.0
        %3450 = vmatpush1.msra.mxu0 %v3403
        %3451 = vmatprep.subr.mxu0 0.0
        %3452 = vmatpush2.msra.mxu0 0.0
        %3453 = vmatprep.subr.mxu0 0.0
        %3454 = vmatpush2.msra.mxu0 0.0
        %3455 = vmatprep.subr.mxu0 0.0
        %3456 = vmatpush2.msra.mxu0 0.0
        %3457 = vmatprep.subr.mxu0 0.0
        %3458 = vmatpush2.msra.mxu0 0.0
        %3459 = vmatprep.subr.mxu0 0.0
        %3460 = vmatpush2.msra.mxu0 0.0
        %3461 = vmatprep.subr.mxu0 0.0
        %3462 = vmatpush2.msra.mxu0 0.0
        %3463 = vmatprep.subr.mxu0 0.0
        %3464 = vmatpush2.msra.mxu0 0.0
        %3465 = vmatprep.subr.mxu0 0.0
        %3466 = vmatpush2.msra.mxu0 0.0
        %3467 = vmatprep.subr.mxu0 0.0
        %3468 = vmatpush2.msra.mxu0 0.0
        %3469 = vmatprep.subr.mxu0 0.0
        %3470 = vmatpush2.msra.mxu0 0.0
        %3471 = vmatprep.subr.mxu0 0.0
        %3472 = vmatpush2.msra.mxu0 0.0
        %3473 = vmatprep.subr.mxu0 0.0
        %3474 = vmatpush2.msra.mxu0 0.0
        %3475 = vmatprep.subr.mxu0 0.0
        %3476 = vmatpush2.msra.mxu0 0.0
        %3477 = vmatprep.subr.mxu0 0.0
        %3478 = vmatpush2.msra.mxu0 0.0
        %3479 = vmatprep.subr.mxu0 0.0
        %3480 = vmatpush2.msra.mxu0 0.0
        %3481 = vmatprep.subr.mxu0 0.0
        %3482 = vmatpush2.msra.mxu0 0.0
        %3483 = vmatprep.mubr.f32.mxu0 0.0
        %3484 = vmatmul.mubr.f32.gmra.mxu0 %v3392
        %v3485 = vpop.f32.mrf.mxu0
        %v3486 = vadd.f32 0.0, %v3485
        %v3487 = vpop.f32.mrf.mxu0
        %3488 = vmatprep.mubr.f32.mxu0 0.0
        %3489 = vmatmul.mubr.f32.gmra.mxu0 %v3393
        %v3490 = vpop.f32.mrf.mxu0
        %v3491 = vadd.f32 0.0, %v3490
        %v3492 = vpop.f32.mrf.mxu0
        %3493 = vmatprep.mubr.f32.mxu0 0.0
        %3494 = vmatmul.mubr.f32.gmra.mxu0 %v3394
        %v3495 = vpop.f32.mrf.mxu0
        %v3496 = vadd.f32 0.0, %v3495
        %v3497 = vpop.f32.mrf.mxu0
        %3498 = vmatprep.mubr.f32.mxu0 0.0
        %3499 = vmatmul.mubr.f32.gmra.mxu0 %v3395
        %v3500 = vpop.f32.mrf.mxu0
        %v3501 = vadd.f32 0.0, %v3500
        %v3502 = vpop.f32.mrf.mxu0
        %3503 = vmatprep.mubr.f32.mxu0 0.0
        %3504 = vmatmul.mubr.f32.gmra.mxu0 %v3396
        %v3505 = vpop.f32.mrf.mxu0
        %v3506 = vadd.f32 0.0, %v3505
        %v3507 = vpop.f32.mrf.mxu0
        %3508 = vmatprep.mubr.f32.mxu0 0.0
        %3509 = vmatmul.mubr.f32.gmra.mxu0 %v3397
        %v3510 = vpop.f32.mrf.mxu0
        %v3511 = vadd.f32 0.0, %v3510
        %v3512 = vpop.f32.mrf.mxu0
        %3513 = vmatprep.mubr.f32.mxu0 0.0
        %3514 = vmatmul.mubr.f32.gmra.mxu0 %v3398
        %v3515 = vpop.f32.mrf.mxu0
        %v3516 = vadd.f32 0.0, %v3515
        %v3517 = vpop.f32.mrf.mxu0
        %3518 = vmatprep.mubr.f32.mxu0 0.0
        %3519 = vmatmul.mubr.f32.gmra.mxu0 %v3399
        %v3520 = vpop.f32.mrf.mxu0
        %v3521 = vadd.f32 0.0, %v3520
        %v3522 = vpop.f32.mrf.mxu0
        %3523 = vmatprep.mubr.f32.mxu0 0.0
        %3524 = vmatmul.mubr.f32.gmra.mxu0 %v3400
        %v3525 = vpop.f32.mrf.mxu0
        %v3526 = vadd.f32 0.0, %v3525
        %v3527 = vpop.f32.mrf.mxu0
        %3528 = vmatprep.mubr.f32.mxu0 0.0
        %3529 = vmatmul.mubr.f32.gmra.mxu0 %v3401
        %v3530 = vpop.f32.mrf.mxu0
        %v3531 = vadd.f32 0.0, %v3530
        %v3532 = vpop.f32.mrf.mxu0
        %3533 = vdwg.mxu0
        %v3534 = vadd.f32 %v3382, %v3486
        %v3535 = vadd.f32 %v3383, %v3491
        %v3536 = vadd.f32 %v3384, %v3496
        %v3537 = vadd.f32 %v3385, %v3501
        %v3538 = vadd.f32 %v3386, %v3506
        %v3539 = vadd.f32 %v3387, %v3511
        %v3540 = vadd.f32 %v3388, %v3516
        %v3541 = vadd.f32 %v3389, %v3521
        %v3542 = vadd.f32 %v3390, %v3526
        %v3543 = vadd.f32 %v3391, %v3531
        %v3544 = vld [vmem:[%s7] sm:$0x1]
        %v3546 = vlaneseq
        %v3547 = vshrl.u32 %v3546, 7
        %v3548 = vsub.s32 0, %v3547
        %v3549 = vrot.slane %v3544, %v3548
        %v3551 = vadd.f32 %v3534, %v3549
        %v3552 = vadd.f32 %v3535, %v3549
        %v3553 = vadd.f32 %v3536, %v3549
        %v3554 = vadd.f32 %v3537, %v3549
        %v3555 = vadd.f32 %v3538, %v3549
        %v3556 = vadd.f32 %v3539, %v3549
        %v3557 = vadd.f32 %v3540, %v3549
        %v3558 = vadd.f32 %v3541, %v3549
        %v3559 = vadd.f32 %v3542, %v3549
        %v3560 = vadd.f32 %v3543, %v3549
        %v3561 = vmul.f32 %v3551, %v2009
        %v3562 = vmul.f32 %v3552, %v2014
        %v3563 = vmul.f32 %v3553, %v2019
        %v3564 = vmul.f32 %v3554, %v2024
        %v3565 = vmul.f32 %v3555, %v2029
        %v3566 = vmul.f32 %v3556, %v2034
        %v3567 = vmul.f32 %v3557, %v2039
        %v3568 = vmul.f32 %v3558, %v2044
        %v3569 = vmul.f32 %v3559, %v2049
        %v3570 = vmul.f32 %v3560, %v2054
        %v3571 = vadd.f32 %v3561, %v3562
        %v3572 = vadd.f32 %v3571, %v3563
        %v3573 = vadd.f32 %v3572, %v3564
        %v3574 = vadd.f32 %v3573, %v3565
        %v3575 = vadd.f32 %v3574, %v3566
        %v3576 = vadd.f32 %v3575, %v3567
        %v3577 = vadd.f32 %v3576, %v3568
        %v3578 = vadd.f32 %v3577, %v3569
        %v3579 = vadd.f32 %v3578, %v3570
        %3580 = vadd.xlane.f32.xlu0 %v3579
        %v3581 = vpop.xlane.xlu0 %3580
        %v3582 = vrot.slane %v3581, 4
        %v3583 = vadd.f32 %v3581, %v3582
        %v3584 = vrot.slane %v3583, 2
        %v3585 = vadd.f32 %v3583, %v3584
        %v3586 = vrot.slane %v3585, 1
        %v3587 = vadd.f32 %v3585, %v3586
        %s3588 = vtos %v3587
        %v3589 = vrcp.pop 512.0
        %s3590 = vtos %v3589
        %s3591 = smul.f32 %s3588, %s3590
        %v3592 = vmul.f32 %v3561, %v3561
        %v3593 = vmul.f32 %v3562, %v3562
        %v3594 = vmul.f32 %v3563, %v3563
        %v3595 = vmul.f32 %v3564, %v3564
        %v3596 = vmul.f32 %v3565, %v3565
        %v3597 = vmul.f32 %v3566, %v3566
        %v3598 = vmul.f32 %v3567, %v3567
        %v3599 = vmul.f32 %v3568, %v3568
        %v3600 = vmul.f32 %v3569, %v3569
        %v3601 = vmul.f32 %v3570, %v3570
        %v3602 = vadd.f32 %v3592, %v3593
        %v3603 = vadd.f32 %v3602, %v3594
        %v3604 = vadd.f32 %v3603, %v3595
        %v3605 = vadd.f32 %v3604, %v3596
        %v3606 = vadd.f32 %v3605, %v3597
        %v3607 = vadd.f32 %v3606, %v3598
        %v3608 = vadd.f32 %v3607, %v3599
        %v3609 = vadd.f32 %v3608, %v3600
        %v3610 = vadd.f32 %v3609, %v3601
        %3611 = vadd.xlane.f32.xlu0 %v3610
        %v3612 = vpop.xlane.xlu0 %3611
        %v3613 = vrot.slane %v3612, 4
        %v3614 = vadd.f32 %v3612, %v3613
        %v3615 = vrot.slane %v3614, 2
        %v3616 = vadd.f32 %v3614, %v3615
        %v3617 = vrot.slane %v3616, 1
        %v3618 = vadd.f32 %v3616, %v3617
        %s3619 = vtos %v3618
        %v3620 = vrcp.pop 512.0
        %s3621 = vtos %v3620
        %s3622 = smul.f32 %s3619, %s3621
        %s3623 = smul.f32 %s3591, %s3591
        %s3624 = ssub.f32 %s3622, %s3623
        %s3625 = smax.f32 %s3624, 0.0
        %v3626 = vld [vmem:[%s8] sm:$0x1]
        %s3627 = sadd.f32 %s3625, 1e-05
        %v3628 = vstv %s3627
        %v3629 = vrsqrt.pop %v3628
        %s3630 = vtos %v3629
        %v3631 = vstv %s3630
        %v3632 = vmul.f32 %v3626, %v3631
        %v3633 = vld [vmem:[%s9] sm:$0x1]
        %v3634 = vstv %s3591
        %v3635 = vmul.f32 %v3634, %v3632
        %v3636 = vsub.f32 %v3633, %v3635
        %v3638 = vlaneseq
        %v3639 = vshrl.u32 %v3638, 7
        %v3640 = vsub.s32 0, %v3639
        %v3641 = vrot.slane %v3632, %v3640
        %v3643 = vmul.f32 %v3551, %v3641
        %v3644 = vmul.f32 %v3552, %v3641
        %v3645 = vmul.f32 %v3553, %v3641
        %v3646 = vmul.f32 %v3554, %v3641
        %v3647 = vmul.f32 %v3555, %v3641
        %v3648 = vmul.f32 %v3556, %v3641
        %v3649 = vmul.f32 %v3557, %v3641
        %v3650 = vmul.f32 %v3558, %v3641
        %v3651 = vmul.f32 %v3559, %v3641
        %v3652 = vmul.f32 %v3560, %v3641
        %v3654 = vlaneseq
        %v3655 = vshrl.u32 %v3654, 7
        %v3656 = vsub.s32 0, %v3655
        %v3657 = vrot.slane %v3636, %v3656
        %v3659 = vadd.f32 %v3643, %v3657
        %v3660 = vadd.f32 %v3644, %v3657
        %v3661 = vadd.f32 %v3645, %v3657
        %v3662 = vadd.f32 %v3646, %v3657
        %v3663 = vadd.f32 %v3647, %v3657
        %v3664 = vadd.f32 %v3648, %v3657
        %v3665 = vadd.f32 %v3649, %v3657
        %v3666 = vadd.f32 %v3650, %v3657
        %v3667 = vadd.f32 %v3651, %v3657
        %v3668 = vadd.f32 %v3652, %v3657
        %v3669 = vmax.f32 %v3659, 0.0
        %v3670 = vmax.f32 %v3660, 0.0
        %v3671 = vmax.f32 %v3661, 0.0
        %v3672 = vmax.f32 %v3662, 0.0
        %v3673 = vmax.f32 %v3663, 0.0
        %v3674 = vmax.f32 %v3664, 0.0
        %v3675 = vmax.f32 %v3665, 0.0
        %v3676 = vmax.f32 %v3666, 0.0
        %v3677 = vmax.f32 %v3667, 0.0
        %v3678 = vmax.f32 %v3668, 0.0
        %v3679 = vmul.f32 %v3669, %v2009
        %v3680 = vmul.f32 %v3670, %v2014
        %v3681 = vmul.f32 %v3671, %v2019
        %v3682 = vmul.f32 %v3672, %v2024
        %v3683 = vmul.f32 %v3673, %v2029
        %v3684 = vmul.f32 %v3674, %v2034
        %v3685 = vmul.f32 %v3675, %v2039
        %v3686 = vmul.f32 %v3676, %v2044
        %v3687 = vmul.f32 %v3677, %v2049
        %v3688 = vmul.f32 %v3678, %v2054
        %3689 = vst [vmem:[#allocation3] sm:$0xff] 0.0
        %3690 = vst [vmem:[#allocation3 + $0x8] sm:$0xff] 0.0
        %3691 = vst [vmem:[#allocation3 + $0x10] sm:$0xff] 0.0
        %3692 = vst [vmem:[#allocation3 + $0x18] sm:$0xff] 0.0
        %3693 = vst [vmem:[#allocation3 + $0x20] sm:$0xff] 0.0
        %3694 = vst [vmem:[#allocation3 + $0x28] sm:$0xff] 0.0
        %3695 = vst [vmem:[#allocation3 + $0x30] sm:$0xff] 0.0
        %3696 = vst [vmem:[#allocation3 + $0x38] sm:$0xff] 0.0
        %3697 = vst [vmem:[#allocation3 + $0x40] sm:$0xff] 0.0
        %3698 = vst [vmem:[#allocation3 + $0x48] sm:$0xff] 0.0
        %3699 = vst [vmem:[#allocation3 + $0x50] sm:$0xff] 0.0
        %3700 = vst [vmem:[#allocation3 + $0x58] sm:$0xff] 0.0
        %3701 = vst [vmem:[#allocation3 + $0x60] sm:$0xff] 0.0
        %3702 = vst [vmem:[#allocation3 + $0xb] sm:$0xff] %v3679
        %3703 = vst [vmem:[#allocation3 + $0x13] sm:$0xff] %v3680
        %3704 = vst [vmem:[#allocation3 + $0x1b] sm:$0xff] %v3681
        %3705 = vst [vmem:[#allocation3 + $0x23] sm:$0xff] %v3682
        %3706 = vst [vmem:[#allocation3 + $0x2b] sm:$0xff] %v3683
        %3707 = vst [vmem:[#allocation3 + $0x33] sm:$0xff] %v3684
        %3708 = vst [vmem:[#allocation3 + $0x3b] sm:$0xff] %v3685
        %3709 = vst [vmem:[#allocation3 + $0x43] sm:$0xff] %v3686
        %3710 = vst [vmem:[#allocation3 + $0x4b] sm:$0xff] %v3687
        %3711 = vst [vmem:[#allocation3 + $0x53] sm:$0xff] %v3688
        %v3712 = vld [vmem:[#allocation3] sm:$0xff]
        %v3713 = vld [vmem:[#allocation3 + $0x8] sm:$0xff]
        %v3714 = vld [vmem:[#allocation3 + $0x10] sm:$0xff]
        %v3715 = vld [vmem:[#allocation3 + $0x18] sm:$0xff]
        %v3716 = vld [vmem:[#allocation3 + $0x20] sm:$0xff]
        %v3717 = vld [vmem:[#allocation3 + $0x28] sm:$0xff]
        %v3718 = vld [vmem:[#allocation3 + $0x30] sm:$0xff]
        %v3719 = vld [vmem:[#allocation3 + $0x38] sm:$0xff]
        %v3720 = vld [vmem:[#allocation3 + $0x40] sm:$0xff]
        %v3721 = vld [vmem:[#allocation3 + $0x48] sm:$0xff]
        %v3722 = vld [vmem:[#allocation7] sm:$0xff]
        %v3723 = vld [vmem:[#allocation7 + $0x8] sm:$0xff]
        %v3724 = vld [vmem:[#allocation7 + $0x10] sm:$0xff]
        %v3725 = vld [vmem:[#allocation7 + $0x18] sm:$0xff]
        %v3726 = vld [vmem:[#allocation7 + $0x20] sm:$0xff]
        %v3727 = vld [vmem:[#allocation7 + $0x28] sm:$0xff]
        %v3728 = vld [vmem:[#allocation7 + $0x30] sm:$0xff]
        %v3729 = vld [vmem:[#allocation7 + $0x38] sm:$0xff]
        %v3730 = vld [vmem:[#allocation7 + $0x40] sm:$0xff]
        %v3731 = vld [vmem:[#allocation7 + $0x48] sm:$0xff]
        %v3732 = vld [vmem:[#allocation7 + $0x50] sm:$0xff]
        %v3733 = vld [vmem:[#allocation7 + $0x58] sm:$0xff]
        %v3734 = vld [vmem:[#allocation7 + $0x60] sm:$0xff]
        %v3735 = vld [vmem:[#allocation7 + $0x68] sm:$0xff]
        %v3736 = vld [vmem:[#allocation7 + $0x70] sm:$0xff]
        %v3737 = vld [vmem:[#allocation7 + $0x78] sm:$0xff]
        %v3738 = vld [vmem:[#allocation3 + $0x1] sm:$0xff]
        %v3739 = vld [vmem:[#allocation3 + $0x9] sm:$0xff]
        %v3740 = vld [vmem:[#allocation3 + $0x11] sm:$0xff]
        %v3741 = vld [vmem:[#allocation3 + $0x19] sm:$0xff]
        %v3742 = vld [vmem:[#allocation3 + $0x21] sm:$0xff]
        %v3743 = vld [vmem:[#allocation3 + $0x29] sm:$0xff]
        %v3744 = vld [vmem:[#allocation3 + $0x31] sm:$0xff]
        %v3745 = vld [vmem:[#allocation3 + $0x39] sm:$0xff]
        %v3746 = vld [vmem:[#allocation3 + $0x41] sm:$0xff]
        %v3747 = vld [vmem:[#allocation3 + $0x49] sm:$0xff]
        %s3748 = scalar_lea.vmem [#allocation7], 128
        %v3749 = vld [vmem:[%s3748] sm:$0xff]
        %v3750 = vld [vmem:[%s3748 + $0x8] sm:$0xff]
        %v3751 = vld [vmem:[%s3748 + $0x10] sm:$0xff]
        %v3752 = vld [vmem:[%s3748 + $0x18] sm:$0xff]
        %v3753 = vld [vmem:[%s3748 + $0x20] sm:$0xff]
        %v3754 = vld [vmem:[%s3748 + $0x28] sm:$0xff]
        %v3755 = vld [vmem:[%s3748 + $0x30] sm:$0xff]
        %v3756 = vld [vmem:[%s3748 + $0x38] sm:$0xff]
        %v3757 = vld [vmem:[%s3748 + $0x40] sm:$0xff]
        %v3758 = vld [vmem:[%s3748 + $0x48] sm:$0xff]
        %v3759 = vld [vmem:[%s3748 + $0x50] sm:$0xff]
        %v3760 = vld [vmem:[%s3748 + $0x58] sm:$0xff]
        %v3761 = vld [vmem:[%s3748 + $0x60] sm:$0xff]
        %v3762 = vld [vmem:[%s3748 + $0x68] sm:$0xff]
        %v3763 = vld [vmem:[%s3748 + $0x70] sm:$0xff]
        %v3764 = vld [vmem:[%s3748 + $0x78] sm:$0xff]
        %3765 = vmatprep.subr.mxu0 0.0
        %3766 = vmatpush1.msra.mxu0 %v3764
        %3767 = vmatprep.subr.mxu0 0.0
        %3768 = vmatpush1.msra.mxu0 %v3763
        %3769 = vmatprep.subr.mxu0 0.0
        %3770 = vmatpush1.msra.mxu0 %v3762
        %3771 = vmatprep.subr.mxu0 0.0
        %3772 = vmatpush1.msra.mxu0 %v3761
        %3773 = vmatprep.subr.mxu0 0.0
        %3774 = vmatpush1.msra.mxu0 %v3760
        %3775 = vmatprep.subr.mxu0 0.0
        %3776 = vmatpush1.msra.mxu0 %v3759
        %3777 = vmatprep.subr.mxu0 0.0
        %3778 = vmatpush1.msra.mxu0 %v3758
        %3779 = vmatprep.subr.mxu0 0.0
        %3780 = vmatpush1.msra.mxu0 %v3757
        %3781 = vmatprep.subr.mxu0 0.0
        %3782 = vmatpush1.msra.mxu0 %v3756
        %3783 = vmatprep.subr.mxu0 0.0
        %3784 = vmatpush1.msra.mxu0 %v3755
        %3785 = vmatprep.subr.mxu0 0.0
        %3786 = vmatpush1.msra.mxu0 %v3754
        %3787 = vmatprep.subr.mxu0 0.0
        %3788 = vmatpush1.msra.mxu0 %v3753
        %3789 = vmatprep.subr.mxu0 0.0
        %3790 = vmatpush1.msra.mxu0 %v3752
        %3791 = vmatprep.subr.mxu0 0.0
        %3792 = vmatpush1.msra.mxu0 %v3751
        %3793 = vmatprep.subr.mxu0 0.0
        %3794 = vmatpush1.msra.mxu0 %v3750
        %3795 = vmatprep.subr.mxu0 0.0
        %3796 = vmatpush1.msra.mxu0 %v3749
        %3797 = vmatprep.subr.mxu0 0.0
        %3798 = vmatpush2.msra.mxu0 0.0
        %3799 = vmatprep.subr.mxu0 0.0
        %3800 = vmatpush2.msra.mxu0 0.0
        %3801 = vmatprep.subr.mxu0 0.0
        %3802 = vmatpush2.msra.mxu0 0.0
        %3803 = vmatprep.subr.mxu0 0.0
        %3804 = vmatpush2.msra.mxu0 0.0
        %3805 = vmatprep.subr.mxu0 0.0
        %3806 = vmatpush2.msra.mxu0 0.0
        %3807 = vmatprep.subr.mxu0 0.0
        %3808 = vmatpush2.msra.mxu0 0.0
        %3809 = vmatprep.subr.mxu0 0.0
        %3810 = vmatpush2.msra.mxu0 0.0
        %3811 = vmatprep.subr.mxu0 0.0
        %3812 = vmatpush2.msra.mxu0 0.0
        %3813 = vmatprep.subr.mxu0 0.0
        %3814 = vmatpush2.msra.mxu0 0.0
        %3815 = vmatprep.subr.mxu0 0.0
        %3816 = vmatpush2.msra.mxu0 0.0
        %3817 = vmatprep.subr.mxu0 0.0
        %3818 = vmatpush2.msra.mxu0 0.0
        %3819 = vmatprep.subr.mxu0 0.0
        %3820 = vmatpush2.msra.mxu0 0.0
        %3821 = vmatprep.subr.mxu0 0.0
        %3822 = vmatpush2.msra.mxu0 0.0
        %3823 = vmatprep.subr.mxu0 0.0
        %3824 = vmatpush2.msra.mxu0 0.0
        %3825 = vmatprep.subr.mxu0 0.0
        %3826 = vmatpush2.msra.mxu0 0.0
        %3827 = vmatprep.subr.mxu0 0.0
        %3828 = vmatpush2.msra.mxu0 0.0
        %3829 = vmatprep.mubr.f32.mxu0 0.0
        %3830 = vmatmul.mubr.f32.gmra.mxu0 %v3738
        %v3831 = vpop.f32.mrf.mxu0
        %v3832 = vadd.f32 0.0, %v3831
        %v3833 = vpop.f32.mrf.mxu0
        %3834 = vmatprep.mubr.f32.mxu0 0.0
        %3835 = vmatmul.mubr.f32.gmra.mxu0 %v3739
        %v3836 = vpop.f32.mrf.mxu0
        %v3837 = vadd.f32 0.0, %v3836
        %v3838 = vpop.f32.mrf.mxu0
        %3839 = vmatprep.mubr.f32.mxu0 0.0
        %3840 = vmatmul.mubr.f32.gmra.mxu0 %v3740
        %v3841 = vpop.f32.mrf.mxu0
        %v3842 = vadd.f32 0.0, %v3841
        %v3843 = vpop.f32.mrf.mxu0
        %3844 = vmatprep.mubr.f32.mxu0 0.0
        %3845 = vmatmul.mubr.f32.gmra.mxu0 %v3741
        %v3846 = vpop.f32.mrf.mxu0
        %v3847 = vadd.f32 0.0, %v3846
        %v3848 = vpop.f32.mrf.mxu0
        %3849 = vmatprep.mubr.f32.mxu0 0.0
        %3850 = vmatmul.mubr.f32.gmra.mxu0 %v3742
        %v3851 = vpop.f32.mrf.mxu0
        %v3852 = vadd.f32 0.0, %v3851
        %v3853 = vpop.f32.mrf.mxu0
        %3854 = vmatprep.mubr.f32.mxu0 0.0
        %3855 = vmatmul.mubr.f32.gmra.mxu0 %v3743
        %v3856 = vpop.f32.mrf.mxu0
        %v3857 = vadd.f32 0.0, %v3856
        %v3858 = vpop.f32.mrf.mxu0
        %3859 = vmatprep.mubr.f32.mxu0 0.0
        %3860 = vmatmul.mubr.f32.gmra.mxu0 %v3744
        %v3861 = vpop.f32.mrf.mxu0
        %v3862 = vadd.f32 0.0, %v3861
        %v3863 = vpop.f32.mrf.mxu0
        %3864 = vmatprep.mubr.f32.mxu0 0.0
        %3865 = vmatmul.mubr.f32.gmra.mxu0 %v3745
        %v3866 = vpop.f32.mrf.mxu0
        %v3867 = vadd.f32 0.0, %v3866
        %v3868 = vpop.f32.mrf.mxu0
        %3869 = vmatprep.mubr.f32.mxu0 0.0
        %3870 = vmatmul.mubr.f32.gmra.mxu0 %v3746
        %v3871 = vpop.f32.mrf.mxu0
        %v3872 = vadd.f32 0.0, %v3871
        %v3873 = vpop.f32.mrf.mxu0
        %3874 = vmatprep.mubr.f32.mxu0 0.0
        %3875 = vmatmul.mubr.f32.gmra.mxu0 %v3747
        %v3876 = vpop.f32.mrf.mxu0
        %v3877 = vadd.f32 0.0, %v3876
        %v3878 = vpop.f32.mrf.mxu0
        %3879 = vdwg.mxu0
        %3880 = vmatprep.subr.mxu0 0.0
        %3881 = vmatpush1.msra.mxu0 %v3737
        %3882 = vmatprep.subr.mxu0 0.0
        %3883 = vmatpush1.msra.mxu0 %v3736
        %3884 = vmatprep.subr.mxu0 0.0
        %3885 = vmatpush1.msra.mxu0 %v3735
        %3886 = vmatprep.subr.mxu0 0.0
        %3887 = vmatpush1.msra.mxu0 %v3734
        %3888 = vmatprep.subr.mxu0 0.0
        %3889 = vmatpush1.msra.mxu0 %v3733
        %3890 = vmatprep.subr.mxu0 0.0
        %3891 = vmatpush1.msra.mxu0 %v3732
        %3892 = vmatprep.subr.mxu0 0.0
        %3893 = vmatpush1.msra.mxu0 %v3731
        %3894 = vmatprep.subr.mxu0 0.0
        %3895 = vmatpush1.msra.mxu0 %v3730
        %3896 = vmatprep.subr.mxu0 0.0
        %3897 = vmatpush1.msra.mxu0 %v3729
        %3898 = vmatprep.subr.mxu0 0.0
        %3899 = vmatpush1.msra.mxu0 %v3728
        %3900 = vmatprep.subr.mxu0 0.0
        %3901 = vmatpush1.msra.mxu0 %v3727
        %3902 = vmatprep.subr.mxu0 0.0
        %3903 = vmatpush1.msra.mxu0 %v3726
        %3904 = vmatprep.subr.mxu0 0.0
        %3905 = vmatpush1.msra.mxu0 %v3725
        %3906 = vmatprep.subr.mxu0 0.0
        %3907 = vmatpush1.msra.mxu0 %v3724
        %3908 = vmatprep.subr.mxu0 0.0
        %3909 = vmatpush1.msra.mxu0 %v3723
        %3910 = vmatprep.subr.mxu0 0.0
        %3911 = vmatpush1.msra.mxu0 %v3722
        %3912 = vmatprep.subr.mxu0 0.0
        %3913 = vmatpush2.msra.mxu0 0.0
        %3914 = vmatprep.subr.mxu0 0.0
        %3915 = vmatpush2.msra.mxu0 0.0
        %3916 = vmatprep.subr.mxu0 0.0
        %3917 = vmatpush2.msra.mxu0 0.0
        %3918 = vmatprep.subr.mxu0 0.0
        %3919 = vmatpush2.msra.mxu0 0.0
        %3920 = vmatprep.subr.mxu0 0.0
        %3921 = vmatpush2.msra.mxu0 0.0
        %3922 = vmatprep.subr.mxu0 0.0
        %3923 = vmatpush2.msra.mxu0 0.0
        %3924 = vmatprep.subr.mxu0 0.0
        %3925 = vmatpush2.msra.mxu0 0.0
        %3926 = vmatprep.subr.mxu0 0.0
        %3927 = vmatpush2.msra.mxu0 0.0
        %3928 = vmatprep.subr.mxu0 0.0
        %3929 = vmatpush2.msra.mxu0 0.0
        %3930 = vmatprep.subr.mxu0 0.0
        %3931 = vmatpush2.msra.mxu0 0.0
        %3932 = vmatprep.subr.mxu0 0.0
        %3933 = vmatpush2.msra.mxu0 0.0
        %3934 = vmatprep.subr.mxu0 0.0
        %3935 = vmatpush2.msra.mxu0 0.0
        %3936 = vmatprep.subr.mxu0 0.0
        %3937 = vmatpush2.msra.mxu0 0.0
        %3938 = vmatprep.subr.mxu0 0.0
        %3939 = vmatpush2.msra.mxu0 0.0
        %3940 = vmatprep.subr.mxu0 0.0
        %3941 = vmatpush2.msra.mxu0 0.0
        %3942 = vmatprep.subr.mxu0 0.0
        %3943 = vmatpush2.msra.mxu0 0.0
        %3944 = vmatprep.mubr.f32.mxu0 0.0
        %3945 = vmatmul.mubr.f32.gmra.mxu0 %v3712
        %v3946 = vpop.f32.mrf.mxu0
        %v3947 = vadd.f32 %v3832, %v3946
        %v3948 = vpop.f32.mrf.mxu0
        %3949 = vmatprep.mubr.f32.mxu0 0.0
        %3950 = vmatmul.mubr.f32.gmra.mxu0 %v3713
        %v3951 = vpop.f32.mrf.mxu0
        %v3952 = vadd.f32 %v3837, %v3951
        %v3953 = vpop.f32.mrf.mxu0
        %3954 = vmatprep.mubr.f32.mxu0 0.0
        %3955 = vmatmul.mubr.f32.gmra.mxu0 %v3714
        %v3956 = vpop.f32.mrf.mxu0
        %v3957 = vadd.f32 %v3842, %v3956
        %v3958 = vpop.f32.mrf.mxu0
        %3959 = vmatprep.mubr.f32.mxu0 0.0
        %3960 = vmatmul.mubr.f32.gmra.mxu0 %v3715
        %v3961 = vpop.f32.mrf.mxu0
        %v3962 = vadd.f32 %v3847, %v3961
        %v3963 = vpop.f32.mrf.mxu0
        %3964 = vmatprep.mubr.f32.mxu0 0.0
        %3965 = vmatmul.mubr.f32.gmra.mxu0 %v3716
        %v3966 = vpop.f32.mrf.mxu0
        %v3967 = vadd.f32 %v3852, %v3966
        %v3968 = vpop.f32.mrf.mxu0
        %3969 = vmatprep.mubr.f32.mxu0 0.0
        %3970 = vmatmul.mubr.f32.gmra.mxu0 %v3717
        %v3971 = vpop.f32.mrf.mxu0
        %v3972 = vadd.f32 %v3857, %v3971
        %v3973 = vpop.f32.mrf.mxu0
        %3974 = vmatprep.mubr.f32.mxu0 0.0
        %3975 = vmatmul.mubr.f32.gmra.mxu0 %v3718
        %v3976 = vpop.f32.mrf.mxu0
        %v3977 = vadd.f32 %v3862, %v3976
        %v3978 = vpop.f32.mrf.mxu0
        %3979 = vmatprep.mubr.f32.mxu0 0.0
        %3980 = vmatmul.mubr.f32.gmra.mxu0 %v3719
        %v3981 = vpop.f32.mrf.mxu0
        %v3982 = vadd.f32 %v3867, %v3981
        %v3983 = vpop.f32.mrf.mxu0
        %3984 = vmatprep.mubr.f32.mxu0 0.0
        %3985 = vmatmul.mubr.f32.gmra.mxu0 %v3720
        %v3986 = vpop.f32.mrf.mxu0
        %v3987 = vadd.f32 %v3872, %v3986
        %v3988 = vpop.f32.mrf.mxu0
        %3989 = vmatprep.mubr.f32.mxu0 0.0
        %3990 = vmatmul.mubr.f32.gmra.mxu0 %v3721
        %v3991 = vpop.f32.mrf.mxu0
        %v3992 = vadd.f32 %v3877, %v3991
        %v3993 = vpop.f32.mrf.mxu0
        %3994 = vdwg.mxu0
        %v3995 = vld [vmem:[#allocation3 + $0x2] sm:$0xff]
        %v3996 = vld [vmem:[#allocation3 + $0xa] sm:$0xff]
        %v3997 = vld [vmem:[#allocation3 + $0x12] sm:$0xff]
        %v3998 = vld [vmem:[#allocation3 + $0x1a] sm:$0xff]
        %v3999 = vld [vmem:[#allocation3 + $0x22] sm:$0xff]
        %v4000 = vld [vmem:[#allocation3 + $0x2a] sm:$0xff]
        %v4001 = vld [vmem:[#allocation3 + $0x32] sm:$0xff]
        %v4002 = vld [vmem:[#allocation3 + $0x3a] sm:$0xff]
        %v4003 = vld [vmem:[#allocation3 + $0x42] sm:$0xff]
        %v4004 = vld [vmem:[#allocation3 + $0x4a] sm:$0xff]
        %s4005 = scalar_lea.vmem [#allocation7], 256
        %v4006 = vld [vmem:[%s4005] sm:$0xff]
        %v4007 = vld [vmem:[%s4005 + $0x8] sm:$0xff]
        %v4008 = vld [vmem:[%s4005 + $0x10] sm:$0xff]
        %v4009 = vld [vmem:[%s4005 + $0x18] sm:$0xff]
        %v4010 = vld [vmem:[%s4005 + $0x20] sm:$0xff]
        %v4011 = vld [vmem:[%s4005 + $0x28] sm:$0xff]
        %v4012 = vld [vmem:[%s4005 + $0x30] sm:$0xff]
        %v4013 = vld [vmem:[%s4005 + $0x38] sm:$0xff]
        %v4014 = vld [vmem:[%s4005 + $0x40] sm:$0xff]
        %v4015 = vld [vmem:[%s4005 + $0x48] sm:$0xff]
        %v4016 = vld [vmem:[%s4005 + $0x50] sm:$0xff]
        %v4017 = vld [vmem:[%s4005 + $0x58] sm:$0xff]
        %v4018 = vld [vmem:[%s4005 + $0x60] sm:$0xff]
        %v4019 = vld [vmem:[%s4005 + $0x68] sm:$0xff]
        %v4020 = vld [vmem:[%s4005 + $0x70] sm:$0xff]
        %v4021 = vld [vmem:[%s4005 + $0x78] sm:$0xff]
        %4022 = vmatprep.subr.mxu0 0.0
        %4023 = vmatpush1.msra.mxu0 %v4021
        %4024 = vmatprep.subr.mxu0 0.0
        %4025 = vmatpush1.msra.mxu0 %v4020
        %4026 = vmatprep.subr.mxu0 0.0
        %4027 = vmatpush1.msra.mxu0 %v4019
        %4028 = vmatprep.subr.mxu0 0.0
        %4029 = vmatpush1.msra.mxu0 %v4018
        %4030 = vmatprep.subr.mxu0 0.0
        %4031 = vmatpush1.msra.mxu0 %v4017
        %4032 = vmatprep.subr.mxu0 0.0
        %4033 = vmatpush1.msra.mxu0 %v4016
        %4034 = vmatprep.subr.mxu0 0.0
        %4035 = vmatpush1.msra.mxu0 %v4015
        %4036 = vmatprep.subr.mxu0 0.0
        %4037 = vmatpush1.msra.mxu0 %v4014
        %4038 = vmatprep.subr.mxu0 0.0
        %4039 = vmatpush1.msra.mxu0 %v4013
        %4040 = vmatprep.subr.mxu0 0.0
        %4041 = vmatpush1.msra.mxu0 %v4012
        %4042 = vmatprep.subr.mxu0 0.0
        %4043 = vmatpush1.msra.mxu0 %v4011
        %4044 = vmatprep.subr.mxu0 0.0
        %4045 = vmatpush1.msra.mxu0 %v4010
        %4046 = vmatprep.subr.mxu0 0.0
        %4047 = vmatpush1.msra.mxu0 %v4009
        %4048 = vmatprep.subr.mxu0 0.0
        %4049 = vmatpush1.msra.mxu0 %v4008
        %4050 = vmatprep.subr.mxu0 0.0
        %4051 = vmatpush1.msra.mxu0 %v4007
        %4052 = vmatprep.subr.mxu0 0.0
        %4053 = vmatpush1.msra.mxu0 %v4006
        %4054 = vmatprep.subr.mxu0 0.0
        %4055 = vmatpush2.msra.mxu0 0.0
        %4056 = vmatprep.subr.mxu0 0.0
        %4057 = vmatpush2.msra.mxu0 0.0
        %4058 = vmatprep.subr.mxu0 0.0
        %4059 = vmatpush2.msra.mxu0 0.0
        %4060 = vmatprep.subr.mxu0 0.0
        %4061 = vmatpush2.msra.mxu0 0.0
        %4062 = vmatprep.subr.mxu0 0.0
        %4063 = vmatpush2.msra.mxu0 0.0
        %4064 = vmatprep.subr.mxu0 0.0
        %4065 = vmatpush2.msra.mxu0 0.0
        %4066 = vmatprep.subr.mxu0 0.0
        %4067 = vmatpush2.msra.mxu0 0.0
        %4068 = vmatprep.subr.mxu0 0.0
        %4069 = vmatpush2.msra.mxu0 0.0
        %4070 = vmatprep.subr.mxu0 0.0
        %4071 = vmatpush2.msra.mxu0 0.0
        %4072 = vmatprep.subr.mxu0 0.0
        %4073 = vmatpush2.msra.mxu0 0.0
        %4074 = vmatprep.subr.mxu0 0.0
        %4075 = vmatpush2.msra.mxu0 0.0
        %4076 = vmatprep.subr.mxu0 0.0
        %4077 = vmatpush2.msra.mxu0 0.0
        %4078 = vmatprep.subr.mxu0 0.0
        %4079 = vmatpush2.msra.mxu0 0.0
        %4080 = vmatprep.subr.mxu0 0.0
        %4081 = vmatpush2.msra.mxu0 0.0
        %4082 = vmatprep.subr.mxu0 0.0
        %4083 = vmatpush2.msra.mxu0 0.0
        %4084 = vmatprep.subr.mxu0 0.0
        %4085 = vmatpush2.msra.mxu0 0.0
        %4086 = vmatprep.mubr.f32.mxu0 0.0
        %4087 = vmatmul.mubr.f32.gmra.mxu0 %v3995
        %v4088 = vpop.f32.mrf.mxu0
        %v4089 = vadd.f32 0.0, %v4088
        %v4090 = vpop.f32.mrf.mxu0
        %4091 = vmatprep.mubr.f32.mxu0 0.0
        %4092 = vmatmul.mubr.f32.gmra.mxu0 %v3996
        %v4093 = vpop.f32.mrf.mxu0
        %v4094 = vadd.f32 0.0, %v4093
        %v4095 = vpop.f32.mrf.mxu0
        %4096 = vmatprep.mubr.f32.mxu0 0.0
        %4097 = vmatmul.mubr.f32.gmra.mxu0 %v3997
        %v4098 = vpop.f32.mrf.mxu0
        %v4099 = vadd.f32 0.0, %v4098
        %v4100 = vpop.f32.mrf.mxu0
        %4101 = vmatprep.mubr.f32.mxu0 0.0
        %4102 = vmatmul.mubr.f32.gmra.mxu0 %v3998
        %v4103 = vpop.f32.mrf.mxu0
        %v4104 = vadd.f32 0.0, %v4103
        %v4105 = vpop.f32.mrf.mxu0
        %4106 = vmatprep.mubr.f32.mxu0 0.0
        %4107 = vmatmul.mubr.f32.gmra.mxu0 %v3999
        %v4108 = vpop.f32.mrf.mxu0
        %v4109 = vadd.f32 0.0, %v4108
        %v4110 = vpop.f32.mrf.mxu0
        %4111 = vmatprep.mubr.f32.mxu0 0.0
        %4112 = vmatmul.mubr.f32.gmra.mxu0 %v4000
        %v4113 = vpop.f32.mrf.mxu0
        %v4114 = vadd.f32 0.0, %v4113
        %v4115 = vpop.f32.mrf.mxu0
        %4116 = vmatprep.mubr.f32.mxu0 0.0
        %4117 = vmatmul.mubr.f32.gmra.mxu0 %v4001
        %v4118 = vpop.f32.mrf.mxu0
        %v4119 = vadd.f32 0.0, %v4118
        %v4120 = vpop.f32.mrf.mxu0
        %4121 = vmatprep.mubr.f32.mxu0 0.0
        %4122 = vmatmul.mubr.f32.gmra.mxu0 %v4002
        %v4123 = vpop.f32.mrf.mxu0
        %v4124 = vadd.f32 0.0, %v4123
        %v4125 = vpop.f32.mrf.mxu0
        %4126 = vmatprep.mubr.f32.mxu0 0.0
        %4127 = vmatmul.mubr.f32.gmra.mxu0 %v4003
        %v4128 = vpop.f32.mrf.mxu0
        %v4129 = vadd.f32 0.0, %v4128
        %v4130 = vpop.f32.mrf.mxu0
        %4131 = vmatprep.mubr.f32.mxu0 0.0
        %4132 = vmatmul.mubr.f32.gmra.mxu0 %v4004
        %v4133 = vpop.f32.mrf.mxu0
        %v4134 = vadd.f32 0.0, %v4133
        %v4135 = vpop.f32.mrf.mxu0
        %4136 = vdwg.mxu0
        %v4137 = vadd.f32 %v3947, %v4089
        %v4138 = vadd.f32 %v3952, %v4094
        %v4139 = vadd.f32 %v3957, %v4099
        %v4140 = vadd.f32 %v3962, %v4104
        %v4141 = vadd.f32 %v3967, %v4109
        %v4142 = vadd.f32 %v3972, %v4114
        %v4143 = vadd.f32 %v3977, %v4119
        %v4144 = vadd.f32 %v3982, %v4124
        %v4145 = vadd.f32 %v3987, %v4129
        %v4146 = vadd.f32 %v3992, %v4134
        %v4147 = vld [vmem:[#allocation3 + $0xa] sm:$0xff]
        %v4148 = vld [vmem:[#allocation3 + $0x12] sm:$0xff]
        %v4149 = vld [vmem:[#allocation3 + $0x1a] sm:$0xff]
        %v4150 = vld [vmem:[#allocation3 + $0x22] sm:$0xff]
        %v4151 = vld [vmem:[#allocation3 + $0x2a] sm:$0xff]
        %v4152 = vld [vmem:[#allocation3 + $0x32] sm:$0xff]
        %v4153 = vld [vmem:[#allocation3 + $0x3a] sm:$0xff]
        %v4154 = vld [vmem:[#allocation3 + $0x42] sm:$0xff]
        %v4155 = vld [vmem:[#allocation3 + $0x4a] sm:$0xff]
        %v4156 = vld [vmem:[#allocation3 + $0x52] sm:$0xff]
        %s4157 = scalar_lea.vmem [#allocation7], 384
        %v4158 = vld [vmem:[%s4157] sm:$0xff]
        %v4159 = vld [vmem:[%s4157 + $0x8] sm:$0xff]
        %v4160 = vld [vmem:[%s4157 + $0x10] sm:$0xff]
        %v4161 = vld [vmem:[%s4157 + $0x18] sm:$0xff]
        %v4162 = vld [vmem:[%s4157 + $0x20] sm:$0xff]
        %v4163 = vld [vmem:[%s4157 + $0x28] sm:$0xff]
        %v4164 = vld [vmem:[%s4157 + $0x30] sm:$0xff]
        %v4165 = vld [vmem:[%s4157 + $0x38] sm:$0xff]
        %v4166 = vld [vmem:[%s4157 + $0x40] sm:$0xff]
        %v4167 = vld [vmem:[%s4157 + $0x48] sm:$0xff]
        %v4168 = vld [vmem:[%s4157 + $0x50] sm:$0xff]
        %v4169 = vld [vmem:[%s4157 + $0x58] sm:$0xff]
        %v4170 = vld [vmem:[%s4157 + $0x60] sm:$0xff]
        %v4171 = vld [vmem:[%s4157 + $0x68] sm:$0xff]
        %v4172 = vld [vmem:[%s4157 + $0x70] sm:$0xff]
        %v4173 = vld [vmem:[%s4157 + $0x78] sm:$0xff]
        %4174 = vmatprep.subr.mxu0 0.0
        %4175 = vmatpush1.msra.mxu0 %v4173
        %4176 = vmatprep.subr.mxu0 0.0
        %4177 = vmatpush1.msra.mxu0 %v4172
        %4178 = vmatprep.subr.mxu0 0.0
        %4179 = vmatpush1.msra.mxu0 %v4171
        %4180 = vmatprep.subr.mxu0 0.0
        %4181 = vmatpush1.msra.mxu0 %v4170
        %4182 = vmatprep.subr.mxu0 0.0
        %4183 = vmatpush1.msra.mxu0 %v4169
        %4184 = vmatprep.subr.mxu0 0.0
        %4185 = vmatpush1.msra.mxu0 %v4168
        %4186 = vmatprep.subr.mxu0 0.0
        %4187 = vmatpush1.msra.mxu0 %v4167
        %4188 = vmatprep.subr.mxu0 0.0
        %4189 = vmatpush1.msra.mxu0 %v4166
        %4190 = vmatprep.subr.mxu0 0.0
        %4191 = vmatpush1.msra.mxu0 %v4165
        %4192 = vmatprep.subr.mxu0 0.0
        %4193 = vmatpush1.msra.mxu0 %v4164
        %4194 = vmatprep.subr.mxu0 0.0
        %4195 = vmatpush1.msra.mxu0 %v4163
        %4196 = vmatprep.subr.mxu0 0.0
        %4197 = vmatpush1.msra.mxu0 %v4162
        %4198 = vmatprep.subr.mxu0 0.0
        %4199 = vmatpush1.msra.mxu0 %v4161
        %4200 = vmatprep.subr.mxu0 0.0
        %4201 = vmatpush1.msra.mxu0 %v4160
        %4202 = vmatprep.subr.mxu0 0.0
        %4203 = vmatpush1.msra.mxu0 %v4159
        %4204 = vmatprep.subr.mxu0 0.0
        %4205 = vmatpush1.msra.mxu0 %v4158
        %4206 = vmatprep.subr.mxu0 0.0
        %4207 = vmatpush2.msra.mxu0 0.0
        %4208 = vmatprep.subr.mxu0 0.0
        %4209 = vmatpush2.msra.mxu0 0.0
        %4210 = vmatprep.subr.mxu0 0.0
        %4211 = vmatpush2.msra.mxu0 0.0
        %4212 = vmatprep.subr.mxu0 0.0
        %4213 = vmatpush2.msra.mxu0 0.0
        %4214 = vmatprep.subr.mxu0 0.0
        %4215 = vmatpush2.msra.mxu0 0.0
        %4216 = vmatprep.subr.mxu0 0.0
        %4217 = vmatpush2.msra.mxu0 0.0
        %4218 = vmatprep.subr.mxu0 0.0
        %4219 = vmatpush2.msra.mxu0 0.0
        %4220 = vmatprep.subr.mxu0 0.0
        %4221 = vmatpush2.msra.mxu0 0.0
        %4222 = vmatprep.subr.mxu0 0.0
        %4223 = vmatpush2.msra.mxu0 0.0
        %4224 = vmatprep.subr.mxu0 0.0
        %4225 = vmatpush2.msra.mxu0 0.0
        %4226 = vmatprep.subr.mxu0 0.0
        %4227 = vmatpush2.msra.mxu0 0.0
        %4228 = vmatprep.subr.mxu0 0.0
        %4229 = vmatpush2.msra.mxu0 0.0
        %4230 = vmatprep.subr.mxu0 0.0
        %4231 = vmatpush2.msra.mxu0 0.0
        %4232 = vmatprep.subr.mxu0 0.0
        %4233 = vmatpush2.msra.mxu0 0.0
        %4234 = vmatprep.subr.mxu0 0.0
        %4235 = vmatpush2.msra.mxu0 0.0
        %4236 = vmatprep.subr.mxu0 0.0
        %4237 = vmatpush2.msra.mxu0 0.0
        %4238 = vmatprep.mubr.f32.mxu0 0.0
        %4239 = vmatmul.mubr.f32.gmra.mxu0 %v4147
        %v4240 = vpop.f32.mrf.mxu0
        %v4241 = vadd.f32 0.0, %v4240
        %v4242 = vpop.f32.mrf.mxu0
        %4243 = vmatprep.mubr.f32.mxu0 0.0
        %4244 = vmatmul.mubr.f32.gmra.mxu0 %v4148
        %v4245 = vpop.f32.mrf.mxu0
        %v4246 = vadd.f32 0.0, %v4245
        %v4247 = vpop.f32.mrf.mxu0
        %4248 = vmatprep.mubr.f32.mxu0 0.0
        %4249 = vmatmul.mubr.f32.gmra.mxu0 %v4149
        %v4250 = vpop.f32.mrf.mxu0
        %v4251 = vadd.f32 0.0, %v4250
        %v4252 = vpop.f32.mrf.mxu0
        %4253 = vmatprep.mubr.f32.mxu0 0.0
        %4254 = vmatmul.mubr.f32.gmra.mxu0 %v4150
        %v4255 = vpop.f32.mrf.mxu0
        %v4256 = vadd.f32 0.0, %v4255
        %v4257 = vpop.f32.mrf.mxu0
        %4258 = vmatprep.mubr.f32.mxu0 0.0
        %4259 = vmatmul.mubr.f32.gmra.mxu0 %v4151
        %v4260 = vpop.f32.mrf.mxu0
        %v4261 = vadd.f32 0.0, %v4260
        %v4262 = vpop.f32.mrf.mxu0
        %4263 = vmatprep.mubr.f32.mxu0 0.0
        %4264 = vmatmul.mubr.f32.gmra.mxu0 %v4152
        %v4265 = vpop.f32.mrf.mxu0
        %v4266 = vadd.f32 0.0, %v4265
        %v4267 = vpop.f32.mrf.mxu0
        %4268 = vmatprep.mubr.f32.mxu0 0.0
        %4269 = vmatmul.mubr.f32.gmra.mxu0 %v4153
        %v4270 = vpop.f32.mrf.mxu0
        %v4271 = vadd.f32 0.0, %v4270
        %v4272 = vpop.f32.mrf.mxu0
        %4273 = vmatprep.mubr.f32.mxu0 0.0
        %4274 = vmatmul.mubr.f32.gmra.mxu0 %v4154
        %v4275 = vpop.f32.mrf.mxu0
        %v4276 = vadd.f32 0.0, %v4275
        %v4277 = vpop.f32.mrf.mxu0
        %4278 = vmatprep.mubr.f32.mxu0 0.0
        %4279 = vmatmul.mubr.f32.gmra.mxu0 %v4155
        %v4280 = vpop.f32.mrf.mxu0
        %v4281 = vadd.f32 0.0, %v4280
        %v4282 = vpop.f32.mrf.mxu0
        %4283 = vmatprep.mubr.f32.mxu0 0.0
        %4284 = vmatmul.mubr.f32.gmra.mxu0 %v4156
        %v4285 = vpop.f32.mrf.mxu0
        %v4286 = vadd.f32 0.0, %v4285
        %v4287 = vpop.f32.mrf.mxu0
        %4288 = vdwg.mxu0
        %v4289 = vadd.f32 %v4137, %v4241
        %v4290 = vadd.f32 %v4138, %v4246
        %v4291 = vadd.f32 %v4139, %v4251
        %v4292 = vadd.f32 %v4140, %v4256
        %v4293 = vadd.f32 %v4141, %v4261
        %v4294 = vadd.f32 %v4142, %v4266
        %v4295 = vadd.f32 %v4143, %v4271
        %v4296 = vadd.f32 %v4144, %v4276
        %v4297 = vadd.f32 %v4145, %v4281
        %v4298 = vadd.f32 %v4146, %v4286
        %v4299 = vld [vmem:[#allocation3 + $0xb] sm:$0xff]
        %v4300 = vld [vmem:[#allocation3 + $0x13] sm:$0xff]
        %v4301 = vld [vmem:[#allocation3 + $0x1b] sm:$0xff]
        %v4302 = vld [vmem:[#allocation3 + $0x23] sm:$0xff]
        %v4303 = vld [vmem:[#allocation3 + $0x2b] sm:$0xff]
        %v4304 = vld [vmem:[#allocation3 + $0x33] sm:$0xff]
        %v4305 = vld [vmem:[#allocation3 + $0x3b] sm:$0xff]
        %v4306 = vld [vmem:[#allocation3 + $0x43] sm:$0xff]
        %v4307 = vld [vmem:[#allocation3 + $0x4b] sm:$0xff]
        %v4308 = vld [vmem:[#allocation3 + $0x53] sm:$0xff]
        %s4309 = scalar_lea.vmem [#allocation7], 512
        %v4310 = vld [vmem:[%s4309] sm:$0xff]
        %v4311 = vld [vmem:[%s4309 + $0x8] sm:$0xff]
        %v4312 = vld [vmem:[%s4309 + $0x10] sm:$0xff]
        %v4313 = vld [vmem:[%s4309 + $0x18] sm:$0xff]
        %v4314 = vld [vmem:[%s4309 + $0x20] sm:$0xff]
        %v4315 = vld [vmem:[%s4309 + $0x28] sm:$0xff]
        %v4316 = vld [vmem:[%s4309 + $0x30] sm:$0xff]
        %v4317 = vld [vmem:[%s4309 + $0x38] sm:$0xff]
        %v4318 = vld [vmem:[%s4309 + $0x40] sm:$0xff]
        %v4319 = vld [vmem:[%s4309 + $0x48] sm:$0xff]
        %v4320 = vld [vmem:[%s4309 + $0x50] sm:$0xff]
        %v4321 = vld [vmem:[%s4309 + $0x58] sm:$0xff]
        %v4322 = vld [vmem:[%s4309 + $0x60] sm:$0xff]
        %v4323 = vld [vmem:[%s4309 + $0x68] sm:$0xff]
        %v4324 = vld [vmem:[%s4309 + $0x70] sm:$0xff]
        %v4325 = vld [vmem:[%s4309 + $0x78] sm:$0xff]
        %4326 = vmatprep.subr.mxu0 0.0
        %4327 = vmatpush1.msra.mxu0 %v4325
        %4328 = vmatprep.subr.mxu0 0.0
        %4329 = vmatpush1.msra.mxu0 %v4324
        %4330 = vmatprep.subr.mxu0 0.0
        %4331 = vmatpush1.msra.mxu0 %v4323
        %4332 = vmatprep.subr.mxu0 0.0
        %4333 = vmatpush1.msra.mxu0 %v4322
        %4334 = vmatprep.subr.mxu0 0.0
        %4335 = vmatpush1.msra.mxu0 %v4321
        %4336 = vmatprep.subr.mxu0 0.0
        %4337 = vmatpush1.msra.mxu0 %v4320
        %4338 = vmatprep.subr.mxu0 0.0
        %4339 = vmatpush1.msra.mxu0 %v4319
        %4340 = vmatprep.subr.mxu0 0.0
        %4341 = vmatpush1.msra.mxu0 %v4318
        %4342 = vmatprep.subr.mxu0 0.0
        %4343 = vmatpush1.msra.mxu0 %v4317
        %4344 = vmatprep.subr.mxu0 0.0
        %4345 = vmatpush1.msra.mxu0 %v4316
        %4346 = vmatprep.subr.mxu0 0.0
        %4347 = vmatpush1.msra.mxu0 %v4315
        %4348 = vmatprep.subr.mxu0 0.0
        %4349 = vmatpush1.msra.mxu0 %v4314
        %4350 = vmatprep.subr.mxu0 0.0
        %4351 = vmatpush1.msra.mxu0 %v4313
        %4352 = vmatprep.subr.mxu0 0.0
        %4353 = vmatpush1.msra.mxu0 %v4312
        %4354 = vmatprep.subr.mxu0 0.0
        %4355 = vmatpush1.msra.mxu0 %v4311
        %4356 = vmatprep.subr.mxu0 0.0
        %4357 = vmatpush1.msra.mxu0 %v4310
        %4358 = vmatprep.subr.mxu0 0.0
        %4359 = vmatpush2.msra.mxu0 0.0
        %4360 = vmatprep.subr.mxu0 0.0
        %4361 = vmatpush2.msra.mxu0 0.0
        %4362 = vmatprep.subr.mxu0 0.0
        %4363 = vmatpush2.msra.mxu0 0.0
        %4364 = vmatprep.subr.mxu0 0.0
        %4365 = vmatpush2.msra.mxu0 0.0
        %4366 = vmatprep.subr.mxu0 0.0
        %4367 = vmatpush2.msra.mxu0 0.0
        %4368 = vmatprep.subr.mxu0 0.0
        %4369 = vmatpush2.msra.mxu0 0.0
        %4370 = vmatprep.subr.mxu0 0.0
        %4371 = vmatpush2.msra.mxu0 0.0
        %4372 = vmatprep.subr.mxu0 0.0
        %4373 = vmatpush2.msra.mxu0 0.0
        %4374 = vmatprep.subr.mxu0 0.0
        %4375 = vmatpush2.msra.mxu0 0.0
        %4376 = vmatprep.subr.mxu0 0.0
        %4377 = vmatpush2.msra.mxu0 0.0
        %4378 = vmatprep.subr.mxu0 0.0
        %4379 = vmatpush2.msra.mxu0 0.0
        %4380 = vmatprep.subr.mxu0 0.0
        %4381 = vmatpush2.msra.mxu0 0.0
        %4382 = vmatprep.subr.mxu0 0.0
        %4383 = vmatpush2.msra.mxu0 0.0
        %4384 = vmatprep.subr.mxu0 0.0
        %4385 = vmatpush2.msra.mxu0 0.0
        %4386 = vmatprep.subr.mxu0 0.0
        %4387 = vmatpush2.msra.mxu0 0.0
        %4388 = vmatprep.subr.mxu0 0.0
        %4389 = vmatpush2.msra.mxu0 0.0
        %4390 = vmatprep.mubr.f32.mxu0 0.0
        %4391 = vmatmul.mubr.f32.gmra.mxu0 %v4299
        %v4392 = vpop.f32.mrf.mxu0
        %v4393 = vadd.f32 0.0, %v4392
        %v4394 = vpop.f32.mrf.mxu0
        %4395 = vmatprep.mubr.f32.mxu0 0.0
        %4396 = vmatmul.mubr.f32.gmra.mxu0 %v4300
        %v4397 = vpop.f32.mrf.mxu0
        %v4398 = vadd.f32 0.0, %v4397
        %v4399 = vpop.f32.mrf.mxu0
        %4400 = vmatprep.mubr.f32.mxu0 0.0
        %4401 = vmatmul.mubr.f32.gmra.mxu0 %v4301
        %v4402 = vpop.f32.mrf.mxu0
        %v4403 = vadd.f32 0.0, %v4402
        %v4404 = vpop.f32.mrf.mxu0
        %4405 = vmatprep.mubr.f32.mxu0 0.0
        %4406 = vmatmul.mubr.f32.gmra.mxu0 %v4302
        %v4407 = vpop.f32.mrf.mxu0
        %v4408 = vadd.f32 0.0, %v4407
        %v4409 = vpop.f32.mrf.mxu0
        %4410 = vmatprep.mubr.f32.mxu0 0.0
        %4411 = vmatmul.mubr.f32.gmra.mxu0 %v4303
        %v4412 = vpop.f32.mrf.mxu0
        %v4413 = vadd.f32 0.0, %v4412
        %v4414 = vpop.f32.mrf.mxu0
        %4415 = vmatprep.mubr.f32.mxu0 0.0
        %4416 = vmatmul.mubr.f32.gmra.mxu0 %v4304
        %v4417 = vpop.f32.mrf.mxu0
        %v4418 = vadd.f32 0.0, %v4417
        %v4419 = vpop.f32.mrf.mxu0
        %4420 = vmatprep.mubr.f32.mxu0 0.0
        %4421 = vmatmul.mubr.f32.gmra.mxu0 %v4305
        %v4422 = vpop.f32.mrf.mxu0
        %v4423 = vadd.f32 0.0, %v4422
        %v4424 = vpop.f32.mrf.mxu0
        %4425 = vmatprep.mubr.f32.mxu0 0.0
        %4426 = vmatmul.mubr.f32.gmra.mxu0 %v4306
        %v4427 = vpop.f32.mrf.mxu0
        %v4428 = vadd.f32 0.0, %v4427
        %v4429 = vpop.f32.mrf.mxu0
        %4430 = vmatprep.mubr.f32.mxu0 0.0
        %4431 = vmatmul.mubr.f32.gmra.mxu0 %v4307
        %v4432 = vpop.f32.mrf.mxu0
        %v4433 = vadd.f32 0.0, %v4432
        %v4434 = vpop.f32.mrf.mxu0
        %4435 = vmatprep.mubr.f32.mxu0 0.0
        %4436 = vmatmul.mubr.f32.gmra.mxu0 %v4308
        %v4437 = vpop.f32.mrf.mxu0
        %v4438 = vadd.f32 0.0, %v4437
        %v4439 = vpop.f32.mrf.mxu0
        %4440 = vdwg.mxu0
        %v4441 = vadd.f32 %v4289, %v4393
        %v4442 = vadd.f32 %v4290, %v4398
        %v4443 = vadd.f32 %v4291, %v4403
        %v4444 = vadd.f32 %v4292, %v4408
        %v4445 = vadd.f32 %v4293, %v4413
        %v4446 = vadd.f32 %v4294, %v4418
        %v4447 = vadd.f32 %v4295, %v4423
        %v4448 = vadd.f32 %v4296, %v4428
        %v4449 = vadd.f32 %v4297, %v4433
        %v4450 = vadd.f32 %v4298, %v4438
        %v4451 = vld [vmem:[#allocation3 + $0xc] sm:$0xff]
        %v4452 = vld [vmem:[#allocation3 + $0x14] sm:$0xff]
        %v4453 = vld [vmem:[#allocation3 + $0x1c] sm:$0xff]
        %v4454 = vld [vmem:[#allocation3 + $0x24] sm:$0xff]
        %v4455 = vld [vmem:[#allocation3 + $0x2c] sm:$0xff]
        %v4456 = vld [vmem:[#allocation3 + $0x34] sm:$0xff]
        %v4457 = vld [vmem:[#allocation3 + $0x3c] sm:$0xff]
        %v4458 = vld [vmem:[#allocation3 + $0x44] sm:$0xff]
        %v4459 = vld [vmem:[#allocation3 + $0x4c] sm:$0xff]
        %v4460 = vld [vmem:[#allocation3 + $0x54] sm:$0xff]
        %s4461 = scalar_lea.vmem [#allocation7], 640
        %v4462 = vld [vmem:[%s4461] sm:$0xff]
        %v4463 = vld [vmem:[%s4461 + $0x8] sm:$0xff]
        %v4464 = vld [vmem:[%s4461 + $0x10] sm:$0xff]
        %v4465 = vld [vmem:[%s4461 + $0x18] sm:$0xff]
        %v4466 = vld [vmem:[%s4461 + $0x20] sm:$0xff]
        %v4467 = vld [vmem:[%s4461 + $0x28] sm:$0xff]
        %v4468 = vld [vmem:[%s4461 + $0x30] sm:$0xff]
        %v4469 = vld [vmem:[%s4461 + $0x38] sm:$0xff]
        %v4470 = vld [vmem:[%s4461 + $0x40] sm:$0xff]
        %v4471 = vld [vmem:[%s4461 + $0x48] sm:$0xff]
        %v4472 = vld [vmem:[%s4461 + $0x50] sm:$0xff]
        %v4473 = vld [vmem:[%s4461 + $0x58] sm:$0xff]
        %v4474 = vld [vmem:[%s4461 + $0x60] sm:$0xff]
        %v4475 = vld [vmem:[%s4461 + $0x68] sm:$0xff]
        %v4476 = vld [vmem:[%s4461 + $0x70] sm:$0xff]
        %v4477 = vld [vmem:[%s4461 + $0x78] sm:$0xff]
        %4478 = vmatprep.subr.mxu0 0.0
        %4479 = vmatpush1.msra.mxu0 %v4477
        %4480 = vmatprep.subr.mxu0 0.0
        %4481 = vmatpush1.msra.mxu0 %v4476
        %4482 = vmatprep.subr.mxu0 0.0
        %4483 = vmatpush1.msra.mxu0 %v4475
        %4484 = vmatprep.subr.mxu0 0.0
        %4485 = vmatpush1.msra.mxu0 %v4474
        %4486 = vmatprep.subr.mxu0 0.0
        %4487 = vmatpush1.msra.mxu0 %v4473
        %4488 = vmatprep.subr.mxu0 0.0
        %4489 = vmatpush1.msra.mxu0 %v4472
        %4490 = vmatprep.subr.mxu0 0.0
        %4491 = vmatpush1.msra.mxu0 %v4471
        %4492 = vmatprep.subr.mxu0 0.0
        %4493 = vmatpush1.msra.mxu0 %v4470
        %4494 = vmatprep.subr.mxu0 0.0
        %4495 = vmatpush1.msra.mxu0 %v4469
        %4496 = vmatprep.subr.mxu0 0.0
        %4497 = vmatpush1.msra.mxu0 %v4468
        %4498 = vmatprep.subr.mxu0 0.0
        %4499 = vmatpush1.msra.mxu0 %v4467
        %4500 = vmatprep.subr.mxu0 0.0
        %4501 = vmatpush1.msra.mxu0 %v4466
        %4502 = vmatprep.subr.mxu0 0.0
        %4503 = vmatpush1.msra.mxu0 %v4465
        %4504 = vmatprep.subr.mxu0 0.0
        %4505 = vmatpush1.msra.mxu0 %v4464
        %4506 = vmatprep.subr.mxu0 0.0
        %4507 = vmatpush1.msra.mxu0 %v4463
        %4508 = vmatprep.subr.mxu0 0.0
        %4509 = vmatpush1.msra.mxu0 %v4462
        %4510 = vmatprep.subr.mxu0 0.0
        %4511 = vmatpush2.msra.mxu0 0.0
        %4512 = vmatprep.subr.mxu0 0.0
        %4513 = vmatpush2.msra.mxu0 0.0
        %4514 = vmatprep.subr.mxu0 0.0
        %4515 = vmatpush2.msra.mxu0 0.0
        %4516 = vmatprep.subr.mxu0 0.0
        %4517 = vmatpush2.msra.mxu0 0.0
        %4518 = vmatprep.subr.mxu0 0.0
        %4519 = vmatpush2.msra.mxu0 0.0
        %4520 = vmatprep.subr.mxu0 0.0
        %4521 = vmatpush2.msra.mxu0 0.0
        %4522 = vmatprep.subr.mxu0 0.0
        %4523 = vmatpush2.msra.mxu0 0.0
        %4524 = vmatprep.subr.mxu0 0.0
        %4525 = vmatpush2.msra.mxu0 0.0
        %4526 = vmatprep.subr.mxu0 0.0
        %4527 = vmatpush2.msra.mxu0 0.0
        %4528 = vmatprep.subr.mxu0 0.0
        %4529 = vmatpush2.msra.mxu0 0.0
        %4530 = vmatprep.subr.mxu0 0.0
        %4531 = vmatpush2.msra.mxu0 0.0
        %4532 = vmatprep.subr.mxu0 0.0
        %4533 = vmatpush2.msra.mxu0 0.0
        %4534 = vmatprep.subr.mxu0 0.0
        %4535 = vmatpush2.msra.mxu0 0.0
        %4536 = vmatprep.subr.mxu0 0.0
        %4537 = vmatpush2.msra.mxu0 0.0
        %4538 = vmatprep.subr.mxu0 0.0
        %4539 = vmatpush2.msra.mxu0 0.0
        %4540 = vmatprep.subr.mxu0 0.0
        %4541 = vmatpush2.msra.mxu0 0.0
        %4542 = vmatprep.mubr.f32.mxu0 0.0
        %4543 = vmatmul.mubr.f32.gmra.mxu0 %v4451
        %v4544 = vpop.f32.mrf.mxu0
        %v4545 = vadd.f32 0.0, %v4544
        %v4546 = vpop.f32.mrf.mxu0
        %4547 = vmatprep.mubr.f32.mxu0 0.0
        %4548 = vmatmul.mubr.f32.gmra.mxu0 %v4452
        %v4549 = vpop.f32.mrf.mxu0
        %v4550 = vadd.f32 0.0, %v4549
        %v4551 = vpop.f32.mrf.mxu0
        %4552 = vmatprep.mubr.f32.mxu0 0.0
        %4553 = vmatmul.mubr.f32.gmra.mxu0 %v4453
        %v4554 = vpop.f32.mrf.mxu0
        %v4555 = vadd.f32 0.0, %v4554
        %v4556 = vpop.f32.mrf.mxu0
        %4557 = vmatprep.mubr.f32.mxu0 0.0
        %4558 = vmatmul.mubr.f32.gmra.mxu0 %v4454
        %v4559 = vpop.f32.mrf.mxu0
        %v4560 = vadd.f32 0.0, %v4559
        %v4561 = vpop.f32.mrf.mxu0
        %4562 = vmatprep.mubr.f32.mxu0 0.0
        %4563 = vmatmul.mubr.f32.gmra.mxu0 %v4455
        %v4564 = vpop.f32.mrf.mxu0
        %v4565 = vadd.f32 0.0, %v4564
        %v4566 = vpop.f32.mrf.mxu0
        %4567 = vmatprep.mubr.f32.mxu0 0.0
        %4568 = vmatmul.mubr.f32.gmra.mxu0 %v4456
        %v4569 = vpop.f32.mrf.mxu0
        %v4570 = vadd.f32 0.0, %v4569
        %v4571 = vpop.f32.mrf.mxu0
        %4572 = vmatprep.mubr.f32.mxu0 0.0
        %4573 = vmatmul.mubr.f32.gmra.mxu0 %v4457
        %v4574 = vpop.f32.mrf.mxu0
        %v4575 = vadd.f32 0.0, %v4574
        %v4576 = vpop.f32.mrf.mxu0
        %4577 = vmatprep.mubr.f32.mxu0 0.0
        %4578 = vmatmul.mubr.f32.gmra.mxu0 %v4458
        %v4579 = vpop.f32.mrf.mxu0
        %v4580 = vadd.f32 0.0, %v4579
        %v4581 = vpop.f32.mrf.mxu0
        %4582 = vmatprep.mubr.f32.mxu0 0.0
        %4583 = vmatmul.mubr.f32.gmra.mxu0 %v4459
        %v4584 = vpop.f32.mrf.mxu0
        %v4585 = vadd.f32 0.0, %v4584
        %v4586 = vpop.f32.mrf.mxu0
        %4587 = vmatprep.mubr.f32.mxu0 0.0
        %4588 = vmatmul.mubr.f32.gmra.mxu0 %v4460
        %v4589 = vpop.f32.mrf.mxu0
        %v4590 = vadd.f32 0.0, %v4589
        %v4591 = vpop.f32.mrf.mxu0
        %4592 = vdwg.mxu0
        %v4593 = vadd.f32 %v4441, %v4545
        %v4594 = vadd.f32 %v4442, %v4550
        %v4595 = vadd.f32 %v4443, %v4555
        %v4596 = vadd.f32 %v4444, %v4560
        %v4597 = vadd.f32 %v4445, %v4565
        %v4598 = vadd.f32 %v4446, %v4570
        %v4599 = vadd.f32 %v4447, %v4575
        %v4600 = vadd.f32 %v4448, %v4580
        %v4601 = vadd.f32 %v4449, %v4585
        %v4602 = vadd.f32 %v4450, %v4590
        %v4603 = vld [vmem:[#allocation3 + $0x14] sm:$0xff]
        %v4604 = vld [vmem:[#allocation3 + $0x1c] sm:$0xff]
        %v4605 = vld [vmem:[#allocation3 + $0x24] sm:$0xff]
        %v4606 = vld [vmem:[#allocation3 + $0x2c] sm:$0xff]
        %v4607 = vld [vmem:[#allocation3 + $0x34] sm:$0xff]
        %v4608 = vld [vmem:[#allocation3 + $0x3c] sm:$0xff]
        %v4609 = vld [vmem:[#allocation3 + $0x44] sm:$0xff]
        %v4610 = vld [vmem:[#allocation3 + $0x4c] sm:$0xff]
        %v4611 = vld [vmem:[#allocation3 + $0x54] sm:$0xff]
        %v4612 = vld [vmem:[#allocation3 + $0x5c] sm:$0xff]
        %s4613 = scalar_lea.vmem [#allocation7], 768
        %v4614 = vld [vmem:[%s4613] sm:$0xff]
        %v4615 = vld [vmem:[%s4613 + $0x8] sm:$0xff]
        %v4616 = vld [vmem:[%s4613 + $0x10] sm:$0xff]
        %v4617 = vld [vmem:[%s4613 + $0x18] sm:$0xff]
        %v4618 = vld [vmem:[%s4613 + $0x20] sm:$0xff]
        %v4619 = vld [vmem:[%s4613 + $0x28] sm:$0xff]
        %v4620 = vld [vmem:[%s4613 + $0x30] sm:$0xff]
        %v4621 = vld [vmem:[%s4613 + $0x38] sm:$0xff]
        %v4622 = vld [vmem:[%s4613 + $0x40] sm:$0xff]
        %v4623 = vld [vmem:[%s4613 + $0x48] sm:$0xff]
        %v4624 = vld [vmem:[%s4613 + $0x50] sm:$0xff]
        %v4625 = vld [vmem:[%s4613 + $0x58] sm:$0xff]
        %v4626 = vld [vmem:[%s4613 + $0x60] sm:$0xff]
        %v4627 = vld [vmem:[%s4613 + $0x68] sm:$0xff]
        %v4628 = vld [vmem:[%s4613 + $0x70] sm:$0xff]
        %v4629 = vld [vmem:[%s4613 + $0x78] sm:$0xff]
        %4630 = vmatprep.subr.mxu0 0.0
        %4631 = vmatpush1.msra.mxu0 %v4629
        %4632 = vmatprep.subr.mxu0 0.0
        %4633 = vmatpush1.msra.mxu0 %v4628
        %4634 = vmatprep.subr.mxu0 0.0
        %4635 = vmatpush1.msra.mxu0 %v4627
        %4636 = vmatprep.subr.mxu0 0.0
        %4637 = vmatpush1.msra.mxu0 %v4626
        %4638 = vmatprep.subr.mxu0 0.0
        %4639 = vmatpush1.msra.mxu0 %v4625
        %4640 = vmatprep.subr.mxu0 0.0
        %4641 = vmatpush1.msra.mxu0 %v4624
        %4642 = vmatprep.subr.mxu0 0.0
        %4643 = vmatpush1.msra.mxu0 %v4623
        %4644 = vmatprep.subr.mxu0 0.0
        %4645 = vmatpush1.msra.mxu0 %v4622
        %4646 = vmatprep.subr.mxu0 0.0
        %4647 = vmatpush1.msra.mxu0 %v4621
        %4648 = vmatprep.subr.mxu0 0.0
        %4649 = vmatpush1.msra.mxu0 %v4620
        %4650 = vmatprep.subr.mxu0 0.0
        %4651 = vmatpush1.msra.mxu0 %v4619
        %4652 = vmatprep.subr.mxu0 0.0
        %4653 = vmatpush1.msra.mxu0 %v4618
        %4654 = vmatprep.subr.mxu0 0.0
        %4655 = vmatpush1.msra.mxu0 %v4617
        %4656 = vmatprep.subr.mxu0 0.0
        %4657 = vmatpush1.msra.mxu0 %v4616
        %4658 = vmatprep.subr.mxu0 0.0
        %4659 = vmatpush1.msra.mxu0 %v4615
        %4660 = vmatprep.subr.mxu0 0.0
        %4661 = vmatpush1.msra.mxu0 %v4614
        %4662 = vmatprep.subr.mxu0 0.0
        %4663 = vmatpush2.msra.mxu0 0.0
        %4664 = vmatprep.subr.mxu0 0.0
        %4665 = vmatpush2.msra.mxu0 0.0
        %4666 = vmatprep.subr.mxu0 0.0
        %4667 = vmatpush2.msra.mxu0 0.0
        %4668 = vmatprep.subr.mxu0 0.0
        %4669 = vmatpush2.msra.mxu0 0.0
        %4670 = vmatprep.subr.mxu0 0.0
        %4671 = vmatpush2.msra.mxu0 0.0
        %4672 = vmatprep.subr.mxu0 0.0
        %4673 = vmatpush2.msra.mxu0 0.0
        %4674 = vmatprep.subr.mxu0 0.0
        %4675 = vmatpush2.msra.mxu0 0.0
        %4676 = vmatprep.subr.mxu0 0.0
        %4677 = vmatpush2.msra.mxu0 0.0
        %4678 = vmatprep.subr.mxu0 0.0
        %4679 = vmatpush2.msra.mxu0 0.0
        %4680 = vmatprep.subr.mxu0 0.0
        %4681 = vmatpush2.msra.mxu0 0.0
        %4682 = vmatprep.subr.mxu0 0.0
        %4683 = vmatpush2.msra.mxu0 0.0
        %4684 = vmatprep.subr.mxu0 0.0
        %4685 = vmatpush2.msra.mxu0 0.0
        %4686 = vmatprep.subr.mxu0 0.0
        %4687 = vmatpush2.msra.mxu0 0.0
        %4688 = vmatprep.subr.mxu0 0.0
        %4689 = vmatpush2.msra.mxu0 0.0
        %4690 = vmatprep.subr.mxu0 0.0
        %4691 = vmatpush2.msra.mxu0 0.0
        %4692 = vmatprep.subr.mxu0 0.0
        %4693 = vmatpush2.msra.mxu0 0.0
        %4694 = vmatprep.mubr.f32.mxu0 0.0
        %4695 = vmatmul.mubr.f32.gmra.mxu0 %v4603
        %v4696 = vpop.f32.mrf.mxu0
        %v4697 = vadd.f32 0.0, %v4696
        %v4698 = vpop.f32.mrf.mxu0
        %4699 = vmatprep.mubr.f32.mxu0 0.0
        %4700 = vmatmul.mubr.f32.gmra.mxu0 %v4604
        %v4701 = vpop.f32.mrf.mxu0
        %v4702 = vadd.f32 0.0, %v4701
        %v4703 = vpop.f32.mrf.mxu0
        %4704 = vmatprep.mubr.f32.mxu0 0.0
        %4705 = vmatmul.mubr.f32.gmra.mxu0 %v4605
        %v4706 = vpop.f32.mrf.mxu0
        %v4707 = vadd.f32 0.0, %v4706
        %v4708 = vpop.f32.mrf.mxu0
        %4709 = vmatprep.mubr.f32.mxu0 0.0
        %4710 = vmatmul.mubr.f32.gmra.mxu0 %v4606
        %v4711 = vpop.f32.mrf.mxu0
        %v4712 = vadd.f32 0.0, %v4711
        %v4713 = vpop.f32.mrf.mxu0
        %4714 = vmatprep.mubr.f32.mxu0 0.0
        %4715 = vmatmul.mubr.f32.gmra.mxu0 %v4607
        %v4716 = vpop.f32.mrf.mxu0
        %v4717 = vadd.f32 0.0, %v4716
        %v4718 = vpop.f32.mrf.mxu0
        %4719 = vmatprep.mubr.f32.mxu0 0.0
        %4720 = vmatmul.mubr.f32.gmra.mxu0 %v4608
        %v4721 = vpop.f32.mrf.mxu0
        %v4722 = vadd.f32 0.0, %v4721
        %v4723 = vpop.f32.mrf.mxu0
        %4724 = vmatprep.mubr.f32.mxu0 0.0
        %4725 = vmatmul.mubr.f32.gmra.mxu0 %v4609
        %v4726 = vpop.f32.mrf.mxu0
        %v4727 = vadd.f32 0.0, %v4726
        %v4728 = vpop.f32.mrf.mxu0
        %4729 = vmatprep.mubr.f32.mxu0 0.0
        %4730 = vmatmul.mubr.f32.gmra.mxu0 %v4610
        %v4731 = vpop.f32.mrf.mxu0
        %v4732 = vadd.f32 0.0, %v4731
        %v4733 = vpop.f32.mrf.mxu0
        %4734 = vmatprep.mubr.f32.mxu0 0.0
        %4735 = vmatmul.mubr.f32.gmra.mxu0 %v4611
        %v4736 = vpop.f32.mrf.mxu0
        %v4737 = vadd.f32 0.0, %v4736
        %v4738 = vpop.f32.mrf.mxu0
        %4739 = vmatprep.mubr.f32.mxu0 0.0
        %4740 = vmatmul.mubr.f32.gmra.mxu0 %v4612
        %v4741 = vpop.f32.mrf.mxu0
        %v4742 = vadd.f32 0.0, %v4741
        %v4743 = vpop.f32.mrf.mxu0
        %4744 = vdwg.mxu0
        %v4745 = vadd.f32 %v4593, %v4697
        %v4746 = vadd.f32 %v4594, %v4702
        %v4747 = vadd.f32 %v4595, %v4707
        %v4748 = vadd.f32 %v4596, %v4712
        %v4749 = vadd.f32 %v4597, %v4717
        %v4750 = vadd.f32 %v4598, %v4722
        %v4751 = vadd.f32 %v4599, %v4727
        %v4752 = vadd.f32 %v4600, %v4732
        %v4753 = vadd.f32 %v4601, %v4737
        %v4754 = vadd.f32 %v4602, %v4742
        %v4755 = vld [vmem:[#allocation3 + $0x15] sm:$0xff]
        %v4756 = vld [vmem:[#allocation3 + $0x1d] sm:$0xff]
        %v4757 = vld [vmem:[#allocation3 + $0x25] sm:$0xff]
        %v4758 = vld [vmem:[#allocation3 + $0x2d] sm:$0xff]
        %v4759 = vld [vmem:[#allocation3 + $0x35] sm:$0xff]
        %v4760 = vld [vmem:[#allocation3 + $0x3d] sm:$0xff]
        %v4761 = vld [vmem:[#allocation3 + $0x45] sm:$0xff]
        %v4762 = vld [vmem:[#allocation3 + $0x4d] sm:$0xff]
        %v4763 = vld [vmem:[#allocation3 + $0x55] sm:$0xff]
        %v4764 = vld [vmem:[#allocation3 + $0x5d] sm:$0xff]
        %s4765 = scalar_lea.vmem [#allocation7], 896
        %v4766 = vld [vmem:[%s4765] sm:$0xff]
        %v4767 = vld [vmem:[%s4765 + $0x8] sm:$0xff]
        %v4768 = vld [vmem:[%s4765 + $0x10] sm:$0xff]
        %v4769 = vld [vmem:[%s4765 + $0x18] sm:$0xff]
        %v4770 = vld [vmem:[%s4765 + $0x20] sm:$0xff]
        %v4771 = vld [vmem:[%s4765 + $0x28] sm:$0xff]
        %v4772 = vld [vmem:[%s4765 + $0x30] sm:$0xff]
        %v4773 = vld [vmem:[%s4765 + $0x38] sm:$0xff]
        %v4774 = vld [vmem:[%s4765 + $0x40] sm:$0xff]
        %v4775 = vld [vmem:[%s4765 + $0x48] sm:$0xff]
        %v4776 = vld [vmem:[%s4765 + $0x50] sm:$0xff]
        %v4777 = vld [vmem:[%s4765 + $0x58] sm:$0xff]
        %v4778 = vld [vmem:[%s4765 + $0x60] sm:$0xff]
        %v4779 = vld [vmem:[%s4765 + $0x68] sm:$0xff]
        %v4780 = vld [vmem:[%s4765 + $0x70] sm:$0xff]
        %v4781 = vld [vmem:[%s4765 + $0x78] sm:$0xff]
        %4782 = vmatprep.subr.mxu0 0.0
        %4783 = vmatpush1.msra.mxu0 %v4781
        %4784 = vmatprep.subr.mxu0 0.0
        %4785 = vmatpush1.msra.mxu0 %v4780
        %4786 = vmatprep.subr.mxu0 0.0
        %4787 = vmatpush1.msra.mxu0 %v4779
        %4788 = vmatprep.subr.mxu0 0.0
        %4789 = vmatpush1.msra.mxu0 %v4778
        %4790 = vmatprep.subr.mxu0 0.0
        %4791 = vmatpush1.msra.mxu0 %v4777
        %4792 = vmatprep.subr.mxu0 0.0
        %4793 = vmatpush1.msra.mxu0 %v4776
        %4794 = vmatprep.subr.mxu0 0.0
        %4795 = vmatpush1.msra.mxu0 %v4775
        %4796 = vmatprep.subr.mxu0 0.0
        %4797 = vmatpush1.msra.mxu0 %v4774
        %4798 = vmatprep.subr.mxu0 0.0
        %4799 = vmatpush1.msra.mxu0 %v4773
        %4800 = vmatprep.subr.mxu0 0.0
        %4801 = vmatpush1.msra.mxu0 %v4772
        %4802 = vmatprep.subr.mxu0 0.0
        %4803 = vmatpush1.msra.mxu0 %v4771
        %4804 = vmatprep.subr.mxu0 0.0
        %4805 = vmatpush1.msra.mxu0 %v4770
        %4806 = vmatprep.subr.mxu0 0.0
        %4807 = vmatpush1.msra.mxu0 %v4769
        %4808 = vmatprep.subr.mxu0 0.0
        %4809 = vmatpush1.msra.mxu0 %v4768
        %4810 = vmatprep.subr.mxu0 0.0
        %4811 = vmatpush1.msra.mxu0 %v4767
        %4812 = vmatprep.subr.mxu0 0.0
        %4813 = vmatpush1.msra.mxu0 %v4766
        %4814 = vmatprep.subr.mxu0 0.0
        %4815 = vmatpush2.msra.mxu0 0.0
        %4816 = vmatprep.subr.mxu0 0.0
        %4817 = vmatpush2.msra.mxu0 0.0
        %4818 = vmatprep.subr.mxu0 0.0
        %4819 = vmatpush2.msra.mxu0 0.0
        %4820 = vmatprep.subr.mxu0 0.0
        %4821 = vmatpush2.msra.mxu0 0.0
        %4822 = vmatprep.subr.mxu0 0.0
        %4823 = vmatpush2.msra.mxu0 0.0
        %4824 = vmatprep.subr.mxu0 0.0
        %4825 = vmatpush2.msra.mxu0 0.0
        %4826 = vmatprep.subr.mxu0 0.0
        %4827 = vmatpush2.msra.mxu0 0.0
        %4828 = vmatprep.subr.mxu0 0.0
        %4829 = vmatpush2.msra.mxu0 0.0
        %4830 = vmatprep.subr.mxu0 0.0
        %4831 = vmatpush2.msra.mxu0 0.0
        %4832 = vmatprep.subr.mxu0 0.0
        %4833 = vmatpush2.msra.mxu0 0.0
        %4834 = vmatprep.subr.mxu0 0.0
        %4835 = vmatpush2.msra.mxu0 0.0
        %4836 = vmatprep.subr.mxu0 0.0
        %4837 = vmatpush2.msra.mxu0 0.0
        %4838 = vmatprep.subr.mxu0 0.0
        %4839 = vmatpush2.msra.mxu0 0.0
        %4840 = vmatprep.subr.mxu0 0.0
        %4841 = vmatpush2.msra.mxu0 0.0
        %4842 = vmatprep.subr.mxu0 0.0
        %4843 = vmatpush2.msra.mxu0 0.0
        %4844 = vmatprep.subr.mxu0 0.0
        %4845 = vmatpush2.msra.mxu0 0.0
        %4846 = vmatprep.mubr.f32.mxu0 0.0
        %4847 = vmatmul.mubr.f32.gmra.mxu0 %v4755
        %v4848 = vpop.f32.mrf.mxu0
        %v4849 = vadd.f32 0.0, %v4848
        %v4850 = vpop.f32.mrf.mxu0
        %4851 = vmatprep.mubr.f32.mxu0 0.0
        %4852 = vmatmul.mubr.f32.gmra.mxu0 %v4756
        %v4853 = vpop.f32.mrf.mxu0
        %v4854 = vadd.f32 0.0, %v4853
        %v4855 = vpop.f32.mrf.mxu0
        %4856 = vmatprep.mubr.f32.mxu0 0.0
        %4857 = vmatmul.mubr.f32.gmra.mxu0 %v4757
        %v4858 = vpop.f32.mrf.mxu0
        %v4859 = vadd.f32 0.0, %v4858
        %v4860 = vpop.f32.mrf.mxu0
        %4861 = vmatprep.mubr.f32.mxu0 0.0
        %4862 = vmatmul.mubr.f32.gmra.mxu0 %v4758
        %v4863 = vpop.f32.mrf.mxu0
        %v4864 = vadd.f32 0.0, %v4863
        %v4865 = vpop.f32.mrf.mxu0
        %4866 = vmatprep.mubr.f32.mxu0 0.0
        %4867 = vmatmul.mubr.f32.gmra.mxu0 %v4759
        %v4868 = vpop.f32.mrf.mxu0
        %v4869 = vadd.f32 0.0, %v4868
        %v4870 = vpop.f32.mrf.mxu0
        %4871 = vmatprep.mubr.f32.mxu0 0.0
        %4872 = vmatmul.mubr.f32.gmra.mxu0 %v4760
        %v4873 = vpop.f32.mrf.mxu0
        %v4874 = vadd.f32 0.0, %v4873
        %v4875 = vpop.f32.mrf.mxu0
        %4876 = vmatprep.mubr.f32.mxu0 0.0
        %4877 = vmatmul.mubr.f32.gmra.mxu0 %v4761
        %v4878 = vpop.f32.mrf.mxu0
        %v4879 = vadd.f32 0.0, %v4878
        %v4880 = vpop.f32.mrf.mxu0
        %4881 = vmatprep.mubr.f32.mxu0 0.0
        %4882 = vmatmul.mubr.f32.gmra.mxu0 %v4762
        %v4883 = vpop.f32.mrf.mxu0
        %v4884 = vadd.f32 0.0, %v4883
        %v4885 = vpop.f32.mrf.mxu0
        %4886 = vmatprep.mubr.f32.mxu0 0.0
        %4887 = vmatmul.mubr.f32.gmra.mxu0 %v4763
        %v4888 = vpop.f32.mrf.mxu0
        %v4889 = vadd.f32 0.0, %v4888
        %v4890 = vpop.f32.mrf.mxu0
        %4891 = vmatprep.mubr.f32.mxu0 0.0
        %4892 = vmatmul.mubr.f32.gmra.mxu0 %v4764
        %v4893 = vpop.f32.mrf.mxu0
        %v4894 = vadd.f32 0.0, %v4893
        %v4895 = vpop.f32.mrf.mxu0
        %4896 = vdwg.mxu0
        %v4897 = vadd.f32 %v4745, %v4849
        %v4898 = vadd.f32 %v4746, %v4854
        %v4899 = vadd.f32 %v4747, %v4859
        %v4900 = vadd.f32 %v4748, %v4864
        %v4901 = vadd.f32 %v4749, %v4869
        %v4902 = vadd.f32 %v4750, %v4874
        %v4903 = vadd.f32 %v4751, %v4879
        %v4904 = vadd.f32 %v4752, %v4884
        %v4905 = vadd.f32 %v4753, %v4889
        %v4906 = vadd.f32 %v4754, %v4894
        %v4907 = vld [vmem:[#allocation3 + $0x16] sm:$0xff]
        %v4908 = vld [vmem:[#allocation3 + $0x1e] sm:$0xff]
        %v4909 = vld [vmem:[#allocation3 + $0x26] sm:$0xff]
        %v4910 = vld [vmem:[#allocation3 + $0x2e] sm:$0xff]
        %v4911 = vld [vmem:[#allocation3 + $0x36] sm:$0xff]
        %v4912 = vld [vmem:[#allocation3 + $0x3e] sm:$0xff]
        %v4913 = vld [vmem:[#allocation3 + $0x46] sm:$0xff]
        %v4914 = vld [vmem:[#allocation3 + $0x4e] sm:$0xff]
        %v4915 = vld [vmem:[#allocation3 + $0x56] sm:$0xff]
        %v4916 = vld [vmem:[#allocation3 + $0x5e] sm:$0xff]
        %s4917 = scalar_lea.vmem [#allocation7], 1024
        %v4918 = vld [vmem:[%s4917] sm:$0xff]
        %v4919 = vld [vmem:[%s4917 + $0x8] sm:$0xff]
        %v4920 = vld [vmem:[%s4917 + $0x10] sm:$0xff]
        %v4921 = vld [vmem:[%s4917 + $0x18] sm:$0xff]
        %v4922 = vld [vmem:[%s4917 + $0x20] sm:$0xff]
        %v4923 = vld [vmem:[%s4917 + $0x28] sm:$0xff]
        %v4924 = vld [vmem:[%s4917 + $0x30] sm:$0xff]
        %v4925 = vld [vmem:[%s4917 + $0x38] sm:$0xff]
        %v4926 = vld [vmem:[%s4917 + $0x40] sm:$0xff]
        %v4927 = vld [vmem:[%s4917 + $0x48] sm:$0xff]
        %v4928 = vld [vmem:[%s4917 + $0x50] sm:$0xff]
        %v4929 = vld [vmem:[%s4917 + $0x58] sm:$0xff]
        %v4930 = vld [vmem:[%s4917 + $0x60] sm:$0xff]
        %v4931 = vld [vmem:[%s4917 + $0x68] sm:$0xff]
        %v4932 = vld [vmem:[%s4917 + $0x70] sm:$0xff]
        %v4933 = vld [vmem:[%s4917 + $0x78] sm:$0xff]
        %4934 = vmatprep.subr.mxu0 0.0
        %4935 = vmatpush1.msra.mxu0 %v4933
        %4936 = vmatprep.subr.mxu0 0.0
        %4937 = vmatpush1.msra.mxu0 %v4932
        %4938 = vmatprep.subr.mxu0 0.0
        %4939 = vmatpush1.msra.mxu0 %v4931
        %4940 = vmatprep.subr.mxu0 0.0
        %4941 = vmatpush1.msra.mxu0 %v4930
        %4942 = vmatprep.subr.mxu0 0.0
        %4943 = vmatpush1.msra.mxu0 %v4929
        %4944 = vmatprep.subr.mxu0 0.0
        %4945 = vmatpush1.msra.mxu0 %v4928
        %4946 = vmatprep.subr.mxu0 0.0
        %4947 = vmatpush1.msra.mxu0 %v4927
        %4948 = vmatprep.subr.mxu0 0.0
        %4949 = vmatpush1.msra.mxu0 %v4926
        %4950 = vmatprep.subr.mxu0 0.0
        %4951 = vmatpush1.msra.mxu0 %v4925
        %4952 = vmatprep.subr.mxu0 0.0
        %4953 = vmatpush1.msra.mxu0 %v4924
        %4954 = vmatprep.subr.mxu0 0.0
        %4955 = vmatpush1.msra.mxu0 %v4923
        %4956 = vmatprep.subr.mxu0 0.0
        %4957 = vmatpush1.msra.mxu0 %v4922
        %4958 = vmatprep.subr.mxu0 0.0
        %4959 = vmatpush1.msra.mxu0 %v4921
        %4960 = vmatprep.subr.mxu0 0.0
        %4961 = vmatpush1.msra.mxu0 %v4920
        %4962 = vmatprep.subr.mxu0 0.0
        %4963 = vmatpush1.msra.mxu0 %v4919
        %4964 = vmatprep.subr.mxu0 0.0
        %4965 = vmatpush1.msra.mxu0 %v4918
        %4966 = vmatprep.subr.mxu0 0.0
        %4967 = vmatpush2.msra.mxu0 0.0
        %4968 = vmatprep.subr.mxu0 0.0
        %4969 = vmatpush2.msra.mxu0 0.0
        %4970 = vmatprep.subr.mxu0 0.0
        %4971 = vmatpush2.msra.mxu0 0.0
        %4972 = vmatprep.subr.mxu0 0.0
        %4973 = vmatpush2.msra.mxu0 0.0
        %4974 = vmatprep.subr.mxu0 0.0
        %4975 = vmatpush2.msra.mxu0 0.0
        %4976 = vmatprep.subr.mxu0 0.0
        %4977 = vmatpush2.msra.mxu0 0.0
        %4978 = vmatprep.subr.mxu0 0.0
        %4979 = vmatpush2.msra.mxu0 0.0
        %4980 = vmatprep.subr.mxu0 0.0
        %4981 = vmatpush2.msra.mxu0 0.0
        %4982 = vmatprep.subr.mxu0 0.0
        %4983 = vmatpush2.msra.mxu0 0.0
        %4984 = vmatprep.subr.mxu0 0.0
        %4985 = vmatpush2.msra.mxu0 0.0
        %4986 = vmatprep.subr.mxu0 0.0
        %4987 = vmatpush2.msra.mxu0 0.0
        %4988 = vmatprep.subr.mxu0 0.0
        %4989 = vmatpush2.msra.mxu0 0.0
        %4990 = vmatprep.subr.mxu0 0.0
        %4991 = vmatpush2.msra.mxu0 0.0
        %4992 = vmatprep.subr.mxu0 0.0
        %4993 = vmatpush2.msra.mxu0 0.0
        %4994 = vmatprep.subr.mxu0 0.0
        %4995 = vmatpush2.msra.mxu0 0.0
        %4996 = vmatprep.subr.mxu0 0.0
        %4997 = vmatpush2.msra.mxu0 0.0
        %4998 = vmatprep.mubr.f32.mxu0 0.0
        %4999 = vmatmul.mubr.f32.gmra.mxu0 %v4907
        %v5000 = vpop.f32.mrf.mxu0
        %v5001 = vadd.f32 0.0, %v5000
        %v5002 = vpop.f32.mrf.mxu0
        %5003 = vmatprep.mubr.f32.mxu0 0.0
        %5004 = vmatmul.mubr.f32.gmra.mxu0 %v4908
        %v5005 = vpop.f32.mrf.mxu0
        %v5006 = vadd.f32 0.0, %v5005
        %v5007 = vpop.f32.mrf.mxu0
        %5008 = vmatprep.mubr.f32.mxu0 0.0
        %5009 = vmatmul.mubr.f32.gmra.mxu0 %v4909
        %v5010 = vpop.f32.mrf.mxu0
        %v5011 = vadd.f32 0.0, %v5010
        %v5012 = vpop.f32.mrf.mxu0
        %5013 = vmatprep.mubr.f32.mxu0 0.0
        %5014 = vmatmul.mubr.f32.gmra.mxu0 %v4910
        %v5015 = vpop.f32.mrf.mxu0
        %v5016 = vadd.f32 0.0, %v5015
        %v5017 = vpop.f32.mrf.mxu0
        %5018 = vmatprep.mubr.f32.mxu0 0.0
        %5019 = vmatmul.mubr.f32.gmra.mxu0 %v4911
        %v5020 = vpop.f32.mrf.mxu0
        %v5021 = vadd.f32 0.0, %v5020
        %v5022 = vpop.f32.mrf.mxu0
        %5023 = vmatprep.mubr.f32.mxu0 0.0
        %5024 = vmatmul.mubr.f32.gmra.mxu0 %v4912
        %v5025 = vpop.f32.mrf.mxu0
        %v5026 = vadd.f32 0.0, %v5025
        %v5027 = vpop.f32.mrf.mxu0
        %5028 = vmatprep.mubr.f32.mxu0 0.0
        %5029 = vmatmul.mubr.f32.gmra.mxu0 %v4913
        %v5030 = vpop.f32.mrf.mxu0
        %v5031 = vadd.f32 0.0, %v5030
        %v5032 = vpop.f32.mrf.mxu0
        %5033 = vmatprep.mubr.f32.mxu0 0.0
        %5034 = vmatmul.mubr.f32.gmra.mxu0 %v4914
        %v5035 = vpop.f32.mrf.mxu0
        %v5036 = vadd.f32 0.0, %v5035
        %v5037 = vpop.f32.mrf.mxu0
        %5038 = vmatprep.mubr.f32.mxu0 0.0
        %5039 = vmatmul.mubr.f32.gmra.mxu0 %v4915
        %v5040 = vpop.f32.mrf.mxu0
        %v5041 = vadd.f32 0.0, %v5040
        %v5042 = vpop.f32.mrf.mxu0
        %5043 = vmatprep.mubr.f32.mxu0 0.0
        %5044 = vmatmul.mubr.f32.gmra.mxu0 %v4916
        %v5045 = vpop.f32.mrf.mxu0
        %v5046 = vadd.f32 0.0, %v5045
        %v5047 = vpop.f32.mrf.mxu0
        %5048 = vdwg.mxu0
        %v5049 = vadd.f32 %v4897, %v5001
        %v5050 = vadd.f32 %v4898, %v5006
        %v5051 = vadd.f32 %v4899, %v5011
        %v5052 = vadd.f32 %v4900, %v5016
        %v5053 = vadd.f32 %v4901, %v5021
        %v5054 = vadd.f32 %v4902, %v5026
        %v5055 = vadd.f32 %v4903, %v5031
        %v5056 = vadd.f32 %v4904, %v5036
        %v5057 = vadd.f32 %v4905, %v5041
        %v5058 = vadd.f32 %v4906, %v5046
        %v5059 = vld [vmem:[%s11] sm:$0x1]
        %v5061 = vlaneseq
        %v5062 = vshrl.u32 %v5061, 7
        %v5063 = vsub.s32 0, %v5062
        %v5064 = vrot.slane %v5059, %v5063
        %v5066 = vadd.f32 %v5049, %v5064
        %v5067 = vadd.f32 %v5050, %v5064
        %v5068 = vadd.f32 %v5051, %v5064
        %v5069 = vadd.f32 %v5052, %v5064
        %v5070 = vadd.f32 %v5053, %v5064
        %v5071 = vadd.f32 %v5054, %v5064
        %v5072 = vadd.f32 %v5055, %v5064
        %v5073 = vadd.f32 %v5056, %v5064
        %v5074 = vadd.f32 %v5057, %v5064
        %v5075 = vadd.f32 %v5058, %v5064
        %v5076 = vmul.f32 %v5066, %v2009
        %v5077 = vmul.f32 %v5067, %v2014
        %v5078 = vmul.f32 %v5068, %v2019
        %v5079 = vmul.f32 %v5069, %v2024
        %v5080 = vmul.f32 %v5070, %v2029
        %v5081 = vmul.f32 %v5071, %v2034
        %v5082 = vmul.f32 %v5072, %v2039
        %v5083 = vmul.f32 %v5073, %v2044
        %v5084 = vmul.f32 %v5074, %v2049
        %v5085 = vmul.f32 %v5075, %v2054
        %v5086 = vadd.f32 %v5076, %v5077
        %v5087 = vadd.f32 %v5086, %v5078
        %v5088 = vadd.f32 %v5087, %v5079
        %v5089 = vadd.f32 %v5088, %v5080
        %v5090 = vadd.f32 %v5089, %v5081
        %v5091 = vadd.f32 %v5090, %v5082
        %v5092 = vadd.f32 %v5091, %v5083
        %v5093 = vadd.f32 %v5092, %v5084
        %v5094 = vadd.f32 %v5093, %v5085
        %5095 = vadd.xlane.f32.xlu0 %v5094
        %v5096 = vpop.xlane.xlu0 %5095
        %v5097 = vrot.slane %v5096, 4
        %v5098 = vadd.f32 %v5096, %v5097
        %v5099 = vrot.slane %v5098, 2
        %v5100 = vadd.f32 %v5098, %v5099
        %v5101 = vrot.slane %v5100, 1
        %v5102 = vadd.f32 %v5100, %v5101
        %s5103 = vtos %v5102
        %v5104 = vrcp.pop 512.0
        %s5105 = vtos %v5104
        %s5106 = smul.f32 %s5103, %s5105
        %v5107 = vmul.f32 %v5076, %v5076
        %v5108 = vmul.f32 %v5077, %v5077
        %v5109 = vmul.f32 %v5078, %v5078
        %v5110 = vmul.f32 %v5079, %v5079
        %v5111 = vmul.f32 %v5080, %v5080
        %v5112 = vmul.f32 %v5081, %v5081
        %v5113 = vmul.f32 %v5082, %v5082
        %v5114 = vmul.f32 %v5083, %v5083
        %v5115 = vmul.f32 %v5084, %v5084
        %v5116 = vmul.f32 %v5085, %v5085
        %v5117 = vadd.f32 %v5107, %v5108
        %v5118 = vadd.f32 %v5117, %v5109
        %v5119 = vadd.f32 %v5118, %v5110
        %v5120 = vadd.f32 %v5119, %v5111
        %v5121 = vadd.f32 %v5120, %v5112
        %v5122 = vadd.f32 %v5121, %v5113
        %v5123 = vadd.f32 %v5122, %v5114
        %v5124 = vadd.f32 %v5123, %v5115
        %v5125 = vadd.f32 %v5124, %v5116
        %5126 = vadd.xlane.f32.xlu0 %v5125
        %v5127 = vpop.xlane.xlu0 %5126
        %v5128 = vrot.slane %v5127, 4
        %v5129 = vadd.f32 %v5127, %v5128
        %v5130 = vrot.slane %v5129, 2
        %v5131 = vadd.f32 %v5129, %v5130
        %v5132 = vrot.slane %v5131, 1
        %v5133 = vadd.f32 %v5131, %v5132
        %s5134 = vtos %v5133
        %v5135 = vrcp.pop 512.0
        %s5136 = vtos %v5135
        %s5137 = smul.f32 %s5134, %s5136
        %s5138 = smul.f32 %s5106, %s5106
        %s5139 = ssub.f32 %s5137, %s5138
        %s5140 = smax.f32 %s5139, 0.0
        %v5141 = vld [vmem:[%s12] sm:$0x1]
        %s5142 = sadd.f32 %s5140, 1e-05
        %v5143 = vstv %s5142
        %v5144 = vrsqrt.pop %v5143
        %s5145 = vtos %v5144
        %v5146 = vstv %s5145
        %v5147 = vmul.f32 %v5141, %v5146
        %v5148 = vld [vmem:[%s13] sm:$0x1]
        %v5149 = vstv %s5106
        %v5150 = vmul.f32 %v5149, %v5147
        %v5151 = vsub.f32 %v5148, %v5150
        %v5153 = vlaneseq
        %v5154 = vshrl.u32 %v5153, 7
        %v5155 = vsub.s32 0, %v5154
        %v5156 = vrot.slane %v5147, %v5155
        %v5158 = vmul.f32 %v5066, %v5156
        %v5159 = vmul.f32 %v5067, %v5156
        %v5160 = vmul.f32 %v5068, %v5156
        %v5161 = vmul.f32 %v5069, %v5156
        %v5162 = vmul.f32 %v5070, %v5156
        %v5163 = vmul.f32 %v5071, %v5156
        %v5164 = vmul.f32 %v5072, %v5156
        %v5165 = vmul.f32 %v5073, %v5156
        %v5166 = vmul.f32 %v5074, %v5156
        %v5167 = vmul.f32 %v5075, %v5156
        %v5169 = vlaneseq
        %v5170 = vshrl.u32 %v5169, 7
        %v5171 = vsub.s32 0, %v5170
        %v5172 = vrot.slane %v5151, %v5171
        %v5174 = vadd.f32 %v5158, %v5172
        %v5175 = vadd.f32 %v5159, %v5172
        %v5176 = vadd.f32 %v5160, %v5172
        %v5177 = vadd.f32 %v5161, %v5172
        %v5178 = vadd.f32 %v5162, %v5172
        %v5179 = vadd.f32 %v5163, %v5172
        %v5180 = vadd.f32 %v5164, %v5172
        %v5181 = vadd.f32 %v5165, %v5172
        %v5182 = vadd.f32 %v5166, %v5172
        %v5183 = vadd.f32 %v5167, %v5172
        %v5184 = vmax.f32 %v5174, 0.0
        %v5185 = vmax.f32 %v5175, 0.0
        %v5186 = vmax.f32 %v5176, 0.0
        %v5187 = vmax.f32 %v5177, 0.0
        %v5188 = vmax.f32 %v5178, 0.0
        %v5189 = vmax.f32 %v5179, 0.0
        %v5190 = vmax.f32 %v5180, 0.0
        %v5191 = vmax.f32 %v5181, 0.0
        %v5192 = vmax.f32 %v5182, 0.0
        %v5193 = vmax.f32 %v5183, 0.0
        %v5194 = vmul.f32 %v5184, %v2009
        %v5195 = vmul.f32 %v5185, %v2014
        %v5196 = vmul.f32 %v5186, %v2019
        %v5197 = vmul.f32 %v5187, %v2024
        %v5198 = vmul.f32 %v5188, %v2029
        %v5199 = vmul.f32 %v5189, %v2034
        %v5200 = vmul.f32 %v5190, %v2039
        %v5201 = vmul.f32 %v5191, %v2044
        %v5202 = vmul.f32 %v5192, %v2049
        %v5203 = vmul.f32 %v5193, %v2054
        %5204 = vst [vmem:[%s490] sm:$0xff] %v5194
        %5205 = vst [vmem:[%s490 + $0x8] sm:$0xff] %v5195
        %5206 = vst [vmem:[%s490 + $0x10] sm:$0xff] %v5196
        %5207 = vst [vmem:[%s490 + $0x18] sm:$0xff] %v5197
        %5208 = vst [vmem:[%s490 + $0x20] sm:$0xff] %v5198
        %5209 = vst [vmem:[%s490 + $0x28] sm:$0xff] %v5199
        %5210 = vst [vmem:[%s490 + $0x30] sm:$0xff] %v5200
        %5211 = vst [vmem:[%s490 + $0x38] sm:$0xff] %v5201
        %5212 = vst [vmem:[%s490 + $0x40] sm:$0xff] %v5202
        %5213 = vst [vmem:[%s490 + $0x48] sm:$0xff] %v5203
        %s5214 = sand.u32 %s337, 1
        %s5215 = scalar_lea.sflag [#allocation6], %s5214
        %s5216 = sand.u32 %s337, 1
        %s5217 = smul.addr %s5216, 80
        %s5218 = scalar_lea.vmem [#allocation9], %s5217
        // Predicated region
        $region85: #{tpu_custom_call.1} parent=75 // pred_check
          %p5219 = pneg %p347
        $region86: #{tpu_custom_call.1} parent=75 // pred_check_branch
          %5221 = sbr.rel (%p5219) target = $region88
        $region87: #{tpu_custom_call.1} parent=75 // pred_region
          %s5223 = ssub.s32 1280, 1280
          %5224 = vsyncadd %s5215, %s5223
          %s5225 = smul.addr %s30, 10
          %s5226 = smul.addr %s5225, 128
          %s5227 = scalar_lea.hbm %s14, %s5226
          %s5228 = sshll.u32 %s5218, 4
          %s5229 = int_to_ptr.vmem [resolvable:$true] %s5228
          %5234 = dma.vmem_to_hbm [thread:$0]  %s5229, 1280, %s5227, %s5215, 128, 128, 8
        $region88: #{tpu_custom_call.1} parent=75 // pred_fallthru
          _
      $region76: #{tpu_custom_call.1} parent=5 // pred_fallthru
        _
      %p5235 = scmp.le.s32.totalorder 2, %s25
      // Predicated region
      $region89: #{tpu_custom_call.1} parent=5 // pred_check
        %p5236 = pneg %p5235
      $region90: #{tpu_custom_call.1} parent=5 // pred_check_branch
        %5238 = sbr.rel (%p5236) target = $region92
      $region91: #{tpu_custom_call.1} parent=5 // pred_region
        %s5239 = ssub.s32 %s25, 2
        // Predicated region
        $region93: #{tpu_custom_call.1} parent=91 // pred_check
          %p5240 = pneg %p353
        $region94: #{tpu_custom_call.1} parent=91 // pred_check_branch
          %5242 = sbr.rel (%p5240) target = $region96
        $region95: #{tpu_custom_call.1} parent=91 // pred_region
          %s5243 = sand.u32 %s338, 1
          %s5244 = scalar_lea.sflag [#allocation6], %s5243
          %s5245 = sand.u32 %s338, 1
          %s5246 = smul.addr %s5245, 80
          %s5247 = scalar_lea.vmem [#allocation9], %s5246
          %5248 = dma.done %s5244, 1280
        $region96: #{tpu_custom_call.1} parent=91 // pred_fallthru
          _
      $region92: #{tpu_custom_call.1} parent=5 // pred_fallthru
        _
    $region6: #{tpu_custom_call.1} parent=1 // loop_footer
      %s29 = sadd.s32 1, %s25
    $region7: #{tpu_custom_call.1} parent=1 // loop_footer_branch
      %24 = sbr.rel target = $region3
    $region8: #{tpu_custom_call.1} parent=1 // loop_exit
      _
    %5249 = vsyncpa [#allocation5], 1
    %s5250 = scalar_lea.sflag [#allocation5], 1
    %5251 = vsyncpa %s5250, 1
    %5252 = vsyncpa [#allocation8], 1
    %5253 = vsyncpa [#allocation6], 1
    %s5254 = scalar_lea.sflag [#allocation6], 1
    %5255 = vsyncpa %s5254, 1

</llo_original>
